<compile_context>
chip_gen: v5e
topology: v5e:2x2
jax: 0.10.0
libtpu: 0.0.40
codegen_flags: <defaults>
</compile_context>

<pallas_src>
from functools import partial

import jax
import jax.numpy as jnp
from jax import lax
from jax.experimental import pallas as pl
from jax.experimental.pallas import tpu as pltpu

# Sentinel coordinate for padded points.  Real coordinates must be << 1e4 in
# magnitude so real<->pad squared distances (~3e16) dominate any real distance.
_SENTINEL = 1e8


def _repulsion_kernel(rows_ref, cols_ref, out_ref, *, knn, radius, inv_h2,
                      tm, n_pad, n_real, unroll):
    """One (batch, row-tile) program: (TM, N_pad) distance slab + knn-1 selection."""
    t = pl.program_id(1)

    rows = rows_ref[0]          # (TM, 3)     query tile, point-major (sublane rows)
    cols = cols_ref[0]          # (3, N_pad)  all points, coord-major (lane-dense)

    # ---- pairwise squared distances: one immutable (TM, N_pad) slab ----------
    # Per-coordinate VPU form keeps the diagonal exactly 0, which the analytic
    # self-term / tie-count initialisation below relies on.
    # TODO(synk): for very large N, offload the -2*x.y cross term to the idle
    # MXU (Gram form, with a clamp) and/or use a column-tiled two-level
    # selection to keep VMEM O(TM*knn) instead of O(TM*N).
    sqd = jnp.zeros((tm, n_pad), dtype=jnp.float32)
    for c in range(3):
        rc = rows[:, c:c + 1]            # (TM, 1)   already sublane-major
        cc = cols[c:c + 1, :]            # (1, N_pad) already lane-major
        diff = rc - cc
        sqd = sqd + diff * diff

    # ---- knn-1 smallest values per row, exact tie multiplicity ---------------
    # Carried per-row state: pm = value of the last pick, tc = how many copies
    # of pm have been consumed.  sqd is never rewritten, so no slab store is
    # issued inside the loop.  Init (pm=0, tc=1) consumes exactly one zero (the
    # self neighbour); exact duplicate points (also d=0) are still picked with
    # multiplicity, matching topk-over-values semantics.
    inf = jnp.float32(jnp.inf)
    radius_f = jnp.float32(radius)
    inv_h2_f = jnp.float32(inv_h2)

    def body(_, carry):
        pm, tc, acc = carry                                   # each (TM, 1) f32
        eq_cnt = jnp.sum(jnp.where(sqd == pm, 1.0, 0.0), axis=-1, keepdims=True)
        more_ties = eq_cnt > tc                               # unconsumed copies of pm?
        m_gt = jnp.min(jnp.where(sqd > pm, sqd, inf), axis=-1, keepdims=True)
        m = jnp.where(more_ties, pm, m_gt)                    # next smallest sqdist
        d = jnp.sqrt(m)
        w = jnp.exp(-m * inv_h2_f)                            # == exp(-d^2 / h^2)
        acc = acc + (radius_f - d) * w
        tc = jnp.where(more_ties, tc + 1.0, 1.0)
        return m, tc, acc

    pm0 = jnp.zeros((tm, 1), jnp.float32)     # self distance (exactly 0)
    tc0 = jnp.ones((tm, 1), jnp.float32)      # self already consumed (analytic term)
    acc0 = jnp.zeros((tm, 1), jnp.float32)

    if unroll:                                # small slab: static unroll (LLO visibility)
        carry = (pm0, tc0, acc0)
        for _ in range(knn - 1):
            carry = body(0, carry)
        _, _, acc = carry
    else:                                     # large slab: bound live copies
        _, _, acc = lax.fori_loop(0, knn - 1, body, (pm0, tc0, acc0))

    # Mask padded query rows, one cross-sublane reduce, one lane-dense vreg store.
    row_ids = jax.lax.broadcasted_iota(jnp.int32, (tm, 1), 0) + t * tm
    total = jnp.sum(jnp.where(row_ids < n_real, acc, 0.0))
    out_ref[0, 0] = jnp.broadcast_to(total, (8, 128))


def _pick_tm(n_pad):
    """Largest power-of-two row tile (<=128) keeping ~4 live f32 slabs under ~8 MiB.

    8 MiB of live slab data fits the v5e 16 MiB scoped-VMEM default and leaves
    plenty of headroom on v6e/v7x (32 MiB default), including the tiny
    double-buffered (3, N_pad) input tiles.
    """
    budget = 8 * 1024 * 1024
    tm = 128
    while tm > 8 and 4 * tm * n_pad * 4 > budget:
        tm //= 2
    return tm


def repulsion_loss(points, knn=8, radius=0.07, h=0.03, alpha=0.1):
    """points: (B, N, 3) float array. Returns scalar float32 loss."""
    points = points.astype(jnp.float32)
    B, N, C = points.shape
    assert C == 3 and 1 <= knn <= N

    N_pad = ((N + 127) // 128) * 128          # lane-aligned point count
    TM = _pick_tm(N_pad)                      # power of two <= 128 -> divides N_pad
    T = N_pad // TM

    pts = points
    if N_pad != N:
        # Far-away sentinels: never selected as neighbours of real points;
        # padded query rows are additionally masked inside the kernel.
        pts = jnp.pad(points, ((0, 0), (0, N_pad - N), (0, 0)),
                      constant_values=_SENTINEL)
    pts_t = jnp.transpose(pts, (0, 2, 1))     # (B, 3, N_pad): lane-dense columns

    unroll = (knn - 1) <= 8 and TM * N_pad * 4 <= (1 << 20)

    kernel = partial(_repulsion_kernel, knn=int(knn), radius=float(radius),
                     inv_h2=1.0 / (float(h) ** 2), tm=TM, n_pad=N_pad,
                     n_real=N, unroll=unroll)

    partial_sums = pl.pallas_call(
        kernel,
        out_shape=jax.ShapeDtypeStruct((B, T, 8, 128), jnp.float32),
        grid=(B, T),
        in_specs=[
            pl.BlockSpec((1, TM, 3), lambda b, t: (b, t, 0)),       # query row tile
            pl.BlockSpec((1, 3, N_pad), lambda b, t: (b, 0, 0)),    # all points (per batch)
        ],
        out_specs=pl.BlockSpec((1, 1, 8, 128), lambda b, t: (b, t, 0, 0)),
        compiler_params=pltpu.CompilerParams(
            dimension_semantics=("parallel", "parallel"),
            vmem_limit_bytes=32 * 1024 * 1024),
    )(pts, pts_t)

    # Rank-0 (self) neighbour contributes exactly `radius` per real point.
    neighbor_sum = jnp.sum(partial_sums[..., 0, 0])
    self_sum = jnp.float32(B * N) * jnp.float32(radius)
    return (alpha * (neighbor_sum + self_sum) / (B * N * knn)).astype(jnp.float32)


def _reference_loss(points, knn=8, radius=0.07, h=0.03, alpha=0.1):
    """Pure-JAX reference mirroring the PyTorch forward."""
    points = points.astype(jnp.float32)
    diff = points[:, :, None, :] - points[:, None, :, :]        # (B, N, N, 3)
    sqdist = jnp.sum(diff * diff, axis=-1)                      # (B, N, N)
    knn_sq = jnp.sort(sqdist, axis=-1)[..., :knn]               # k smallest (self incl.)
    d = jnp.sqrt(knn_sq)
    w = jnp.exp(-(d ** 2) / (h ** 2))
    return alpha * jnp.mean((radius - d) * w)


if __name__ == "__main__":
    key = jax.random.PRNGKey(0)
    # (2, 192): multi-tile grid + N-padding path; (2, 256): aligned path.
    for (B, N) in ((2, 192), (2, 256)):
        key, sub = jax.random.split(key)
        pts = jax.random.uniform(sub, (B, N, 3), dtype=jnp.float32) * 0.25
        # Duplicate one point to exercise exact-tie (d == 0) multiplicity handling.
        pts = pts.at[:, 1, :].set(pts[:, 0, :])

        loss = jax.block_until_ready(repulsion_loss(pts, knn=8, radius=0.07,
                                                    h=0.03, alpha=0.1))
        ref = jax.block_until_ready(_reference_loss(pts))
        assert jnp.allclose(loss, ref, rtol=1e-5, atol=1e-6), (B, N, float(loss), float(ref))

    print("KERNEL_OK")
</pallas_src>

<mosaic_0001>
module attributes {stable_mosaic.version = 11 : i64} {
  func.func @_repulsion_kernel(%arg0: i32, %arg1: i32, %arg2: memref<1x128x3xf32, #tpu.memory_space<vmem>>, %arg3: memref<1x3x256xf32, #tpu.memory_space<vmem>>, %arg4: memref<1x1x8x128xf32, #tpu.memory_space<vmem>>) attributes {dimension_semantics = [#tpu.dimension_semantics<parallel>, #tpu.dimension_semantics<parallel>], iteration_bounds = array<i64: 2, 2>, scalar_prefetch = 0 : i64, scratch_operands = 0 : i64, tpu.core_type = #tpu.core_type<tc>, window_params = [{transform_indices = @transform_0, window_bounds = array<i64: 1, 128, 3>}, {transform_indices = @transform_1, window_bounds = array<i64: 1, 3, 256>}, {transform_indices = @transform_2, window_bounds = array<i64: 1, 1, 8, 128>}]} {
    %c0 = arith.constant 0 : index
    %c0_0 = arith.constant 0 : index
    %c0_1 = arith.constant 0 : index
    %0 = vector.load %arg2[%c0, %c0_0, %c0_1] : memref<1x128x3xf32, #tpu.memory_space<vmem>>, vector<1x128x3xf32>
    %1 = vector.shape_cast %0 : vector<1x128x3xf32> to vector<128x3xf32>
    %c0_2 = arith.constant 0 : index
    %c0_3 = arith.constant 0 : index
    %c0_4 = arith.constant 0 : index
    %2 = vector.load %arg3[%c0_2, %c0_3, %c0_4] : memref<1x3x256xf32, #tpu.memory_space<vmem>>, vector<1x3x256xf32>
    %3 = vector.shape_cast %2 : vector<1x3x256xf32> to vector<3x256xf32>
    %cst = arith.constant 0.000000e+00 : f32
    %4 = vector.broadcast %cst : f32 to vector<128x256xf32>
    %5 = vector.extract_strided_slice %1 {offsets = [0, 0], sizes = [128, 1], strides = [1, 1]} : vector<128x3xf32> to vector<128x1xf32>
    %6 = vector.extract_strided_slice %3 {offsets = [0, 0], sizes = [1, 256], strides = [1, 1]} : vector<3x256xf32> to vector<1x256xf32>
    %7 = vector.broadcast %5 : vector<128x1xf32> to vector<128x256xf32>
    %8 = vector.broadcast %6 : vector<1x256xf32> to vector<128x256xf32>
    %9 = arith.subf %7, %8 : vector<128x256xf32>
    %10 = arith.mulf %9, %9 : vector<128x256xf32>
    %11 = arith.addf %4, %10 : vector<128x256xf32>
    %12 = vector.extract_strided_slice %1 {offsets = [0, 1], sizes = [128, 1], strides = [1, 1]} : vector<128x3xf32> to vector<128x1xf32>
    %13 = vector.extract_strided_slice %3 {offsets = [1, 0], sizes = [1, 256], strides = [1, 1]} : vector<3x256xf32> to vector<1x256xf32>
    %14 = vector.broadcast %12 : vector<128x1xf32> to vector<128x256xf32>
    %15 = vector.broadcast %13 : vector<1x256xf32> to vector<128x256xf32>
    %16 = arith.subf %14, %15 : vector<128x256xf32>
    %17 = arith.mulf %16, %16 : vector<128x256xf32>
    %18 = arith.addf %11, %17 : vector<128x256xf32>
    %19 = vector.extract_strided_slice %1 {offsets = [0, 2], sizes = [128, 1], strides = [1, 1]} : vector<128x3xf32> to vector<128x1xf32>
    %20 = vector.extract_strided_slice %3 {offsets = [2, 0], sizes = [1, 256], strides = [1, 1]} : vector<3x256xf32> to vector<1x256xf32>
    %21 = vector.broadcast %19 : vector<128x1xf32> to vector<128x256xf32>
    %22 = vector.broadcast %20 : vector<1x256xf32> to vector<128x256xf32>
    %23 = arith.subf %21, %22 : vector<128x256xf32>
    %24 = arith.mulf %23, %23 : vector<128x256xf32>
    %25 = arith.addf %18, %24 : vector<128x256xf32>
    %cst_5 = arith.constant 0.000000e+00 : f32
    %26 = vector.broadcast %cst_5 : f32 to vector<128x1xf32>
    %cst_6 = arith.constant 1.000000e+00 : f32
    %27 = vector.broadcast %cst_6 : f32 to vector<128x1xf32>
    %cst_7 = arith.constant 0.000000e+00 : f32
    %28 = vector.broadcast %cst_7 : f32 to vector<128x1xf32>
    %29 = vector.broadcast %26 : vector<128x1xf32> to vector<128x256xf32>
    %30 = arith.cmpf oeq, %25, %29 : vector<128x256xf32>
    %cst_8 = arith.constant 1.000000e+00 : f32
    %cst_9 = arith.constant 0.000000e+00 : f32
    %31 = vector.broadcast %cst_8 : f32 to vector<128x256xf32>
    %32 = vector.broadcast %cst_9 : f32 to vector<128x256xf32>
    %33 = arith.select %30, %31, %32 : vector<128x256xi1>, vector<128x256xf32>
    %cst_10 = arith.constant dense<0.000000e+00> : vector<128xf32>
    %34 = vector.multi_reduction <add>, %33, %cst_10 [1] : vector<128x256xf32> to vector<128xf32>
    %35 = vector.shape_cast %34 : vector<128xf32> to vector<128x1xf32>
    %36 = arith.cmpf ogt, %35, %27 : vector<128x1xf32>
    %37 = vector.broadcast %26 : vector<128x1xf32> to vector<128x256xf32>
    %38 = arith.cmpf ogt, %25, %37 : vector<128x256xf32>
    %cst_11 = arith.constant 0x7F800000 : f32
    %39 = vector.broadcast %cst_11 : f32 to vector<128x256xf32>
    %40 = arith.select %38, %25, %39 : vector<128x256xi1>, vector<128x256xf32>
    %cst_12 = arith.constant dense<0x7F800000> : vector<128xf32>
    %41 = vector.multi_reduction <minimumf>, %40, %cst_12 [1] : vector<128x256xf32> to vector<128xf32>
    %42 = vector.shape_cast %41 : vector<128xf32> to vector<128x1xf32>
    %43 = arith.select %36, %26, %42 : vector<128x1xi1>, vector<128x1xf32>
    %44 = math.sqrt %43 : vector<128x1xf32>
    %cst_13 = arith.constant 0.000000e+00 : f32
    %45 = vector.broadcast %cst_13 : f32 to vector<128x1xf32>
    %46 = arith.subf %45, %43 : vector<128x1xf32>
    %cst_14 = arith.constant 1111.11108 : f32
    %47 = vector.broadcast %cst_14 : f32 to vector<128x1xf32>
    %48 = arith.mulf %46, %47 : vector<128x1xf32>
    %49 = math.exp %48 : vector<128x1xf32>
    %cst_15 = arith.constant 7.000000e-02 : f32
    %50 = vector.broadcast %cst_15 : f32 to vector<128x1xf32>
    %51 = arith.subf %50, %44 : vector<128x1xf32>
    %52 = arith.mulf %51, %49 : vector<128x1xf32>
    %53 = arith.addf %28, %52 : vector<128x1xf32>
    %cst_16 = arith.constant 1.000000e+00 : f32
    %54 = vector.broadcast %cst_16 : f32 to vector<128x1xf32>
    %55 = arith.addf %27, %54 : vector<128x1xf32>
    %cst_17 = arith.constant 1.000000e+00 : f32
    %56 = vector.broadcast %cst_17 : f32 to vector<128x1xf32>
    %57 = arith.select %36, %55, %56 : vector<128x1xi1>, vector<128x1xf32>
    %58 = vector.broadcast %43 : vector<128x1xf32> to vector<128x256xf32>
    %59 = arith.cmpf oeq, %25, %58 : vector<128x256xf32>
    %cst_18 = arith.constant 1.000000e+00 : f32
    %cst_19 = arith.constant 0.000000e+00 : f32
    %60 = vector.broadcast %cst_18 : f32 to vector<128x256xf32>
    %61 = vector.broadcast %cst_19 : f32 to vector<128x256xf32>
    %62 = arith.select %59, %60, %61 : vector<128x256xi1>, vector<128x256xf32>
    %cst_20 = arith.constant dense<0.000000e+00> : vector<128xf32>
    %63 = vector.multi_reduction <add>, %62, %cst_20 [1] : vector<128x256xf32> to vector<128xf32>
    %64 = vector.shape_cast %63 : vector<128xf32> to vector<128x1xf32>
    %65 = arith.cmpf ogt, %64, %57 : vector<128x1xf32>
    %66 = vector.broadcast %43 : vector<128x1xf32> to vector<128x256xf32>
    %67 = arith.cmpf ogt, %25, %66 : vector<128x256xf32>
    %cst_21 = arith.constant 0x7F800000 : f32
    %68 = vector.broadcast %cst_21 : f32 to vector<128x256xf32>
    %69 = arith.select %67, %25, %68 : vector<128x256xi1>, vector<128x256xf32>
    %cst_22 = arith.constant dense<0x7F800000> : vector<128xf32>
    %70 = vector.multi_reduction <minimumf>, %69, %cst_22 [1] : vector<128x256xf32> to vector<128xf32>
    %71 = vector.shape_cast %70 : vector<128xf32> to vector<128x1xf32>
    %72 = arith.select %65, %43, %71 : vector<128x1xi1>, vector<128x1xf32>
    %73 = math.sqrt %72 : vector<128x1xf32>
    %cst_23 = arith.constant 0.000000e+00 : f32
    %74 = vector.broadcast %cst_23 : f32 to vector<128x1xf32>
    %75 = arith.subf %74, %72 : vector<128x1xf32>
    %cst_24 = arith.constant 1111.11108 : f32
    %76 = vector.broadcast %cst_24 : f32 to vector<128x1xf32>
    %77 = arith.mulf %75, %76 : vector<128x1xf32>
    %78 = math.exp %77 : vector<128x1xf32>
    %cst_25 = arith.constant 7.000000e-02 : f32
    %79 = vector.broadcast %cst_25 : f32 to vector<128x1xf32>
    %80 = arith.subf %79, %73 : vector<128x1xf32>
    %81 = arith.mulf %80, %78 : vector<128x1xf32>
    %82 = arith.addf %53, %81 : vector<128x1xf32>
    %cst_26 = arith.constant 1.000000e+00 : f32
    %83 = vector.broadcast %cst_26 : f32 to vector<128x1xf32>
    %84 = arith.addf %57, %83 : vector<128x1xf32>
    %cst_27 = arith.constant 1.000000e+00 : f32
    %85 = vector.broadcast %cst_27 : f32 to vector<128x1xf32>
    %86 = arith.select %65, %84, %85 : vector<128x1xi1>, vector<128x1xf32>
    %87 = vector.broadcast %72 : vector<128x1xf32> to vector<128x256xf32>
    %88 = arith.cmpf oeq, %25, %87 : vector<128x256xf32>
    %cst_28 = arith.constant 1.000000e+00 : f32
    %cst_29 = arith.constant 0.000000e+00 : f32
    %89 = vector.broadcast %cst_28 : f32 to vector<128x256xf32>
    %90 = vector.broadcast %cst_29 : f32 to vector<128x256xf32>
    %91 = arith.select %88, %89, %90 : vector<128x256xi1>, vector<128x256xf32>
    %cst_30 = arith.constant dense<0.000000e+00> : vector<128xf32>
    %92 = vector.multi_reduction <add>, %91, %cst_30 [1] : vector<128x256xf32> to vector<128xf32>
    %93 = vector.shape_cast %92 : vector<128xf32> to vector<128x1xf32>
    %94 = arith.cmpf ogt, %93, %86 : vector<128x1xf32>
    %95 = vector.broadcast %72 : vector<128x1xf32> to vector<128x256xf32>
    %96 = arith.cmpf ogt, %25, %95 : vector<128x256xf32>
    %cst_31 = arith.constant 0x7F800000 : f32
    %97 = vector.broadcast %cst_31 : f32 to vector<128x256xf32>
    %98 = arith.select %96, %25, %97 : vector<128x256xi1>, vector<128x256xf32>
    %cst_32 = arith.constant dense<0x7F800000> : vector<128xf32>
    %99 = vector.multi_reduction <minimumf>, %98, %cst_32 [1] : vector<128x256xf32> to vector<128xf32>
    %100 = vector.shape_cast %99 : vector<128xf32> to vector<128x1xf32>
    %101 = arith.select %94, %72, %100 : vector<128x1xi1>, vector<128x1xf32>
    %102 = math.sqrt %101 : vector<128x1xf32>
    %cst_33 = arith.constant 0.000000e+00 : f32
    %103 = vector.broadcast %cst_33 : f32 to vector<128x1xf32>
    %104 = arith.subf %103, %101 : vector<128x1xf32>
    %cst_34 = arith.constant 1111.11108 : f32
    %105 = vector.broadcast %cst_34 : f32 to vector<128x1xf32>
    %106 = arith.mulf %104, %105 : vector<128x1xf32>
    %107 = math.exp %106 : vector<128x1xf32>
    %cst_35 = arith.constant 7.000000e-02 : f32
    %108 = vector.broadcast %cst_35 : f32 to vector<128x1xf32>
    %109 = arith.subf %108, %102 : vector<128x1xf32>
    %110 = arith.mulf %109, %107 : vector<128x1xf32>
    %111 = arith.addf %82, %110 : vector<128x1xf32>
    %cst_36 = arith.constant 1.000000e+00 : f32
    %112 = vector.broadcast %cst_36 : f32 to vector<128x1xf32>
    %113 = arith.addf %86, %112 : vector<128x1xf32>
    %cst_37 = arith.constant 1.000000e+00 : f32
    %114 = vector.broadcast %cst_37 : f32 to vector<128x1xf32>
    %115 = arith.select %94, %113, %114 : vector<128x1xi1>, vector<128x1xf32>
    %116 = vector.broadcast %101 : vector<128x1xf32> to vector<128x256xf32>
    %117 = arith.cmpf oeq, %25, %116 : vector<128x256xf32>
    %cst_38 = arith.constant 1.000000e+00 : f32
    %cst_39 = arith.constant 0.000000e+00 : f32
    %118 = vector.broadcast %cst_38 : f32 to vector<128x256xf32>
    %119 = vector.broadcast %cst_39 : f32 to vector<128x256xf32>
    %120 = arith.select %117, %118, %119 : vector<128x256xi1>, vector<128x256xf32>
    %cst_40 = arith.constant dense<0.000000e+00> : vector<128xf32>
    %121 = vector.multi_reduction <add>, %120, %cst_40 [1] : vector<128x256xf32> to vector<128xf32>
    %122 = vector.shape_cast %121 : vector<128xf32> to vector<128x1xf32>
    %123 = arith.cmpf ogt, %122, %115 : vector<128x1xf32>
    %124 = vector.broadcast %101 : vector<128x1xf32> to vector<128x256xf32>
    %125 = arith.cmpf ogt, %25, %124 : vector<128x256xf32>
    %cst_41 = arith.constant 0x7F800000 : f32
    %126 = vector.broadcast %cst_41 : f32 to vector<128x256xf32>
    %127 = arith.select %125, %25, %126 : vector<128x256xi1>, vector<128x256xf32>
    %cst_42 = arith.constant dense<0x7F800000> : vector<128xf32>
    %128 = vector.multi_reduction <minimumf>, %127, %cst_42 [1] : vector<128x256xf32> to vector<128xf32>
    %129 = vector.shape_cast %128 : vector<128xf32> to vector<128x1xf32>
    %130 = arith.select %123, %101, %129 : vector<128x1xi1>, vector<128x1xf32>
    %131 = math.sqrt %130 : vector<128x1xf32>
    %cst_43 = arith.constant 0.000000e+00 : f32
    %132 = vector.broadcast %cst_43 : f32 to vector<128x1xf32>
    %133 = arith.subf %132, %130 : vector<128x1xf32>
    %cst_44 = arith.constant 1111.11108 : f32
    %134 = vector.broadcast %cst_44 : f32 to vector<128x1xf32>
    %135 = arith.mulf %133, %134 : vector<128x1xf32>
    %136 = math.exp %135 : vector<128x1xf32>
    %cst_45 = arith.constant 7.000000e-02 : f32
    %137 = vector.broadcast %cst_45 : f32 to vector<128x1xf32>
    %138 = arith.subf %137, %131 : vector<128x1xf32>
    %139 = arith.mulf %138, %136 : vector<128x1xf32>
    %140 = arith.addf %111, %139 : vector<128x1xf32>
    %cst_46 = arith.constant 1.000000e+00 : f32
    %141 = vector.broadcast %cst_46 : f32 to vector<128x1xf32>
    %142 = arith.addf %115, %141 : vector<128x1xf32>
    %cst_47 = arith.constant 1.000000e+00 : f32
    %143 = vector.broadcast %cst_47 : f32 to vector<128x1xf32>
    %144 = arith.select %123, %142, %143 : vector<128x1xi1>, vector<128x1xf32>
    %145 = vector.broadcast %130 : vector<128x1xf32> to vector<128x256xf32>
    %146 = arith.cmpf oeq, %25, %145 : vector<128x256xf32>
    %cst_48 = arith.constant 1.000000e+00 : f32
    %cst_49 = arith.constant 0.000000e+00 : f32
    %147 = vector.broadcast %cst_48 : f32 to vector<128x256xf32>
    %148 = vector.broadcast %cst_49 : f32 to vector<128x256xf32>
    %149 = arith.select %146, %147, %148 : vector<128x256xi1>, vector<128x256xf32>
    %cst_50 = arith.constant dense<0.000000e+00> : vector<128xf32>
    %150 = vector.multi_reduction <add>, %149, %cst_50 [1] : vector<128x256xf32> to vector<128xf32>
    %151 = vector.shape_cast %150 : vector<128xf32> to vector<128x1xf32>
    %152 = arith.cmpf ogt, %151, %144 : vector<128x1xf32>
    %153 = vector.broadcast %130 : vector<128x1xf32> to vector<128x256xf32>
    %154 = arith.cmpf ogt, %25, %153 : vector<128x256xf32>
    %cst_51 = arith.constant 0x7F800000 : f32
    %155 = vector.broadcast %cst_51 : f32 to vector<128x256xf32>
    %156 = arith.select %154, %25, %155 : vector<128x256xi1>, vector<128x256xf32>
    %cst_52 = arith.constant dense<0x7F800000> : vector<128xf32>
    %157 = vector.multi_reduction <minimumf>, %156, %cst_52 [1] : vector<128x256xf32> to vector<128xf32>
    %158 = vector.shape_cast %157 : vector<128xf32> to vector<128x1xf32>
    %159 = arith.select %152, %130, %158 : vector<128x1xi1>, vector<128x1xf32>
    %160 = math.sqrt %159 : vector<128x1xf32>
    %cst_53 = arith.constant 0.000000e+00 : f32
    %161 = vector.broadcast %cst_53 : f32 to vector<128x1xf32>
    %162 = arith.subf %161, %159 : vector<128x1xf32>
    %cst_54 = arith.constant 1111.11108 : f32
    %163 = vector.broadcast %cst_54 : f32 to vector<128x1xf32>
    %164 = arith.mulf %162, %163 : vector<128x1xf32>
    %165 = math.exp %164 : vector<128x1xf32>
    %cst_55 = arith.constant 7.000000e-02 : f32
    %166 = vector.broadcast %cst_55 : f32 to vector<128x1xf32>
    %167 = arith.subf %166, %160 : vector<128x1xf32>
    %168 = arith.mulf %167, %165 : vector<128x1xf32>
    %169 = arith.addf %140, %168 : vector<128x1xf32>
    %cst_56 = arith.constant 1.000000e+00 : f32
    %170 = vector.broadcast %cst_56 : f32 to vector<128x1xf32>
    %171 = arith.addf %144, %170 : vector<128x1xf32>
    %cst_57 = arith.constant 1.000000e+00 : f32
    %172 = vector.broadcast %cst_57 : f32 to vector<128x1xf32>
    %173 = arith.select %152, %171, %172 : vector<128x1xi1>, vector<128x1xf32>
    %174 = vector.broadcast %159 : vector<128x1xf32> to vector<128x256xf32>
    %175 = arith.cmpf oeq, %25, %174 : vector<128x256xf32>
    %cst_58 = arith.constant 1.000000e+00 : f32
    %cst_59 = arith.constant 0.000000e+00 : f32
    %176 = vector.broadcast %cst_58 : f32 to vector<128x256xf32>
    %177 = vector.broadcast %cst_59 : f32 to vector<128x256xf32>
    %178 = arith.select %175, %176, %177 : vector<128x256xi1>, vector<128x256xf32>
    %cst_60 = arith.constant dense<0.000000e+00> : vector<128xf32>
    %179 = vector.multi_reduction <add>, %178, %cst_60 [1] : vector<128x256xf32> to vector<128xf32>
    %180 = vector.shape_cast %179 : vector<128xf32> to vector<128x1xf32>
    %181 = arith.cmpf ogt, %180, %173 : vector<128x1xf32>
    %182 = vector.broadcast %159 : vector<128x1xf32> to vector<128x256xf32>
    %183 = arith.cmpf ogt, %25, %182 : vector<128x256xf32>
    %cst_61 = arith.constant 0x7F800000 : f32
    %184 = vector.broadcast %cst_61 : f32 to vector<128x256xf32>
    %185 = arith.select %183, %25, %184 : vector<128x256xi1>, vector<128x256xf32>
    %cst_62 = arith.constant dense<0x7F800000> : vector<128xf32>
    %186 = vector.multi_reduction <minimumf>, %185, %cst_62 [1] : vector<128x256xf32> to vector<128xf32>
    %187 = vector.shape_cast %186 : vector<128xf32> to vector<128x1xf32>
    %188 = arith.select %181, %159, %187 : vector<128x1xi1>, vector<128x1xf32>
    %189 = math.sqrt %188 : vector<128x1xf32>
    %cst_63 = arith.constant 0.000000e+00 : f32
    %190 = vector.broadcast %cst_63 : f32 to vector<128x1xf32>
    %191 = arith.subf %190, %188 : vector<128x1xf32>
    %cst_64 = arith.constant 1111.11108 : f32
    %192 = vector.broadcast %cst_64 : f32 to vector<128x1xf32>
    %193 = arith.mulf %191, %192 : vector<128x1xf32>
    %194 = math.exp %193 : vector<128x1xf32>
    %cst_65 = arith.constant 7.000000e-02 : f32
    %195 = vector.broadcast %cst_65 : f32 to vector<128x1xf32>
    %196 = arith.subf %195, %189 : vector<128x1xf32>
    %197 = arith.mulf %196, %194 : vector<128x1xf32>
    %198 = arith.addf %169, %197 : vector<128x1xf32>
    %cst_66 = arith.constant 1.000000e+00 : f32
    %199 = vector.broadcast %cst_66 : f32 to vector<128x1xf32>
    %200 = arith.addf %173, %199 : vector<128x1xf32>
    %cst_67 = arith.constant 1.000000e+00 : f32
    %201 = vector.broadcast %cst_67 : f32 to vector<128x1xf32>
    %202 = arith.select %181, %200, %201 : vector<128x1xi1>, vector<128x1xf32>
    %203 = vector.broadcast %188 : vector<128x1xf32> to vector<128x256xf32>
    %204 = arith.cmpf oeq, %25, %203 : vector<128x256xf32>
    %cst_68 = arith.constant 1.000000e+00 : f32
    %cst_69 = arith.constant 0.000000e+00 : f32
    %205 = vector.broadcast %cst_68 : f32 to vector<128x256xf32>
    %206 = vector.broadcast %cst_69 : f32 to vector<128x256xf32>
    %207 = arith.select %204, %205, %206 : vector<128x256xi1>, vector<128x256xf32>
    %cst_70 = arith.constant dense<0.000000e+00> : vector<128xf32>
    %208 = vector.multi_reduction <add>, %207, %cst_70 [1] : vector<128x256xf32> to vector<128xf32>
    %209 = vector.shape_cast %208 : vector<128xf32> to vector<128x1xf32>
    %210 = arith.cmpf ogt, %209, %202 : vector<128x1xf32>
    %211 = vector.broadcast %188 : vector<128x1xf32> to vector<128x256xf32>
    %212 = arith.cmpf ogt, %25, %211 : vector<128x256xf32>
    %cst_71 = arith.constant 0x7F800000 : f32
    %213 = vector.broadcast %cst_71 : f32 to vector<128x256xf32>
    %214 = arith.select %212, %25, %213 : vector<128x256xi1>, vector<128x256xf32>
    %cst_72 = arith.constant dense<0x7F800000> : vector<128xf32>
    %215 = vector.multi_reduction <minimumf>, %214, %cst_72 [1] : vector<128x256xf32> to vector<128xf32>
    %216 = vector.shape_cast %215 : vector<128xf32> to vector<128x1xf32>
    %217 = arith.select %210, %188, %216 : vector<128x1xi1>, vector<128x1xf32>
    %218 = math.sqrt %217 : vector<128x1xf32>
    %cst_73 = arith.constant 0.000000e+00 : f32
    %219 = vector.broadcast %cst_73 : f32 to vector<128x1xf32>
    %220 = arith.subf %219, %217 : vector<128x1xf32>
    %cst_74 = arith.constant 1111.11108 : f32
    %221 = vector.broadcast %cst_74 : f32 to vector<128x1xf32>
    %222 = arith.mulf %220, %221 : vector<128x1xf32>
    %223 = math.exp %222 : vector<128x1xf32>
    %cst_75 = arith.constant 7.000000e-02 : f32
    %224 = vector.broadcast %cst_75 : f32 to vector<128x1xf32>
    %225 = arith.subf %224, %218 : vector<128x1xf32>
    %226 = arith.mulf %225, %223 : vector<128x1xf32>
    %227 = arith.addf %198, %226 : vector<128x1xf32>
    %228 = tpu.iota {dimensions = array<i32: 0>} : vector<128x1xi32>
    %c128_i32 = arith.constant 128 : i32
    %229 = arith.muli %arg1, %c128_i32 : i32
    %230 = vector.broadcast %229 : i32 to vector<128x1xi32>
    %231 = arith.addi %228, %230 : vector<128x1xi32>
    %c192_i32 = arith.constant 192 : i32
    %232 = vector.broadcast %c192_i32 : i32 to vector<128x1xi32>
    %233 = arith.cmpi slt, %231, %232 : vector<128x1xi32>
    %cst_76 = arith.constant 0.000000e+00 : f32
    %234 = vector.broadcast %cst_76 : f32 to vector<128x1xf32>
    %235 = arith.select %233, %227, %234 : vector<128x1xi1>, vector<128x1xf32>
    %236 = vector.shape_cast %235 : vector<128x1xf32> to vector<1x128x1xf32>
    %cst_77 = arith.constant dense<0.000000e+00> : vector<1xf32>
    %237 = vector.multi_reduction <add>, %236, %cst_77 [1, 2] : vector<1x128x1xf32> to vector<1xf32>
    %238 = vector.shape_cast %237 : vector<1xf32> to vector<1x1x1xf32>
    %239 = vector.extract %238[0, 0, 0] : f32 from vector<1x1x1xf32>
    %240 = vector.broadcast %239 : f32 to vector<8x128xf32>
    %c0_78 = arith.constant 0 : index
    %c0_79 = arith.constant 0 : index
    %c0_80 = arith.constant 0 : index
    %c0_81 = arith.constant 0 : index
    %241 = vector.load %arg4[%c0_78, %c0_79, %c0_80, %c0_81] : memref<1x1x8x128xf32, #tpu.memory_space<vmem>>, vector<1x1x8x128xf32>
    %242 = vector.shape_cast %241 : vector<1x1x8x128xf32> to vector<8x128xf32>
    %243 = vector.shape_cast %240 : vector<8x128xf32> to vector<1x1x8x128xf32>
    tpu.vector_store %arg4[%c0_78, %c0_79, %c0_80, %c0_81], %243 {strides = array<i32>} : memref<1x1x8x128xf32, #tpu.memory_space<vmem>>, vector<1x1x8x128xf32>,
    return
  }
  func.func @transform_0(%arg0: i32, %arg1: i32) -> (i32, i32, i32) {
    %c0_i32 = arith.constant 0 : i32
    %c0_i32_0 = arith.constant 0 : i32
    return %arg0, %arg1, %c0_i32 : i32, i32, i32
  }
  func.func @transform_1(%arg0: i32, %arg1: i32) -> (i32, i32, i32) {
    %c0_i32 = arith.constant 0 : i32
    %c0_i32_0 = arith.constant 0 : i32
    %c0_i32_1 = arith.constant 0 : i32
    return %arg0, %c0_i32, %c0_i32_0 : i32, i32, i32
  }
  func.func @transform_2(%arg0: i32, %arg1: i32) -> (i32, i32, i32, i32) {
    %c0_i32 = arith.constant 0 : i32
    %c0_i32_0 = arith.constant 0 : i32
    %c0_i32_1 = arith.constant 0 : i32
    return %arg0, %arg1, %c0_i32, %c0_i32_0 : i32, i32, i32, i32
  }
}

</mosaic_0001>

<llo_original>
// kernel: tpu_custom_call.1
$region0: #{tpu_custom_call.1}
  #allocation0 [shape = 'u32[]', space=smem, size = 0x4, offset = 0x4, fixed_abs, tag = 'smem constant byte address 0x4 - core index']
  #allocation1 [shape = 'u32[72,128]{1,0:T(1,128)}', space=vmem, size = 0x9000, scoped, tag = 'internal scratch']
  %s0 = inlined_call_operand.vmem [shape: f32[2,256,3], index: 0, kind: input, shape index: {}]
  %s1 = inlined_call_operand.vmem [shape: f32[2,3,256], index: 1, kind: input, shape index: {}]
  %s2 = inlined_call_operand.hbm [shape: f32[2,2,8,128], index: 2, kind: output, shape index: {}]
  %s3 = sld [smem:[#allocation0]]
  $region41: #{tpu_custom_call.1} parent=0
    _
  %s5 = ssub.s32 1, %s3
  %s6 = scalar_select 0, %s5, %s3
  $region1: #{tpu_custom_call.1} parent=0
    #allocation2 [shape = 'u8[8192]{0}', space=vmem, size = 0x2000, scoped, tag = 'output window, operand 0']
    #allocation3 [shape = 's32[2]{0}', space=sflag, size = 0x8, scoped, tag = 'scoped memory for tpu_custom_call.1']
    %7 = vsyncpa [#allocation3], 0
    %s8 = scalar_lea.sflag [#allocation3], 1
    %9 = vsyncpa %s8, 0
    loop: start=0, step=1, limit=6
    $region2: #{tpu_custom_call.1} parent=1 // loop_pre_header
      _
    $region3: #{tpu_custom_call.1} parent=1 // loop_header
      %s11 = sphi 0, %s15
      %p12 = scmp.ge.s32.totalorder %s11, 6
      %s18 = sphi 0, %s30
      %s19 = sphi 0, %s26
      %s20 = sphi 0, %s18
      %s21 = sphi 0, %s19
      %s22 = sphi 0, %s20
      %s23 = sphi 0, %s21
      %s35 = sphi 0, %s37
      %s38 = sphi 0, %s35
      %s39 = sphi 0, %s38
      %s55 = sphi 0, %s39
      %s61 = sphi 0, %s63
      %s64 = sphi 0, %s61
      %s65 = sphi 0, %s64
      %s81 = sphi 0, %s65
      %s89 = sphi 0, %s91
      %s92 = sphi 0, %s89
      %s93 = sphi 0, %s92
      %s109 = sphi 0, %s93
    $region4: #{tpu_custom_call.1} parent=1 // loop_header_branch
      %14 = sbr.rel (%p12) target = $region8
    $region5: #{tpu_custom_call.1} parent=1 // loop_body
      %s16 = ssub.s32 %s11, 1
      %s17 = ssub.s32 %s11, 2
      %s24 = sadd.s32 1, %s19
      %p25 = scmp.ge.s32.totalorder %s24, 2
      %s26 = scalar_select %p25, 0, %s24
      %s27 = sadd.s32 1, %s18
      %s28 = scalar_select %p25, %s27, %s18
      %p29 = scmp.ge.s32.totalorder %s28, 2
      %s30 = scalar_select %p29, 0, %s28
      %s31 = ssub.s32 %s18, %s30
      %s32 = ssub.s32 %s19, %s26
      %s33 = sor.u32 %s31, %s32
      %p34 = scmp.eq.s32.totalorder %s33, 0
      %s36 = sadd.s32 %s35, 1
      %s37 = scalar_select %p34, %s35, %s36
      %p40 = pneg %p34
      %p41 = scmp.eq.s32.totalorder %s11, 3
      %p42 = por %p40, %p41
      %p43 = scmp.ne.s32.totalorder %s35, %s38
      %p44 = scmp.eq.s32.totalorder %s11, 0
      %p45 = por %p43, %p44
      %p46 = scmp.ne.s32.totalorder %s35, %s38
      %p47 = scmp.eq.s32.totalorder %s16, 3
      %p48 = por %p46, %p47
      %p49 = scmp.ne.s32.totalorder %s38, %s39
      %p50 = scmp.eq.s32.totalorder %s16, 0
      %p51 = por %p49, %p50
      %p52 = scmp.ne.s32.totalorder %s38, %s39
      %p53 = scmp.eq.s32.totalorder %s17, 3
      %p54 = por %p52, %p53
      %p56 = scmp.ne.s32.totalorder %s39, %s55
      %p57 = scmp.eq.s32.totalorder %s17, 0
      %p58 = por %p56, %p57
      %s59 = ssub.s32 %s18, %s30
      %p60 = scmp.eq.s32.totalorder %s59, 0
      %s62 = sadd.s32 %s61, 1
      %s63 = scalar_select %p60, %s61, %s62
      %p66 = pneg %p60
      %p67 = scmp.eq.s32.totalorder %s11, 3
      %p68 = por %p66, %p67
      %p69 = scmp.ne.s32.totalorder %s61, %s64
      %p70 = scmp.eq.s32.totalorder %s11, 0
      %p71 = por %p69, %p70
      %p72 = scmp.ne.s32.totalorder %s61, %s64
      %p73 = scmp.eq.s32.totalorder %s16, 3
      %p74 = por %p72, %p73
      %p75 = scmp.ne.s32.totalorder %s64, %s65
      %p76 = scmp.eq.s32.totalorder %s16, 0
      %p77 = por %p75, %p76
      %p78 = scmp.ne.s32.totalorder %s64, %s65
      %p79 = scmp.eq.s32.totalorder %s17, 3
      %p80 = por %p78, %p79
      %p82 = scmp.ne.s32.totalorder %s65, %s81
      %p83 = scmp.eq.s32.totalorder %s17, 0
      %p84 = por %p82, %p83
      %s85 = ssub.s32 %s18, %s30
      %s86 = ssub.s32 %s19, %s26
      %s87 = sor.u32 %s85, %s86
      %p88 = scmp.eq.s32.totalorder %s87, 0
      %s90 = sadd.s32 %s89, 1
      %s91 = scalar_select %p88, %s89, %s90
      %p94 = pneg %p88
      %p95 = scmp.eq.s32.totalorder %s11, 3
      %p96 = por %p94, %p95
      %p97 = scmp.ne.s32.totalorder %s89, %s92
      %p98 = scmp.eq.s32.totalorder %s11, 0
      %p99 = por %p97, %p98
      %p100 = scmp.ne.s32.totalorder %s89, %s92
      %p101 = scmp.eq.s32.totalorder %s16, 3
      %p102 = por %p100, %p101
      %p103 = scmp.ne.s32.totalorder %s92, %s93
      %p104 = scmp.eq.s32.totalorder %s16, 0
      %p105 = por %p103, %p104
      %p106 = scmp.ne.s32.totalorder %s92, %s93
      %p107 = scmp.eq.s32.totalorder %s17, 3
      %p108 = por %p106, %p107
      %p110 = scmp.ne.s32.totalorder %s93, %s109
      %p111 = scmp.eq.s32.totalorder %s17, 0
      %p112 = por %p110, %p111
      %p113 = scmp.le.s32.totalorder 1, %s11
      %p114 = scmp.lt.s32.totalorder %s11, 5
      %p115 = pnand %p113, %p114
      %p116 = pneg %p115
      // Predicated region
      $region9: #{tpu_custom_call.1} parent=5 // pred_check
        _
      $region10: #{tpu_custom_call.1} parent=5 // pred_check_branch
        %118 = sbr.rel (%p115) target = $region12
      $region11: #{tpu_custom_call.1} parent=5 // pred_region
        %s119 = ssub.s32 %s11, 1
      $region12: #{tpu_custom_call.1} parent=5 // pred_fallthru
        _
      %p120 = scmp.lt.s32.totalorder %s11, 4
      // Predicated region
      $region13: #{tpu_custom_call.1} parent=5 // pred_check
        %p121 = pneg %p120
      $region14: #{tpu_custom_call.1} parent=5 // pred_check_branch
        %123 = sbr.rel (%p121) target = $region16
      $region15: #{tpu_custom_call.1} parent=5 // pred_region
        // Predicated region
        $region17: #{tpu_custom_call.1} parent=15 // pred_check
          %p124 = pneg %p45
        $region18: #{tpu_custom_call.1} parent=15 // pred_check_branch
          %126 = sbr.rel (%p124) target = $region20
        $region19: #{tpu_custom_call.1} parent=15 // pred_region
          %s127 = smul.u32 16, %s19
          %p128 = scmp.lt.s32.totalorder %s18, 1
          %s129 = scalar_select %p128, %s18, 1
          %p130 = scmp.lt.s32.totalorder %s127, 31
          %s131 = scalar_select %p130, %s127, 31
          %s132 = smul.addr %s129, 32
          %s133 = sadd.s32 %s131, %s132
          %s134 = smul.addr %s133, 8
          %s135 = scalar_lea.vmem %s0, %s134
          %s136 = smul.u32 16, %s19
        $region20: #{tpu_custom_call.1} parent=15 // pred_fallthru
          _
        // Predicated region
        $region21: #{tpu_custom_call.1} parent=15 // pred_check
          %p137 = pneg %p71
        $region22: #{tpu_custom_call.1} parent=15 // pred_check_branch
          %139 = sbr.rel (%p137) target = $region24
        $region23: #{tpu_custom_call.1} parent=15 // pred_region
          %p140 = scmp.lt.s32.totalorder %s18, 1
          %s141 = scalar_select %p140, %s18, 1
          %s142 = smul.addr %s141, 2
          %s143 = smul.addr %s142, 4
          %s144 = scalar_lea.vmem %s1, %s143
        $region24: #{tpu_custom_call.1} parent=15 // pred_fallthru
          _
      $region16: #{tpu_custom_call.1} parent=5 // pred_fallthru
        _
      %p145 = scmp.le.s32.totalorder 1, %s11
      %p146 = scmp.lt.s32.totalorder %s11, 5
      %p147 = pnand %p145, %p146
      %p148 = pneg %p147
      // Predicated region
      $region25: #{tpu_custom_call.1} parent=5 // pred_check
        _
      $region26: #{tpu_custom_call.1} parent=5 // pred_check_branch
        %150 = sbr.rel (%p147) target = $region28
      $region27: #{tpu_custom_call.1} parent=5 // pred_region
        %s151 = ssub.s32 %s11, 1
        %s152 = smul.u32 16, %s21
        %p153 = scmp.lt.s32.totalorder %s20, 1
        %s154 = scalar_select %p153, %s20, 1
        %p155 = scmp.lt.s32.totalorder %s152, 31
        %s156 = scalar_select %p155, %s152, 31
        %s157 = smul.addr %s154, 32
        %s158 = sadd.s32 %s156, %s157
        %s159 = smul.addr %s158, 8
        %s160 = scalar_lea.vmem %s0, %s159
        %p161 = pneg %p51
        %p162 = pneg %p48
        %p163 = scmp.lt.s32.totalorder %s20, 1
        %s164 = scalar_select %p163, %s20, 1
        %s165 = smul.addr %s164, 2
        %s166 = smul.addr %s165, 4
        %s167 = scalar_lea.vmem %s1, %s166
        %p168 = pneg %p77
        %p169 = pneg %p74
        %p170 = pneg %p105
        %p171 = pneg %p102
        %s172 = sand.u32 %s92, 1
        %s173 = scalar_lea.sflag [#allocation3], %s172
        %s174 = sand.u32 %s92, 1
        %s175 = smul.addr %s174, 8
        %s176 = scalar_lea.vmem [#allocation2], %s175
        %s177 = smul.u32 16, %s21
        %p178 = scmp.lt.s32.totalorder %s20, 1
        %s179 = scalar_select %p178, %s20, 1
        %p180 = scmp.lt.s32.totalorder %s177, 31
        %s181 = scalar_select %p180, %s177, 31
        %s182 = smul.addr %s179, 32
        %s183 = sadd.s32 %s181, %s182
        %s184 = smul.addr %s183, 8
        %s185 = scalar_lea.vmem %s0, %s184
        %s186 = smul.u32 16, %s21
        %p187 = scmp.lt.s32.totalorder %s20, 1
        %s188 = scalar_select %p187, %s20, 1
        %s189 = smul.addr %s188, 2
        %s190 = smul.addr %s189, 4
        %s191 = scalar_lea.vmem %s1, %s190
        %v192 = vld [vmem:[%s185] sm:$0xff]
        %v193 = vld [vmem:[%s185 + $0x8] sm:$0xff]
        %v194 = vld [vmem:[%s185 + $0x10] sm:$0xff]
        %v195 = vld [vmem:[%s185 + $0x18] sm:$0xff]
        %v196 = vld [vmem:[%s185 + $0x20] sm:$0xff]
        %v197 = vld [vmem:[%s185 + $0x28] sm:$0xff]
        %v198 = vld [vmem:[%s185 + $0x30] sm:$0xff]
        %v199 = vld [vmem:[%s185 + $0x38] sm:$0xff]
        %v200 = vld [vmem:[%s185 + $0x40] sm:$0xff]
        %v201 = vld [vmem:[%s185 + $0x48] sm:$0xff]
        %v202 = vld [vmem:[%s185 + $0x50] sm:$0xff]
        %v203 = vld [vmem:[%s185 + $0x58] sm:$0xff]
        %v204 = vld [vmem:[%s185 + $0x60] sm:$0xff]
        %v205 = vld [vmem:[%s185 + $0x68] sm:$0xff]
        %v206 = vld [vmem:[%s185 + $0x70] sm:$0xff]
        %v207 = vld [vmem:[%s185 + $0x78] sm:$0xff]
        %v208 = vld [vmem:[%s191] sm:$0x77]
        %210 = vset.pattern.permute.xlu0 0
        %211 = vperm.xlu0 %210, %v192
        %v212 = vpop.permute.xlu0 %211
        %215 = vset.pattern.permute.xlu0 0
        %216 = vperm.xlu0 %215, %v193
        %v217 = vpop.permute.xlu0 %216
        %220 = vset.pattern.permute.xlu0 0
        %221 = vperm.xlu0 %220, %v194
        %v222 = vpop.permute.xlu0 %221
        %225 = vset.pattern.permute.xlu0 0
        %226 = vperm.xlu0 %225, %v195
        %v227 = vpop.permute.xlu0 %226
        %230 = vset.pattern.permute.xlu0 0
        %231 = vperm.xlu0 %230, %v196
        %v232 = vpop.permute.xlu0 %231
        %235 = vset.pattern.permute.xlu0 0
        %236 = vperm.xlu0 %235, %v197
        %v237 = vpop.permute.xlu0 %236
        %240 = vset.pattern.permute.xlu0 0
        %241 = vperm.xlu0 %240, %v198
        %v242 = vpop.permute.xlu0 %241
        %245 = vset.pattern.permute.xlu0 0
        %246 = vperm.xlu0 %245, %v199
        %v247 = vpop.permute.xlu0 %246
        %250 = vset.pattern.permute.xlu0 0
        %251 = vperm.xlu0 %250, %v200
        %v252 = vpop.permute.xlu0 %251
        %255 = vset.pattern.permute.xlu0 0
        %256 = vperm.xlu0 %255, %v201
        %v257 = vpop.permute.xlu0 %256
        %260 = vset.pattern.permute.xlu0 0
        %261 = vperm.xlu0 %260, %v202
        %v262 = vpop.permute.xlu0 %261
        %265 = vset.pattern.permute.xlu0 0
        %266 = vperm.xlu0 %265, %v203
        %v267 = vpop.permute.xlu0 %266
        %270 = vset.pattern.permute.xlu0 0
        %271 = vperm.xlu0 %270, %v204
        %v272 = vpop.permute.xlu0 %271
        %275 = vset.pattern.permute.xlu0 0
        %276 = vperm.xlu0 %275, %v205
        %v277 = vpop.permute.xlu0 %276
        %280 = vset.pattern.permute.xlu0 0
        %281 = vperm.xlu0 %280, %v206
        %v282 = vpop.permute.xlu0 %281
        %285 = vset.pattern.permute.xlu0 0
        %286 = vperm.xlu0 %285, %v207
        %v287 = vpop.permute.xlu0 %286
        %v290 = vperm.slane %v208, 0
        %v291 = vperm.slane %v208, 4
        %v294 = vperm.slane %v290, 0
        %v295 = vperm.slane %v291, 0
        %v296 = vsub.f32 %v212, %v294
        %v297 = vsub.f32 %v212, %v295
        %v298 = vsub.f32 %v217, %v294
        %v299 = vsub.f32 %v217, %v295
        %v300 = vsub.f32 %v222, %v294
        %v301 = vsub.f32 %v222, %v295
        %v302 = vsub.f32 %v227, %v294
        %v303 = vsub.f32 %v227, %v295
        %v304 = vsub.f32 %v232, %v294
        %v305 = vsub.f32 %v232, %v295
        %v306 = vsub.f32 %v237, %v294
        %v307 = vsub.f32 %v237, %v295
        %v308 = vsub.f32 %v242, %v294
        %v309 = vsub.f32 %v242, %v295
        %v310 = vsub.f32 %v247, %v294
        %v311 = vsub.f32 %v247, %v295
        %v312 = vsub.f32 %v252, %v294
        %v313 = vsub.f32 %v252, %v295
        %v314 = vsub.f32 %v257, %v294
        %v315 = vsub.f32 %v257, %v295
        %v316 = vsub.f32 %v262, %v294
        %v317 = vsub.f32 %v262, %v295
        %v318 = vsub.f32 %v267, %v294
        %v319 = vsub.f32 %v267, %v295
        %v320 = vsub.f32 %v272, %v294
        %v321 = vsub.f32 %v272, %v295
        %v322 = vsub.f32 %v277, %v294
        %v323 = vsub.f32 %v277, %v295
        %v324 = vsub.f32 %v282, %v294
        %v325 = vsub.f32 %v282, %v295
        %v326 = vsub.f32 %v287, %v294
        %v327 = vsub.f32 %v287, %v295
        %v328 = vmul.f32 %v296, %v296
        %v329 = vmul.f32 %v297, %v297
        %v330 = vmul.f32 %v298, %v298
        %v331 = vmul.f32 %v299, %v299
        %v332 = vmul.f32 %v300, %v300
        %v333 = vmul.f32 %v301, %v301
        %v334 = vmul.f32 %v302, %v302
        %v335 = vmul.f32 %v303, %v303
        %v336 = vmul.f32 %v304, %v304
        %v337 = vmul.f32 %v305, %v305
        %v338 = vmul.f32 %v306, %v306
        %v339 = vmul.f32 %v307, %v307
        %v340 = vmul.f32 %v308, %v308
        %v341 = vmul.f32 %v309, %v309
        %v342 = vmul.f32 %v310, %v310
        %v343 = vmul.f32 %v311, %v311
        %v344 = vmul.f32 %v312, %v312
        %v345 = vmul.f32 %v313, %v313
        %v346 = vmul.f32 %v314, %v314
        %v347 = vmul.f32 %v315, %v315
        %v348 = vmul.f32 %v316, %v316
        %v349 = vmul.f32 %v317, %v317
        %v350 = vmul.f32 %v318, %v318
        %v351 = vmul.f32 %v319, %v319
        %v352 = vmul.f32 %v320, %v320
        %v353 = vmul.f32 %v321, %v321
        %v354 = vmul.f32 %v322, %v322
        %v355 = vmul.f32 %v323, %v323
        %v356 = vmul.f32 %v324, %v324
        %v357 = vmul.f32 %v325, %v325
        %v358 = vmul.f32 %v326, %v326
        %v359 = vmul.f32 %v327, %v327
        %v360 = vadd.f32 %v328, 0.0
        %v361 = vadd.f32 %v329, 0.0
        %v362 = vadd.f32 %v330, 0.0
        %v363 = vadd.f32 %v331, 0.0
        %v364 = vadd.f32 %v332, 0.0
        %v365 = vadd.f32 %v333, 0.0
        %v366 = vadd.f32 %v334, 0.0
        %v367 = vadd.f32 %v335, 0.0
        %v368 = vadd.f32 %v336, 0.0
        %v369 = vadd.f32 %v337, 0.0
        %v370 = vadd.f32 %v338, 0.0
        %v371 = vadd.f32 %v339, 0.0
        %v372 = vadd.f32 %v340, 0.0
        %v373 = vadd.f32 %v341, 0.0
        %v374 = vadd.f32 %v342, 0.0
        %v375 = vadd.f32 %v343, 0.0
        %v376 = vadd.f32 %v344, 0.0
        %v377 = vadd.f32 %v345, 0.0
        %v378 = vadd.f32 %v346, 0.0
        %v379 = vadd.f32 %v347, 0.0
        %v380 = vadd.f32 %v348, 0.0
        %v381 = vadd.f32 %v349, 0.0
        %v382 = vadd.f32 %v350, 0.0
        %v383 = vadd.f32 %v351, 0.0
        %v384 = vadd.f32 %v352, 0.0
        %v385 = vadd.f32 %v353, 0.0
        %v386 = vadd.f32 %v354, 0.0
        %v387 = vadd.f32 %v355, 0.0
        %v388 = vadd.f32 %v356, 0.0
        %v389 = vadd.f32 %v357, 0.0
        %v390 = vadd.f32 %v358, 0.0
        %v391 = vadd.f32 %v359, 0.0
        %392 = vset.pattern.permute.xlu0 1
        %393 = vperm.xlu0 %392, %v192
        %v394 = vpop.permute.xlu0 %393
        %396 = vset.pattern.permute.xlu0 1
        %397 = vperm.xlu0 %396, %v193
        %v398 = vpop.permute.xlu0 %397
        %400 = vset.pattern.permute.xlu0 1
        %401 = vperm.xlu0 %400, %v194
        %v402 = vpop.permute.xlu0 %401
        %404 = vset.pattern.permute.xlu0 1
        %405 = vperm.xlu0 %404, %v195
        %v406 = vpop.permute.xlu0 %405
        %408 = vset.pattern.permute.xlu0 1
        %409 = vperm.xlu0 %408, %v196
        %v410 = vpop.permute.xlu0 %409
        %412 = vset.pattern.permute.xlu0 1
        %413 = vperm.xlu0 %412, %v197
        %v414 = vpop.permute.xlu0 %413
        %416 = vset.pattern.permute.xlu0 1
        %417 = vperm.xlu0 %416, %v198
        %v418 = vpop.permute.xlu0 %417
        %420 = vset.pattern.permute.xlu0 1
        %421 = vperm.xlu0 %420, %v199
        %v422 = vpop.permute.xlu0 %421
        %424 = vset.pattern.permute.xlu0 1
        %425 = vperm.xlu0 %424, %v200
        %v426 = vpop.permute.xlu0 %425
        %428 = vset.pattern.permute.xlu0 1
        %429 = vperm.xlu0 %428, %v201
        %v430 = vpop.permute.xlu0 %429
        %432 = vset.pattern.permute.xlu0 1
        %433 = vperm.xlu0 %432, %v202
        %v434 = vpop.permute.xlu0 %433
        %436 = vset.pattern.permute.xlu0 1
        %437 = vperm.xlu0 %436, %v203
        %v438 = vpop.permute.xlu0 %437
        %440 = vset.pattern.permute.xlu0 1
        %441 = vperm.xlu0 %440, %v204
        %v442 = vpop.permute.xlu0 %441
        %444 = vset.pattern.permute.xlu0 1
        %445 = vperm.xlu0 %444, %v205
        %v446 = vpop.permute.xlu0 %445
        %448 = vset.pattern.permute.xlu0 1
        %449 = vperm.xlu0 %448, %v206
        %v450 = vpop.permute.xlu0 %449
        %452 = vset.pattern.permute.xlu0 1
        %453 = vperm.xlu0 %452, %v207
        %v454 = vpop.permute.xlu0 %453
        %v456 = vperm.slane %v208, 1
        %v457 = vperm.slane %v208, 5
        %v460 = vperm.slane %v456, 1
        %v461 = vperm.slane %v457, 1
        %v462 = vsub.f32 %v394, %v460
        %v463 = vsub.f32 %v394, %v461
        %v464 = vsub.f32 %v398, %v460
        %v465 = vsub.f32 %v398, %v461
        %v466 = vsub.f32 %v402, %v460
        %v467 = vsub.f32 %v402, %v461
        %v468 = vsub.f32 %v406, %v460
        %v469 = vsub.f32 %v406, %v461
        %v470 = vsub.f32 %v410, %v460
        %v471 = vsub.f32 %v410, %v461
        %v472 = vsub.f32 %v414, %v460
        %v473 = vsub.f32 %v414, %v461
        %v474 = vsub.f32 %v418, %v460
        %v475 = vsub.f32 %v418, %v461
        %v476 = vsub.f32 %v422, %v460
        %v477 = vsub.f32 %v422, %v461
        %v478 = vsub.f32 %v426, %v460
        %v479 = vsub.f32 %v426, %v461
        %v480 = vsub.f32 %v430, %v460
        %v481 = vsub.f32 %v430, %v461
        %v482 = vsub.f32 %v434, %v460
        %v483 = vsub.f32 %v434, %v461
        %v484 = vsub.f32 %v438, %v460
        %v485 = vsub.f32 %v438, %v461
        %v486 = vsub.f32 %v442, %v460
        %v487 = vsub.f32 %v442, %v461
        %v488 = vsub.f32 %v446, %v460
        %v489 = vsub.f32 %v446, %v461
        %v490 = vsub.f32 %v450, %v460
        %v491 = vsub.f32 %v450, %v461
        %v492 = vsub.f32 %v454, %v460
        %v493 = vsub.f32 %v454, %v461
        %v494 = vmul.f32 %v462, %v462
        %v495 = vmul.f32 %v463, %v463
        %v496 = vmul.f32 %v464, %v464
        %v497 = vmul.f32 %v465, %v465
        %v498 = vmul.f32 %v466, %v466
        %v499 = vmul.f32 %v467, %v467
        %v500 = vmul.f32 %v468, %v468
        %v501 = vmul.f32 %v469, %v469
        %v502 = vmul.f32 %v470, %v470
        %v503 = vmul.f32 %v471, %v471
        %v504 = vmul.f32 %v472, %v472
        %v505 = vmul.f32 %v473, %v473
        %v506 = vmul.f32 %v474, %v474
        %v507 = vmul.f32 %v475, %v475
        %v508 = vmul.f32 %v476, %v476
        %v509 = vmul.f32 %v477, %v477
        %v510 = vmul.f32 %v478, %v478
        %v511 = vmul.f32 %v479, %v479
        %v512 = vmul.f32 %v480, %v480
        %v513 = vmul.f32 %v481, %v481
        %v514 = vmul.f32 %v482, %v482
        %v515 = vmul.f32 %v483, %v483
        %v516 = vmul.f32 %v484, %v484
        %v517 = vmul.f32 %v485, %v485
        %v518 = vmul.f32 %v486, %v486
        %v519 = vmul.f32 %v487, %v487
        %v520 = vmul.f32 %v488, %v488
        %v521 = vmul.f32 %v489, %v489
        %v522 = vmul.f32 %v490, %v490
        %v523 = vmul.f32 %v491, %v491
        %v524 = vmul.f32 %v492, %v492
        %v525 = vmul.f32 %v493, %v493
        %v526 = vadd.f32 %v360, %v494
        %v527 = vadd.f32 %v361, %v495
        %v528 = vadd.f32 %v362, %v496
        %v529 = vadd.f32 %v363, %v497
        %v530 = vadd.f32 %v364, %v498
        %v531 = vadd.f32 %v365, %v499
        %v532 = vadd.f32 %v366, %v500
        %v533 = vadd.f32 %v367, %v501
        %v534 = vadd.f32 %v368, %v502
        %v535 = vadd.f32 %v369, %v503
        %v536 = vadd.f32 %v370, %v504
        %v537 = vadd.f32 %v371, %v505
        %v538 = vadd.f32 %v372, %v506
        %v539 = vadd.f32 %v373, %v507
        %v540 = vadd.f32 %v374, %v508
        %v541 = vadd.f32 %v375, %v509
        %v542 = vadd.f32 %v376, %v510
        %v543 = vadd.f32 %v377, %v511
        %v544 = vadd.f32 %v378, %v512
        %v545 = vadd.f32 %v379, %v513
        %v546 = vadd.f32 %v380, %v514
        %v547 = vadd.f32 %v381, %v515
        %v548 = vadd.f32 %v382, %v516
        %v549 = vadd.f32 %v383, %v517
        %v550 = vadd.f32 %v384, %v518
        %v551 = vadd.f32 %v385, %v519
        %v552 = vadd.f32 %v386, %v520
        %v553 = vadd.f32 %v387, %v521
        %v554 = vadd.f32 %v388, %v522
        %v555 = vadd.f32 %v389, %v523
        %v556 = vadd.f32 %v390, %v524
        %v557 = vadd.f32 %v391, %v525
        %558 = vset.pattern.permute.xlu0 2
        %559 = vperm.xlu0 %558, %v192
        %v560 = vpop.permute.xlu0 %559
        %562 = vset.pattern.permute.xlu0 2
        %563 = vperm.xlu0 %562, %v193
        %v564 = vpop.permute.xlu0 %563
        %566 = vset.pattern.permute.xlu0 2
        %567 = vperm.xlu0 %566, %v194
        %v568 = vpop.permute.xlu0 %567
        %570 = vset.pattern.permute.xlu0 2
        %571 = vperm.xlu0 %570, %v195
        %v572 = vpop.permute.xlu0 %571
        %574 = vset.pattern.permute.xlu0 2
        %575 = vperm.xlu0 %574, %v196
        %v576 = vpop.permute.xlu0 %575
        %578 = vset.pattern.permute.xlu0 2
        %579 = vperm.xlu0 %578, %v197
        %v580 = vpop.permute.xlu0 %579
        %582 = vset.pattern.permute.xlu0 2
        %583 = vperm.xlu0 %582, %v198
        %v584 = vpop.permute.xlu0 %583
        %586 = vset.pattern.permute.xlu0 2
        %587 = vperm.xlu0 %586, %v199
        %v588 = vpop.permute.xlu0 %587
        %590 = vset.pattern.permute.xlu0 2
        %591 = vperm.xlu0 %590, %v200
        %v592 = vpop.permute.xlu0 %591
        %594 = vset.pattern.permute.xlu0 2
        %595 = vperm.xlu0 %594, %v201
        %v596 = vpop.permute.xlu0 %595
        %598 = vset.pattern.permute.xlu0 2
        %599 = vperm.xlu0 %598, %v202
        %v600 = vpop.permute.xlu0 %599
        %602 = vset.pattern.permute.xlu0 2
        %603 = vperm.xlu0 %602, %v203
        %v604 = vpop.permute.xlu0 %603
        %606 = vset.pattern.permute.xlu0 2
        %607 = vperm.xlu0 %606, %v204
        %v608 = vpop.permute.xlu0 %607
        %610 = vset.pattern.permute.xlu0 2
        %611 = vperm.xlu0 %610, %v205
        %v612 = vpop.permute.xlu0 %611
        %614 = vset.pattern.permute.xlu0 2
        %615 = vperm.xlu0 %614, %v206
        %v616 = vpop.permute.xlu0 %615
        %618 = vset.pattern.permute.xlu0 2
        %619 = vperm.xlu0 %618, %v207
        %v620 = vpop.permute.xlu0 %619
        %v622 = vperm.slane %v208, 2
        %v623 = vperm.slane %v208, 6
        %v626 = vperm.slane %v622, 2
        %v627 = vperm.slane %v623, 2
        %v628 = vsub.f32 %v560, %v626
        %v629 = vsub.f32 %v560, %v627
        %v630 = vsub.f32 %v564, %v626
        %v631 = vsub.f32 %v564, %v627
        %v632 = vsub.f32 %v568, %v626
        %v633 = vsub.f32 %v568, %v627
        %v634 = vsub.f32 %v572, %v626
        %v635 = vsub.f32 %v572, %v627
        %v636 = vsub.f32 %v576, %v626
        %v637 = vsub.f32 %v576, %v627
        %v638 = vsub.f32 %v580, %v626
        %v639 = vsub.f32 %v580, %v627
        %v640 = vsub.f32 %v584, %v626
        %v641 = vsub.f32 %v584, %v627
        %v642 = vsub.f32 %v588, %v626
        %v643 = vsub.f32 %v588, %v627
        %v644 = vsub.f32 %v592, %v626
        %v645 = vsub.f32 %v592, %v627
        %v646 = vsub.f32 %v596, %v626
        %v647 = vsub.f32 %v596, %v627
        %v648 = vsub.f32 %v600, %v626
        %v649 = vsub.f32 %v600, %v627
        %v650 = vsub.f32 %v604, %v626
        %v651 = vsub.f32 %v604, %v627
        %v652 = vsub.f32 %v608, %v626
        %v653 = vsub.f32 %v608, %v627
        %v654 = vsub.f32 %v612, %v626
        %v655 = vsub.f32 %v612, %v627
        %v656 = vsub.f32 %v616, %v626
        %v657 = vsub.f32 %v616, %v627
        %v658 = vsub.f32 %v620, %v626
        %v659 = vsub.f32 %v620, %v627
        %v660 = vmul.f32 %v628, %v628
        %v661 = vmul.f32 %v629, %v629
        %v662 = vmul.f32 %v630, %v630
        %v663 = vmul.f32 %v631, %v631
        %v664 = vmul.f32 %v632, %v632
        %v665 = vmul.f32 %v633, %v633
        %v666 = vmul.f32 %v634, %v634
        %v667 = vmul.f32 %v635, %v635
        %v668 = vmul.f32 %v636, %v636
        %v669 = vmul.f32 %v637, %v637
        %v670 = vmul.f32 %v638, %v638
        %v671 = vmul.f32 %v639, %v639
        %v672 = vmul.f32 %v640, %v640
        %v673 = vmul.f32 %v641, %v641
        %v674 = vmul.f32 %v642, %v642
        %v675 = vmul.f32 %v643, %v643
        %v676 = vmul.f32 %v644, %v644
        %v677 = vmul.f32 %v645, %v645
        %v678 = vmul.f32 %v646, %v646
        %v679 = vmul.f32 %v647, %v647
        %v680 = vmul.f32 %v648, %v648
        %v681 = vmul.f32 %v649, %v649
        %v682 = vmul.f32 %v650, %v650
        %v683 = vmul.f32 %v651, %v651
        %v684 = vmul.f32 %v652, %v652
        %v685 = vmul.f32 %v653, %v653
        %v686 = vmul.f32 %v654, %v654
        %v687 = vmul.f32 %v655, %v655
        %v688 = vmul.f32 %v656, %v656
        %v689 = vmul.f32 %v657, %v657
        %v690 = vmul.f32 %v658, %v658
        %v691 = vmul.f32 %v659, %v659
        %v692 = vadd.f32 %v526, %v660
        %v693 = vadd.f32 %v527, %v661
        %v694 = vadd.f32 %v528, %v662
        %v695 = vadd.f32 %v529, %v663
        %v696 = vadd.f32 %v530, %v664
        %v697 = vadd.f32 %v531, %v665
        %v698 = vadd.f32 %v532, %v666
        %v699 = vadd.f32 %v533, %v667
        %v700 = vadd.f32 %v534, %v668
        %v701 = vadd.f32 %v535, %v669
        %v702 = vadd.f32 %v536, %v670
        %v703 = vadd.f32 %v537, %v671
        %v704 = vadd.f32 %v538, %v672
        %v705 = vadd.f32 %v539, %v673
        %v706 = vadd.f32 %v540, %v674
        %v707 = vadd.f32 %v541, %v675
        %v708 = vadd.f32 %v542, %v676
        %v709 = vadd.f32 %v543, %v677
        %v710 = vadd.f32 %v544, %v678
        %v711 = vadd.f32 %v545, %v679
        %v712 = vadd.f32 %v546, %v680
        %v713 = vadd.f32 %v547, %v681
        %v714 = vadd.f32 %v548, %v682
        %v715 = vadd.f32 %v549, %v683
        %v716 = vadd.f32 %v550, %v684
        %v717 = vadd.f32 %v551, %v685
        %v718 = vadd.f32 %v552, %v686
        %v719 = vadd.f32 %v553, %v687
        %v720 = vadd.f32 %v554, %v688
        %v721 = vadd.f32 %v555, %v689
        %v722 = vadd.f32 %v556, %v690
        %v723 = vadd.f32 %v557, %v691
        %vm724 = vcmp.eq.f32.partialorder %v692, 0.0
        %vm725 = vcmp.eq.f32.partialorder %v693, 0.0
        %vm726 = vcmp.eq.f32.partialorder %v694, 0.0
        %vm727 = vcmp.eq.f32.partialorder %v695, 0.0
        %vm728 = vcmp.eq.f32.partialorder %v696, 0.0
        %vm729 = vcmp.eq.f32.partialorder %v697, 0.0
        %vm730 = vcmp.eq.f32.partialorder %v698, 0.0
        %vm731 = vcmp.eq.f32.partialorder %v699, 0.0
        %vm732 = vcmp.eq.f32.partialorder %v700, 0.0
        %vm733 = vcmp.eq.f32.partialorder %v701, 0.0
        %vm734 = vcmp.eq.f32.partialorder %v702, 0.0
        %vm735 = vcmp.eq.f32.partialorder %v703, 0.0
        %vm736 = vcmp.eq.f32.partialorder %v704, 0.0
        %vm737 = vcmp.eq.f32.partialorder %v705, 0.0
        %vm738 = vcmp.eq.f32.partialorder %v706, 0.0
        %vm739 = vcmp.eq.f32.partialorder %v707, 0.0
        %vm740 = vcmp.eq.f32.partialorder %v708, 0.0
        %vm741 = vcmp.eq.f32.partialorder %v709, 0.0
        %vm742 = vcmp.eq.f32.partialorder %v710, 0.0
        %vm743 = vcmp.eq.f32.partialorder %v711, 0.0
        %vm744 = vcmp.eq.f32.partialorder %v712, 0.0
        %vm745 = vcmp.eq.f32.partialorder %v713, 0.0
        %vm746 = vcmp.eq.f32.partialorder %v714, 0.0
        %vm747 = vcmp.eq.f32.partialorder %v715, 0.0
        %vm748 = vcmp.eq.f32.partialorder %v716, 0.0
        %vm749 = vcmp.eq.f32.partialorder %v717, 0.0
        %vm750 = vcmp.eq.f32.partialorder %v718, 0.0
        %vm751 = vcmp.eq.f32.partialorder %v719, 0.0
        %vm752 = vcmp.eq.f32.partialorder %v720, 0.0
        %vm753 = vcmp.eq.f32.partialorder %v721, 0.0
        %vm754 = vcmp.eq.f32.partialorder %v722, 0.0
        %vm755 = vcmp.eq.f32.partialorder %v723, 0.0
        %v756 = vsel %vm724, 1.0, 0.0
        %v757 = vsel %vm725, 1.0, 0.0
        %v758 = vsel %vm726, 1.0, 0.0
        %v759 = vsel %vm727, 1.0, 0.0
        %v760 = vsel %vm728, 1.0, 0.0
        %v761 = vsel %vm729, 1.0, 0.0
        %v762 = vsel %vm730, 1.0, 0.0
        %v763 = vsel %vm731, 1.0, 0.0
        %v764 = vsel %vm732, 1.0, 0.0
        %v765 = vsel %vm733, 1.0, 0.0
        %v766 = vsel %vm734, 1.0, 0.0
        %v767 = vsel %vm735, 1.0, 0.0
        %v768 = vsel %vm736, 1.0, 0.0
        %v769 = vsel %vm737, 1.0, 0.0
        %v770 = vsel %vm738, 1.0, 0.0
        %v771 = vsel %vm739, 1.0, 0.0
        %v772 = vsel %vm740, 1.0, 0.0
        %v773 = vsel %vm741, 1.0, 0.0
        %v774 = vsel %vm742, 1.0, 0.0
        %v775 = vsel %vm743, 1.0, 0.0
        %v776 = vsel %vm744, 1.0, 0.0
        %v777 = vsel %vm745, 1.0, 0.0
        %v778 = vsel %vm746, 1.0, 0.0
        %v779 = vsel %vm747, 1.0, 0.0
        %v780 = vsel %vm748, 1.0, 0.0
        %v781 = vsel %vm749, 1.0, 0.0
        %v782 = vsel %vm750, 1.0, 0.0
        %v783 = vsel %vm751, 1.0, 0.0
        %v784 = vsel %vm752, 1.0, 0.0
        %v785 = vsel %vm753, 1.0, 0.0
        %v786 = vsel %vm754, 1.0, 0.0
        %v787 = vsel %vm755, 1.0, 0.0
        %v788 = vadd.f32 %v756, %v757
        %789 = vadd.xlane.f32.xlu0 %v788
        %v790 = vpop.xlane.xlu0 %789
        %v791 = vadd.f32 %v758, %v759
        %792 = vadd.xlane.f32.xlu0 %v791
        %v793 = vpop.xlane.xlu0 %792
        %v794 = vadd.f32 %v760, %v761
        %795 = vadd.xlane.f32.xlu0 %v794
        %v796 = vpop.xlane.xlu0 %795
        %v797 = vadd.f32 %v762, %v763
        %798 = vadd.xlane.f32.xlu0 %v797
        %v799 = vpop.xlane.xlu0 %798
        %v800 = vadd.f32 %v764, %v765
        %801 = vadd.xlane.f32.xlu0 %v800
        %v802 = vpop.xlane.xlu0 %801
        %v803 = vadd.f32 %v766, %v767
        %804 = vadd.xlane.f32.xlu0 %v803
        %v805 = vpop.xlane.xlu0 %804
        %v806 = vadd.f32 %v768, %v769
        %807 = vadd.xlane.f32.xlu0 %v806
        %v808 = vpop.xlane.xlu0 %807
        %v809 = vadd.f32 %v770, %v771
        %810 = vadd.xlane.f32.xlu0 %v809
        %v811 = vpop.xlane.xlu0 %810
        %v812 = vadd.f32 %v772, %v773
        %813 = vadd.xlane.f32.xlu0 %v812
        %v814 = vpop.xlane.xlu0 %813
        %v815 = vadd.f32 %v774, %v775
        %816 = vadd.xlane.f32.xlu0 %v815
        %v817 = vpop.xlane.xlu0 %816
        %v818 = vadd.f32 %v776, %v777
        %819 = vadd.xlane.f32.xlu0 %v818
        %v820 = vpop.xlane.xlu0 %819
        %v821 = vadd.f32 %v778, %v779
        %822 = vadd.xlane.f32.xlu0 %v821
        %v823 = vpop.xlane.xlu0 %822
        %v824 = vadd.f32 %v780, %v781
        %825 = vadd.xlane.f32.xlu0 %v824
        %v826 = vpop.xlane.xlu0 %825
        %v827 = vadd.f32 %v782, %v783
        %828 = vadd.xlane.f32.xlu0 %v827
        %v829 = vpop.xlane.xlu0 %828
        %v830 = vadd.f32 %v784, %v785
        %831 = vadd.xlane.f32.xlu0 %v830
        %v832 = vpop.xlane.xlu0 %831
        %v833 = vadd.f32 %v786, %v787
        %834 = vadd.xlane.f32.xlu0 %v833
        %v835 = vpop.xlane.xlu0 %834
        %vm836 = vcmp.gt.f32.partialorder %v790, 1.0
        %vm837 = vcmp.gt.f32.partialorder %v793, 1.0
        %vm838 = vcmp.gt.f32.partialorder %v796, 1.0
        %vm839 = vcmp.gt.f32.partialorder %v799, 1.0
        %vm840 = vcmp.gt.f32.partialorder %v802, 1.0
        %vm841 = vcmp.gt.f32.partialorder %v805, 1.0
        %vm842 = vcmp.gt.f32.partialorder %v808, 1.0
        %vm843 = vcmp.gt.f32.partialorder %v811, 1.0
        %vm844 = vcmp.gt.f32.partialorder %v814, 1.0
        %vm845 = vcmp.gt.f32.partialorder %v817, 1.0
        %vm846 = vcmp.gt.f32.partialorder %v820, 1.0
        %vm847 = vcmp.gt.f32.partialorder %v823, 1.0
        %vm848 = vcmp.gt.f32.partialorder %v826, 1.0
        %vm849 = vcmp.gt.f32.partialorder %v829, 1.0
        %vm850 = vcmp.gt.f32.partialorder %v832, 1.0
        %vm851 = vcmp.gt.f32.partialorder %v835, 1.0
        %vm852 = vcmp.gt.f32.partialorder %v692, 0.0
        %vm853 = vcmp.gt.f32.partialorder %v693, 0.0
        %vm854 = vcmp.gt.f32.partialorder %v694, 0.0
        %vm855 = vcmp.gt.f32.partialorder %v695, 0.0
        %vm856 = vcmp.gt.f32.partialorder %v696, 0.0
        %vm857 = vcmp.gt.f32.partialorder %v697, 0.0
        %vm858 = vcmp.gt.f32.partialorder %v698, 0.0
        %vm859 = vcmp.gt.f32.partialorder %v699, 0.0
        %vm860 = vcmp.gt.f32.partialorder %v700, 0.0
        %vm861 = vcmp.gt.f32.partialorder %v701, 0.0
        %vm862 = vcmp.gt.f32.partialorder %v702, 0.0
        %vm863 = vcmp.gt.f32.partialorder %v703, 0.0
        %vm864 = vcmp.gt.f32.partialorder %v704, 0.0
        %vm865 = vcmp.gt.f32.partialorder %v705, 0.0
        %vm866 = vcmp.gt.f32.partialorder %v706, 0.0
        %vm867 = vcmp.gt.f32.partialorder %v707, 0.0
        %vm868 = vcmp.gt.f32.partialorder %v708, 0.0
        %vm869 = vcmp.gt.f32.partialorder %v709, 0.0
        %vm870 = vcmp.gt.f32.partialorder %v710, 0.0
        %vm871 = vcmp.gt.f32.partialorder %v711, 0.0
        %vm872 = vcmp.gt.f32.partialorder %v712, 0.0
        %vm873 = vcmp.gt.f32.partialorder %v713, 0.0
        %vm874 = vcmp.gt.f32.partialorder %v714, 0.0
        %vm875 = vcmp.gt.f32.partialorder %v715, 0.0
        %vm876 = vcmp.gt.f32.partialorder %v716, 0.0
        %vm877 = vcmp.gt.f32.partialorder %v717, 0.0
        %vm878 = vcmp.gt.f32.partialorder %v718, 0.0
        %vm879 = vcmp.gt.f32.partialorder %v719, 0.0
        %vm880 = vcmp.gt.f32.partialorder %v720, 0.0
        %vm881 = vcmp.gt.f32.partialorder %v721, 0.0
        %vm882 = vcmp.gt.f32.partialorder %v722, 0.0
        %vm883 = vcmp.gt.f32.partialorder %v723, 0.0
        %v884 = vsel %vm852, %v692, inf
        %v885 = vsel %vm853, %v693, inf
        %v886 = vsel %vm854, %v694, inf
        %v887 = vsel %vm855, %v695, inf
        %v888 = vsel %vm856, %v696, inf
        %v889 = vsel %vm857, %v697, inf
        %v890 = vsel %vm858, %v698, inf
        %v891 = vsel %vm859, %v699, inf
        %v892 = vsel %vm860, %v700, inf
        %v893 = vsel %vm861, %v701, inf
        %v894 = vsel %vm862, %v702, inf
        %v895 = vsel %vm863, %v703, inf
        %v896 = vsel %vm864, %v704, inf
        %v897 = vsel %vm865, %v705, inf
        %v898 = vsel %vm866, %v706, inf
        %v899 = vsel %vm867, %v707, inf
        %v900 = vsel %vm868, %v708, inf
        %v901 = vsel %vm869, %v709, inf
        %v902 = vsel %vm870, %v710, inf
        %v903 = vsel %vm871, %v711, inf
        %v904 = vsel %vm872, %v712, inf
        %v905 = vsel %vm873, %v713, inf
        %v906 = vsel %vm874, %v714, inf
        %v907 = vsel %vm875, %v715, inf
        %v908 = vsel %vm876, %v716, inf
        %v909 = vsel %vm877, %v717, inf
        %v910 = vsel %vm878, %v718, inf
        %v911 = vsel %vm879, %v719, inf
        %v912 = vsel %vm880, %v720, inf
        %v913 = vsel %vm881, %v721, inf
        %v914 = vsel %vm882, %v722, inf
        %v915 = vsel %vm883, %v723, inf
        %v916 = vmin.f32 %v884, %v885
        %917 = vmin.xlane.f32.xlu0 %v916
        %v918 = vpop.xlane.xlu0 %917
        %v919 = vmin.f32 %v886, %v887
        %920 = vmin.xlane.f32.xlu0 %v919
        %v921 = vpop.xlane.xlu0 %920
        %v922 = vmin.f32 %v888, %v889
        %923 = vmin.xlane.f32.xlu0 %v922
        %v924 = vpop.xlane.xlu0 %923
        %v925 = vmin.f32 %v890, %v891
        %926 = vmin.xlane.f32.xlu0 %v925
        %v927 = vpop.xlane.xlu0 %926
        %v928 = vmin.f32 %v892, %v893
        %929 = vmin.xlane.f32.xlu0 %v928
        %v930 = vpop.xlane.xlu0 %929
        %v931 = vmin.f32 %v894, %v895
        %932 = vmin.xlane.f32.xlu0 %v931
        %v933 = vpop.xlane.xlu0 %932
        %v934 = vmin.f32 %v896, %v897
        %935 = vmin.xlane.f32.xlu0 %v934
        %v936 = vpop.xlane.xlu0 %935
        %v937 = vmin.f32 %v898, %v899
        %938 = vmin.xlane.f32.xlu0 %v937
        %v939 = vpop.xlane.xlu0 %938
        %v940 = vmin.f32 %v900, %v901
        %941 = vmin.xlane.f32.xlu0 %v940
        %v942 = vpop.xlane.xlu0 %941
        %v943 = vmin.f32 %v902, %v903
        %944 = vmin.xlane.f32.xlu0 %v943
        %v945 = vpop.xlane.xlu0 %944
        %v946 = vmin.f32 %v904, %v905
        %947 = vmin.xlane.f32.xlu0 %v946
        %v948 = vpop.xlane.xlu0 %947
        %v949 = vmin.f32 %v906, %v907
        %950 = vmin.xlane.f32.xlu0 %v949
        %v951 = vpop.xlane.xlu0 %950
        %v952 = vmin.f32 %v908, %v909
        %953 = vmin.xlane.f32.xlu0 %v952
        %v954 = vpop.xlane.xlu0 %953
        %v955 = vmin.f32 %v910, %v911
        %956 = vmin.xlane.f32.xlu0 %v955
        %v957 = vpop.xlane.xlu0 %956
        %v958 = vmin.f32 %v912, %v913
        %959 = vmin.xlane.f32.xlu0 %v958
        %v960 = vpop.xlane.xlu0 %959
        %v961 = vmin.f32 %v914, %v915
        %962 = vmin.xlane.f32.xlu0 %v961
        %v963 = vpop.xlane.xlu0 %962
        %v964 = vsel %vm836, 0.0, %v918
        %v965 = vsel %vm837, 0.0, %v921
        %v966 = vsel %vm838, 0.0, %v924
        %v967 = vsel %vm839, 0.0, %v927
        %v968 = vsel %vm840, 0.0, %v930
        %v969 = vsel %vm841, 0.0, %v933
        %v970 = vsel %vm842, 0.0, %v936
        %v971 = vsel %vm843, 0.0, %v939
        %v972 = vsel %vm844, 0.0, %v942
        %v973 = vsel %vm845, 0.0, %v945
        %v974 = vsel %vm846, 0.0, %v948
        %v975 = vsel %vm847, 0.0, %v951
        %v976 = vsel %vm848, 0.0, %v954
        %v977 = vsel %vm849, 0.0, %v957
        %v978 = vsel %vm850, 0.0, %v960
        %v979 = vsel %vm851, 0.0, %v963
        %v980 = vrsqrt.pop %v964
        %v981 = vmul.f32 %v980, %v964
        %v982 = vmul.f32 %v981, %v980
        %v983 = vmul.f32 0.5, %v982
        %v984 = vsub.f32 1.5, %v983
        %v985 = vmul.f32 %v980, %v984
        %v986 = vmul.f32 %v964, %v985
        %vm987 = vcmp.eq.f32.partialorder %v964, inf
        %v988 = vsel %vm987, %v964, %v986
        %vm989 = vcmp.eq.f32.partialorder %v964, 0.0
        %v990 = vand.u32 %v964, 2147483648
        %v991 = vsel %vm989, %v990, %v988
        %v992 = vrsqrt.pop %v965
        %v993 = vmul.f32 %v992, %v965
        %v994 = vmul.f32 %v993, %v992
        %v995 = vmul.f32 0.5, %v994
        %v996 = vsub.f32 1.5, %v995
        %v997 = vmul.f32 %v992, %v996
        %v998 = vmul.f32 %v965, %v997
        %vm999 = vcmp.eq.f32.partialorder %v965, inf
        %v1000 = vsel %vm999, %v965, %v998
        %vm1001 = vcmp.eq.f32.partialorder %v965, 0.0
        %v1002 = vand.u32 %v965, 2147483648
        %v1003 = vsel %vm1001, %v1002, %v1000
        %v1004 = vrsqrt.pop %v966
        %v1005 = vmul.f32 %v1004, %v966
        %v1006 = vmul.f32 %v1005, %v1004
        %v1007 = vmul.f32 0.5, %v1006
        %v1008 = vsub.f32 1.5, %v1007
        %v1009 = vmul.f32 %v1004, %v1008
        %v1010 = vmul.f32 %v966, %v1009
        %vm1011 = vcmp.eq.f32.partialorder %v966, inf
        %v1012 = vsel %vm1011, %v966, %v1010
        %vm1013 = vcmp.eq.f32.partialorder %v966, 0.0
        %v1014 = vand.u32 %v966, 2147483648
        %v1015 = vsel %vm1013, %v1014, %v1012
        %v1016 = vrsqrt.pop %v967
        %v1017 = vmul.f32 %v1016, %v967
        %v1018 = vmul.f32 %v1017, %v1016
        %v1019 = vmul.f32 0.5, %v1018
        %v1020 = vsub.f32 1.5, %v1019
        %v1021 = vmul.f32 %v1016, %v1020
        %v1022 = vmul.f32 %v967, %v1021
        %vm1023 = vcmp.eq.f32.partialorder %v967, inf
        %v1024 = vsel %vm1023, %v967, %v1022
        %vm1025 = vcmp.eq.f32.partialorder %v967, 0.0
        %v1026 = vand.u32 %v967, 2147483648
        %v1027 = vsel %vm1025, %v1026, %v1024
        %v1028 = vrsqrt.pop %v968
        %v1029 = vmul.f32 %v1028, %v968
        %v1030 = vmul.f32 %v1029, %v1028
        %v1031 = vmul.f32 0.5, %v1030
        %v1032 = vsub.f32 1.5, %v1031
        %v1033 = vmul.f32 %v1028, %v1032
        %v1034 = vmul.f32 %v968, %v1033
        %vm1035 = vcmp.eq.f32.partialorder %v968, inf
        %v1036 = vsel %vm1035, %v968, %v1034
        %vm1037 = vcmp.eq.f32.partialorder %v968, 0.0
        %v1038 = vand.u32 %v968, 2147483648
        %v1039 = vsel %vm1037, %v1038, %v1036
        %v1040 = vrsqrt.pop %v969
        %v1041 = vmul.f32 %v1040, %v969
        %v1042 = vmul.f32 %v1041, %v1040
        %v1043 = vmul.f32 0.5, %v1042
        %v1044 = vsub.f32 1.5, %v1043
        %v1045 = vmul.f32 %v1040, %v1044
        %v1046 = vmul.f32 %v969, %v1045
        %vm1047 = vcmp.eq.f32.partialorder %v969, inf
        %v1048 = vsel %vm1047, %v969, %v1046
        %vm1049 = vcmp.eq.f32.partialorder %v969, 0.0
        %v1050 = vand.u32 %v969, 2147483648
        %v1051 = vsel %vm1049, %v1050, %v1048
        %v1052 = vrsqrt.pop %v970
        %v1053 = vmul.f32 %v1052, %v970
        %v1054 = vmul.f32 %v1053, %v1052
        %v1055 = vmul.f32 0.5, %v1054
        %v1056 = vsub.f32 1.5, %v1055
        %v1057 = vmul.f32 %v1052, %v1056
        %v1058 = vmul.f32 %v970, %v1057
        %vm1059 = vcmp.eq.f32.partialorder %v970, inf
        %v1060 = vsel %vm1059, %v970, %v1058
        %vm1061 = vcmp.eq.f32.partialorder %v970, 0.0
        %v1062 = vand.u32 %v970, 2147483648
        %v1063 = vsel %vm1061, %v1062, %v1060
        %v1064 = vrsqrt.pop %v971
        %v1065 = vmul.f32 %v1064, %v971
        %v1066 = vmul.f32 %v1065, %v1064
        %v1067 = vmul.f32 0.5, %v1066
        %v1068 = vsub.f32 1.5, %v1067
        %v1069 = vmul.f32 %v1064, %v1068
        %v1070 = vmul.f32 %v971, %v1069
        %vm1071 = vcmp.eq.f32.partialorder %v971, inf
        %v1072 = vsel %vm1071, %v971, %v1070
        %vm1073 = vcmp.eq.f32.partialorder %v971, 0.0
        %v1074 = vand.u32 %v971, 2147483648
        %v1075 = vsel %vm1073, %v1074, %v1072
        %v1076 = vrsqrt.pop %v972
        %v1077 = vmul.f32 %v1076, %v972
        %v1078 = vmul.f32 %v1077, %v1076
        %v1079 = vmul.f32 0.5, %v1078
        %v1080 = vsub.f32 1.5, %v1079
        %v1081 = vmul.f32 %v1076, %v1080
        %v1082 = vmul.f32 %v972, %v1081
        %vm1083 = vcmp.eq.f32.partialorder %v972, inf
        %v1084 = vsel %vm1083, %v972, %v1082
        %vm1085 = vcmp.eq.f32.partialorder %v972, 0.0
        %v1086 = vand.u32 %v972, 2147483648
        %v1087 = vsel %vm1085, %v1086, %v1084
        %v1088 = vrsqrt.pop %v973
        %v1089 = vmul.f32 %v1088, %v973
        %v1090 = vmul.f32 %v1089, %v1088
        %v1091 = vmul.f32 0.5, %v1090
        %v1092 = vsub.f32 1.5, %v1091
        %v1093 = vmul.f32 %v1088, %v1092
        %v1094 = vmul.f32 %v973, %v1093
        %vm1095 = vcmp.eq.f32.partialorder %v973, inf
        %v1096 = vsel %vm1095, %v973, %v1094
        %vm1097 = vcmp.eq.f32.partialorder %v973, 0.0
        %v1098 = vand.u32 %v973, 2147483648
        %v1099 = vsel %vm1097, %v1098, %v1096
        %v1100 = vrsqrt.pop %v974
        %v1101 = vmul.f32 %v1100, %v974
        %v1102 = vmul.f32 %v1101, %v1100
        %v1103 = vmul.f32 0.5, %v1102
        %v1104 = vsub.f32 1.5, %v1103
        %v1105 = vmul.f32 %v1100, %v1104
        %v1106 = vmul.f32 %v974, %v1105
        %vm1107 = vcmp.eq.f32.partialorder %v974, inf
        %v1108 = vsel %vm1107, %v974, %v1106
        %vm1109 = vcmp.eq.f32.partialorder %v974, 0.0
        %v1110 = vand.u32 %v974, 2147483648
        %v1111 = vsel %vm1109, %v1110, %v1108
        %v1112 = vrsqrt.pop %v975
        %v1113 = vmul.f32 %v1112, %v975
        %v1114 = vmul.f32 %v1113, %v1112
        %v1115 = vmul.f32 0.5, %v1114
        %v1116 = vsub.f32 1.5, %v1115
        %v1117 = vmul.f32 %v1112, %v1116
        %v1118 = vmul.f32 %v975, %v1117
        %vm1119 = vcmp.eq.f32.partialorder %v975, inf
        %v1120 = vsel %vm1119, %v975, %v1118
        %vm1121 = vcmp.eq.f32.partialorder %v975, 0.0
        %v1122 = vand.u32 %v975, 2147483648
        %v1123 = vsel %vm1121, %v1122, %v1120
        %v1124 = vrsqrt.pop %v976
        %v1125 = vmul.f32 %v1124, %v976
        %v1126 = vmul.f32 %v1125, %v1124
        %v1127 = vmul.f32 0.5, %v1126
        %v1128 = vsub.f32 1.5, %v1127
        %v1129 = vmul.f32 %v1124, %v1128
        %v1130 = vmul.f32 %v976, %v1129
        %vm1131 = vcmp.eq.f32.partialorder %v976, inf
        %v1132 = vsel %vm1131, %v976, %v1130
        %vm1133 = vcmp.eq.f32.partialorder %v976, 0.0
        %v1134 = vand.u32 %v976, 2147483648
        %v1135 = vsel %vm1133, %v1134, %v1132
        %v1136 = vrsqrt.pop %v977
        %v1137 = vmul.f32 %v1136, %v977
        %v1138 = vmul.f32 %v1137, %v1136
        %v1139 = vmul.f32 0.5, %v1138
        %v1140 = vsub.f32 1.5, %v1139
        %v1141 = vmul.f32 %v1136, %v1140
        %v1142 = vmul.f32 %v977, %v1141
        %vm1143 = vcmp.eq.f32.partialorder %v977, inf
        %v1144 = vsel %vm1143, %v977, %v1142
        %vm1145 = vcmp.eq.f32.partialorder %v977, 0.0
        %v1146 = vand.u32 %v977, 2147483648
        %v1147 = vsel %vm1145, %v1146, %v1144
        %v1148 = vrsqrt.pop %v978
        %v1149 = vmul.f32 %v1148, %v978
        %v1150 = vmul.f32 %v1149, %v1148
        %v1151 = vmul.f32 0.5, %v1150
        %v1152 = vsub.f32 1.5, %v1151
        %v1153 = vmul.f32 %v1148, %v1152
        %v1154 = vmul.f32 %v978, %v1153
        %vm1155 = vcmp.eq.f32.partialorder %v978, inf
        %v1156 = vsel %vm1155, %v978, %v1154
        %vm1157 = vcmp.eq.f32.partialorder %v978, 0.0
        %v1158 = vand.u32 %v978, 2147483648
        %v1159 = vsel %vm1157, %v1158, %v1156
        %v1160 = vrsqrt.pop %v979
        %v1161 = vmul.f32 %v1160, %v979
        %v1162 = vmul.f32 %v1161, %v1160
        %v1163 = vmul.f32 0.5, %v1162
        %v1164 = vsub.f32 1.5, %v1163
        %v1165 = vmul.f32 %v1160, %v1164
        %v1166 = vmul.f32 %v979, %v1165
        %vm1167 = vcmp.eq.f32.partialorder %v979, inf
        %v1168 = vsel %vm1167, %v979, %v1166
        %vm1169 = vcmp.eq.f32.partialorder %v979, 0.0
        %v1170 = vand.u32 %v979, 2147483648
        %v1171 = vsel %vm1169, %v1170, %v1168
        %v1172 = vsub.f32 0.0, %v964
        %v1173 = vsub.f32 0.0, %v965
        %v1174 = vsub.f32 0.0, %v966
        %v1175 = vsub.f32 0.0, %v967
        %v1176 = vsub.f32 0.0, %v968
        %v1177 = vsub.f32 0.0, %v969
        %v1178 = vsub.f32 0.0, %v970
        %v1179 = vsub.f32 0.0, %v971
        %v1180 = vsub.f32 0.0, %v972
        %v1181 = vsub.f32 0.0, %v973
        %v1182 = vsub.f32 0.0, %v974
        %v1183 = vsub.f32 0.0, %v975
        %v1184 = vsub.f32 0.0, %v976
        %v1185 = vsub.f32 0.0, %v977
        %v1186 = vsub.f32 0.0, %v978
        %v1187 = vsub.f32 0.0, %v979
        %v1188 = vmul.f32 %v1172, 1111.1111
        %v1189 = vmul.f32 %v1173, 1111.1111
        %v1190 = vmul.f32 %v1174, 1111.1111
        %v1191 = vmul.f32 %v1175, 1111.1111
        %v1192 = vmul.f32 %v1176, 1111.1111
        %v1193 = vmul.f32 %v1177, 1111.1111
        %v1194 = vmul.f32 %v1178, 1111.1111
        %v1195 = vmul.f32 %v1179, 1111.1111
        %v1196 = vmul.f32 %v1180, 1111.1111
        %v1197 = vmul.f32 %v1181, 1111.1111
        %v1198 = vmul.f32 %v1182, 1111.1111
        %v1199 = vmul.f32 %v1183, 1111.1111
        %v1200 = vmul.f32 %v1184, 1111.1111
        %v1201 = vmul.f32 %v1185, 1111.1111
        %v1202 = vmul.f32 %v1186, 1111.1111
        %v1203 = vmul.f32 %v1187, 1111.1111
        %v1204 = vmul.f32 %v1188, 1.442695
        %v1205 = vpow.pop %v1204
        %v1206 = vmul.f32 %v1189, 1.442695
        %v1207 = vpow.pop %v1206
        %v1208 = vmul.f32 %v1190, 1.442695
        %v1209 = vpow.pop %v1208
        %v1210 = vmul.f32 %v1191, 1.442695
        %v1211 = vpow.pop %v1210
        %v1212 = vmul.f32 %v1192, 1.442695
        %v1213 = vpow.pop %v1212
        %v1214 = vmul.f32 %v1193, 1.442695
        %v1215 = vpow.pop %v1214
        %v1216 = vmul.f32 %v1194, 1.442695
        %v1217 = vpow.pop %v1216
        %v1218 = vmul.f32 %v1195, 1.442695
        %v1219 = vpow.pop %v1218
        %v1220 = vmul.f32 %v1196, 1.442695
        %v1221 = vpow.pop %v1220
        %v1222 = vmul.f32 %v1197, 1.442695
        %v1223 = vpow.pop %v1222
        %v1224 = vmul.f32 %v1198, 1.442695
        %v1225 = vpow.pop %v1224
        %v1226 = vmul.f32 %v1199, 1.442695
        %v1227 = vpow.pop %v1226
        %v1228 = vmul.f32 %v1200, 1.442695
        %v1229 = vpow.pop %v1228
        %v1230 = vmul.f32 %v1201, 1.442695
        %v1231 = vpow.pop %v1230
        %v1232 = vmul.f32 %v1202, 1.442695
        %v1233 = vpow.pop %v1232
        %v1234 = vmul.f32 %v1203, 1.442695
        %v1235 = vpow.pop %v1234
        %v1236 = vsub.f32 0.07, %v991
        %v1237 = vsub.f32 0.07, %v1003
        %v1238 = vsub.f32 0.07, %v1015
        %v1239 = vsub.f32 0.07, %v1027
        %v1240 = vsub.f32 0.07, %v1039
        %v1241 = vsub.f32 0.07, %v1051
        %v1242 = vsub.f32 0.07, %v1063
        %v1243 = vsub.f32 0.07, %v1075
        %v1244 = vsub.f32 0.07, %v1087
        %v1245 = vsub.f32 0.07, %v1099
        %v1246 = vsub.f32 0.07, %v1111
        %v1247 = vsub.f32 0.07, %v1123
        %v1248 = vsub.f32 0.07, %v1135
        %v1249 = vsub.f32 0.07, %v1147
        %v1250 = vsub.f32 0.07, %v1159
        %v1251 = vsub.f32 0.07, %v1171
        %v1252 = vmul.f32 %v1236, %v1205
        %v1253 = vmul.f32 %v1237, %v1207
        %v1254 = vmul.f32 %v1238, %v1209
        %v1255 = vmul.f32 %v1239, %v1211
        %v1256 = vmul.f32 %v1240, %v1213
        %v1257 = vmul.f32 %v1241, %v1215
        %v1258 = vmul.f32 %v1242, %v1217
        %v1259 = vmul.f32 %v1243, %v1219
        %v1260 = vmul.f32 %v1244, %v1221
        %v1261 = vmul.f32 %v1245, %v1223
        %v1262 = vmul.f32 %v1246, %v1225
        %v1263 = vmul.f32 %v1247, %v1227
        %v1264 = vmul.f32 %v1248, %v1229
        %v1265 = vmul.f32 %v1249, %v1231
        %v1266 = vmul.f32 %v1250, %v1233
        %v1267 = vmul.f32 %v1251, %v1235
        %v1268 = vadd.f32 %v1252, 0.0
        %v1269 = vadd.f32 %v1253, 0.0
        %v1270 = vadd.f32 %v1254, 0.0
        %v1271 = vadd.f32 %v1255, 0.0
        %v1272 = vadd.f32 %v1256, 0.0
        %v1273 = vadd.f32 %v1257, 0.0
        %v1274 = vadd.f32 %v1258, 0.0
        %v1275 = vadd.f32 %v1259, 0.0
        %v1276 = vadd.f32 %v1260, 0.0
        %v1277 = vadd.f32 %v1261, 0.0
        %v1278 = vadd.f32 %v1262, 0.0
        %v1279 = vadd.f32 %v1263, 0.0
        %v1280 = vadd.f32 %v1264, 0.0
        %v1281 = vadd.f32 %v1265, 0.0
        %v1282 = vadd.f32 %v1266, 0.0
        %v1283 = vadd.f32 %v1267, 0.0
        %v1284 = vsel %vm836, 2.0, 1.0
        %v1285 = vsel %vm837, 2.0, 1.0
        %v1286 = vsel %vm838, 2.0, 1.0
        %v1287 = vsel %vm839, 2.0, 1.0
        %v1288 = vsel %vm840, 2.0, 1.0
        %v1289 = vsel %vm841, 2.0, 1.0
        %v1290 = vsel %vm842, 2.0, 1.0
        %v1291 = vsel %vm843, 2.0, 1.0
        %v1292 = vsel %vm844, 2.0, 1.0
        %v1293 = vsel %vm845, 2.0, 1.0
        %v1294 = vsel %vm846, 2.0, 1.0
        %v1295 = vsel %vm847, 2.0, 1.0
        %v1296 = vsel %vm848, 2.0, 1.0
        %v1297 = vsel %vm849, 2.0, 1.0
        %v1298 = vsel %vm850, 2.0, 1.0
        %v1299 = vsel %vm851, 2.0, 1.0
        %vm1300 = vcmp.eq.f32.partialorder %v692, %v964
        %vm1301 = vcmp.eq.f32.partialorder %v693, %v964
        %vm1302 = vcmp.eq.f32.partialorder %v694, %v965
        %vm1303 = vcmp.eq.f32.partialorder %v695, %v965
        %vm1304 = vcmp.eq.f32.partialorder %v696, %v966
        %vm1305 = vcmp.eq.f32.partialorder %v697, %v966
        %vm1306 = vcmp.eq.f32.partialorder %v698, %v967
        %vm1307 = vcmp.eq.f32.partialorder %v699, %v967
        %vm1308 = vcmp.eq.f32.partialorder %v700, %v968
        %vm1309 = vcmp.eq.f32.partialorder %v701, %v968
        %vm1310 = vcmp.eq.f32.partialorder %v702, %v969
        %vm1311 = vcmp.eq.f32.partialorder %v703, %v969
        %vm1312 = vcmp.eq.f32.partialorder %v704, %v970
        %vm1313 = vcmp.eq.f32.partialorder %v705, %v970
        %vm1314 = vcmp.eq.f32.partialorder %v706, %v971
        %vm1315 = vcmp.eq.f32.partialorder %v707, %v971
        %vm1316 = vcmp.eq.f32.partialorder %v708, %v972
        %vm1317 = vcmp.eq.f32.partialorder %v709, %v972
        %vm1318 = vcmp.eq.f32.partialorder %v710, %v973
        %vm1319 = vcmp.eq.f32.partialorder %v711, %v973
        %vm1320 = vcmp.eq.f32.partialorder %v712, %v974
        %vm1321 = vcmp.eq.f32.partialorder %v713, %v974
        %vm1322 = vcmp.eq.f32.partialorder %v714, %v975
        %vm1323 = vcmp.eq.f32.partialorder %v715, %v975
        %vm1324 = vcmp.eq.f32.partialorder %v716, %v976
        %vm1325 = vcmp.eq.f32.partialorder %v717, %v976
        %vm1326 = vcmp.eq.f32.partialorder %v718, %v977
        %vm1327 = vcmp.eq.f32.partialorder %v719, %v977
        %vm1328 = vcmp.eq.f32.partialorder %v720, %v978
        %vm1329 = vcmp.eq.f32.partialorder %v721, %v978
        %vm1330 = vcmp.eq.f32.partialorder %v722, %v979
        %vm1331 = vcmp.eq.f32.partialorder %v723, %v979
        %v1332 = vsel %vm1300, 1.0, 0.0
        %v1333 = vsel %vm1301, 1.0, 0.0
        %v1334 = vsel %vm1302, 1.0, 0.0
        %v1335 = vsel %vm1303, 1.0, 0.0
        %v1336 = vsel %vm1304, 1.0, 0.0
        %v1337 = vsel %vm1305, 1.0, 0.0
        %v1338 = vsel %vm1306, 1.0, 0.0
        %v1339 = vsel %vm1307, 1.0, 0.0
        %v1340 = vsel %vm1308, 1.0, 0.0
        %v1341 = vsel %vm1309, 1.0, 0.0
        %v1342 = vsel %vm1310, 1.0, 0.0
        %v1343 = vsel %vm1311, 1.0, 0.0
        %v1344 = vsel %vm1312, 1.0, 0.0
        %v1345 = vsel %vm1313, 1.0, 0.0
        %v1346 = vsel %vm1314, 1.0, 0.0
        %v1347 = vsel %vm1315, 1.0, 0.0
        %v1348 = vsel %vm1316, 1.0, 0.0
        %v1349 = vsel %vm1317, 1.0, 0.0
        %v1350 = vsel %vm1318, 1.0, 0.0
        %v1351 = vsel %vm1319, 1.0, 0.0
        %v1352 = vsel %vm1320, 1.0, 0.0
        %v1353 = vsel %vm1321, 1.0, 0.0
        %v1354 = vsel %vm1322, 1.0, 0.0
        %v1355 = vsel %vm1323, 1.0, 0.0
        %v1356 = vsel %vm1324, 1.0, 0.0
        %v1357 = vsel %vm1325, 1.0, 0.0
        %v1358 = vsel %vm1326, 1.0, 0.0
        %v1359 = vsel %vm1327, 1.0, 0.0
        %v1360 = vsel %vm1328, 1.0, 0.0
        %v1361 = vsel %vm1329, 1.0, 0.0
        %v1362 = vsel %vm1330, 1.0, 0.0
        %v1363 = vsel %vm1331, 1.0, 0.0
        %v1364 = vadd.f32 %v1332, %v1333
        %1365 = vadd.xlane.f32.xlu0 %v1364
        %v1366 = vpop.xlane.xlu0 %1365
        %v1367 = vadd.f32 %v1334, %v1335
        %1368 = vadd.xlane.f32.xlu0 %v1367
        %v1369 = vpop.xlane.xlu0 %1368
        %v1370 = vadd.f32 %v1336, %v1337
        %1371 = vadd.xlane.f32.xlu0 %v1370
        %v1372 = vpop.xlane.xlu0 %1371
        %v1373 = vadd.f32 %v1338, %v1339
        %1374 = vadd.xlane.f32.xlu0 %v1373
        %v1375 = vpop.xlane.xlu0 %1374
        %v1376 = vadd.f32 %v1340, %v1341
        %1377 = vadd.xlane.f32.xlu0 %v1376
        %v1378 = vpop.xlane.xlu0 %1377
        %v1379 = vadd.f32 %v1342, %v1343
        %1380 = vadd.xlane.f32.xlu0 %v1379
        %v1381 = vpop.xlane.xlu0 %1380
        %v1382 = vadd.f32 %v1344, %v1345
        %1383 = vadd.xlane.f32.xlu0 %v1382
        %v1384 = vpop.xlane.xlu0 %1383
        %v1385 = vadd.f32 %v1346, %v1347
        %1386 = vadd.xlane.f32.xlu0 %v1385
        %v1387 = vpop.xlane.xlu0 %1386
        %v1388 = vadd.f32 %v1348, %v1349
        %1389 = vadd.xlane.f32.xlu0 %v1388
        %v1390 = vpop.xlane.xlu0 %1389
        %v1391 = vadd.f32 %v1350, %v1351
        %1392 = vadd.xlane.f32.xlu0 %v1391
        %v1393 = vpop.xlane.xlu0 %1392
        %v1394 = vadd.f32 %v1352, %v1353
        %1395 = vadd.xlane.f32.xlu0 %v1394
        %v1396 = vpop.xlane.xlu0 %1395
        %v1397 = vadd.f32 %v1354, %v1355
        %1398 = vadd.xlane.f32.xlu0 %v1397
        %v1399 = vpop.xlane.xlu0 %1398
        %v1400 = vadd.f32 %v1356, %v1357
        %1401 = vadd.xlane.f32.xlu0 %v1400
        %v1402 = vpop.xlane.xlu0 %1401
        %v1403 = vadd.f32 %v1358, %v1359
        %1404 = vadd.xlane.f32.xlu0 %v1403
        %v1405 = vpop.xlane.xlu0 %1404
        %v1406 = vadd.f32 %v1360, %v1361
        %1407 = vadd.xlane.f32.xlu0 %v1406
        %v1408 = vpop.xlane.xlu0 %1407
        %v1409 = vadd.f32 %v1362, %v1363
        %1410 = vadd.xlane.f32.xlu0 %v1409
        %v1411 = vpop.xlane.xlu0 %1410
        %vm1412 = vcmp.gt.f32.partialorder %v1366, %v1284
        %vm1413 = vcmp.gt.f32.partialorder %v1369, %v1285
        %vm1414 = vcmp.gt.f32.partialorder %v1372, %v1286
        %vm1415 = vcmp.gt.f32.partialorder %v1375, %v1287
        %vm1416 = vcmp.gt.f32.partialorder %v1378, %v1288
        %vm1417 = vcmp.gt.f32.partialorder %v1381, %v1289
        %vm1418 = vcmp.gt.f32.partialorder %v1384, %v1290
        %vm1419 = vcmp.gt.f32.partialorder %v1387, %v1291
        %vm1420 = vcmp.gt.f32.partialorder %v1390, %v1292
        %vm1421 = vcmp.gt.f32.partialorder %v1393, %v1293
        %vm1422 = vcmp.gt.f32.partialorder %v1396, %v1294
        %vm1423 = vcmp.gt.f32.partialorder %v1399, %v1295
        %vm1424 = vcmp.gt.f32.partialorder %v1402, %v1296
        %vm1425 = vcmp.gt.f32.partialorder %v1405, %v1297
        %vm1426 = vcmp.gt.f32.partialorder %v1408, %v1298
        %vm1427 = vcmp.gt.f32.partialorder %v1411, %v1299
        %vm1428 = vcmp.gt.f32.partialorder %v692, %v964
        %vm1429 = vcmp.gt.f32.partialorder %v693, %v964
        %vm1430 = vcmp.gt.f32.partialorder %v694, %v965
        %vm1431 = vcmp.gt.f32.partialorder %v695, %v965
        %vm1432 = vcmp.gt.f32.partialorder %v696, %v966
        %vm1433 = vcmp.gt.f32.partialorder %v697, %v966
        %vm1434 = vcmp.gt.f32.partialorder %v698, %v967
        %vm1435 = vcmp.gt.f32.partialorder %v699, %v967
        %vm1436 = vcmp.gt.f32.partialorder %v700, %v968
        %vm1437 = vcmp.gt.f32.partialorder %v701, %v968
        %vm1438 = vcmp.gt.f32.partialorder %v702, %v969
        %vm1439 = vcmp.gt.f32.partialorder %v703, %v969
        %vm1440 = vcmp.gt.f32.partialorder %v704, %v970
        %vm1441 = vcmp.gt.f32.partialorder %v705, %v970
        %vm1442 = vcmp.gt.f32.partialorder %v706, %v971
        %vm1443 = vcmp.gt.f32.partialorder %v707, %v971
        %vm1444 = vcmp.gt.f32.partialorder %v708, %v972
        %vm1445 = vcmp.gt.f32.partialorder %v709, %v972
        %vm1446 = vcmp.gt.f32.partialorder %v710, %v973
        %vm1447 = vcmp.gt.f32.partialorder %v711, %v973
        %vm1448 = vcmp.gt.f32.partialorder %v712, %v974
        %vm1449 = vcmp.gt.f32.partialorder %v713, %v974
        %vm1450 = vcmp.gt.f32.partialorder %v714, %v975
        %vm1451 = vcmp.gt.f32.partialorder %v715, %v975
        %vm1452 = vcmp.gt.f32.partialorder %v716, %v976
        %vm1453 = vcmp.gt.f32.partialorder %v717, %v976
        %vm1454 = vcmp.gt.f32.partialorder %v718, %v977
        %vm1455 = vcmp.gt.f32.partialorder %v719, %v977
        %vm1456 = vcmp.gt.f32.partialorder %v720, %v978
        %vm1457 = vcmp.gt.f32.partialorder %v721, %v978
        %vm1458 = vcmp.gt.f32.partialorder %v722, %v979
        %vm1459 = vcmp.gt.f32.partialorder %v723, %v979
        %v1460 = vsel %vm1428, %v692, inf
        %v1461 = vsel %vm1429, %v693, inf
        %v1462 = vsel %vm1430, %v694, inf
        %v1463 = vsel %vm1431, %v695, inf
        %v1464 = vsel %vm1432, %v696, inf
        %v1465 = vsel %vm1433, %v697, inf
        %v1466 = vsel %vm1434, %v698, inf
        %v1467 = vsel %vm1435, %v699, inf
        %v1468 = vsel %vm1436, %v700, inf
        %v1469 = vsel %vm1437, %v701, inf
        %v1470 = vsel %vm1438, %v702, inf
        %v1471 = vsel %vm1439, %v703, inf
        %v1472 = vsel %vm1440, %v704, inf
        %v1473 = vsel %vm1441, %v705, inf
        %v1474 = vsel %vm1442, %v706, inf
        %v1475 = vsel %vm1443, %v707, inf
        %v1476 = vsel %vm1444, %v708, inf
        %v1477 = vsel %vm1445, %v709, inf
        %v1478 = vsel %vm1446, %v710, inf
        %v1479 = vsel %vm1447, %v711, inf
        %v1480 = vsel %vm1448, %v712, inf
        %v1481 = vsel %vm1449, %v713, inf
        %v1482 = vsel %vm1450, %v714, inf
        %v1483 = vsel %vm1451, %v715, inf
        %v1484 = vsel %vm1452, %v716, inf
        %v1485 = vsel %vm1453, %v717, inf
        %v1486 = vsel %vm1454, %v718, inf
        %v1487 = vsel %vm1455, %v719, inf
        %v1488 = vsel %vm1456, %v720, inf
        %v1489 = vsel %vm1457, %v721, inf
        %v1490 = vsel %vm1458, %v722, inf
        %v1491 = vsel %vm1459, %v723, inf
        %v1492 = vmin.f32 %v1460, %v1461
        %1493 = vmin.xlane.f32.xlu0 %v1492
        %v1494 = vpop.xlane.xlu0 %1493
        %v1495 = vmin.f32 %v1462, %v1463
        %1496 = vmin.xlane.f32.xlu0 %v1495
        %v1497 = vpop.xlane.xlu0 %1496
        %v1498 = vmin.f32 %v1464, %v1465
        %1499 = vmin.xlane.f32.xlu0 %v1498
        %v1500 = vpop.xlane.xlu0 %1499
        %v1501 = vmin.f32 %v1466, %v1467
        %1502 = vmin.xlane.f32.xlu0 %v1501
        %v1503 = vpop.xlane.xlu0 %1502
        %v1504 = vmin.f32 %v1468, %v1469
        %1505 = vmin.xlane.f32.xlu0 %v1504
        %v1506 = vpop.xlane.xlu0 %1505
        %v1507 = vmin.f32 %v1470, %v1471
        %1508 = vmin.xlane.f32.xlu0 %v1507
        %v1509 = vpop.xlane.xlu0 %1508
        %v1510 = vmin.f32 %v1472, %v1473
        %1511 = vmin.xlane.f32.xlu0 %v1510
        %v1512 = vpop.xlane.xlu0 %1511
        %v1513 = vmin.f32 %v1474, %v1475
        %1514 = vmin.xlane.f32.xlu0 %v1513
        %v1515 = vpop.xlane.xlu0 %1514
        %v1516 = vmin.f32 %v1476, %v1477
        %1517 = vmin.xlane.f32.xlu0 %v1516
        %v1518 = vpop.xlane.xlu0 %1517
        %v1519 = vmin.f32 %v1478, %v1479
        %1520 = vmin.xlane.f32.xlu0 %v1519
        %v1521 = vpop.xlane.xlu0 %1520
        %v1522 = vmin.f32 %v1480, %v1481
        %1523 = vmin.xlane.f32.xlu0 %v1522
        %v1524 = vpop.xlane.xlu0 %1523
        %v1525 = vmin.f32 %v1482, %v1483
        %1526 = vmin.xlane.f32.xlu0 %v1525
        %v1527 = vpop.xlane.xlu0 %1526
        %v1528 = vmin.f32 %v1484, %v1485
        %1529 = vmin.xlane.f32.xlu0 %v1528
        %v1530 = vpop.xlane.xlu0 %1529
        %v1531 = vmin.f32 %v1486, %v1487
        %1532 = vmin.xlane.f32.xlu0 %v1531
        %v1533 = vpop.xlane.xlu0 %1532
        %v1534 = vmin.f32 %v1488, %v1489
        %1535 = vmin.xlane.f32.xlu0 %v1534
        %v1536 = vpop.xlane.xlu0 %1535
        %v1537 = vmin.f32 %v1490, %v1491
        %1538 = vmin.xlane.f32.xlu0 %v1537
        %v1539 = vpop.xlane.xlu0 %1538
        %v1540 = vsel %vm1412, %v964, %v1494
        %v1541 = vsel %vm1413, %v965, %v1497
        %v1542 = vsel %vm1414, %v966, %v1500
        %v1543 = vsel %vm1415, %v967, %v1503
        %v1544 = vsel %vm1416, %v968, %v1506
        %v1545 = vsel %vm1417, %v969, %v1509
        %v1546 = vsel %vm1418, %v970, %v1512
        %v1547 = vsel %vm1419, %v971, %v1515
        %v1548 = vsel %vm1420, %v972, %v1518
        %v1549 = vsel %vm1421, %v973, %v1521
        %v1550 = vsel %vm1422, %v974, %v1524
        %v1551 = vsel %vm1423, %v975, %v1527
        %v1552 = vsel %vm1424, %v976, %v1530
        %v1553 = vsel %vm1425, %v977, %v1533
        %v1554 = vsel %vm1426, %v978, %v1536
        %v1555 = vsel %vm1427, %v979, %v1539
        %v1556 = vrsqrt.pop %v1540
        %v1557 = vmul.f32 %v1556, %v1540
        %v1558 = vmul.f32 %v1557, %v1556
        %v1559 = vmul.f32 0.5, %v1558
        %v1560 = vsub.f32 1.5, %v1559
        %v1561 = vmul.f32 %v1556, %v1560
        %v1562 = vmul.f32 %v1540, %v1561
        %vm1563 = vcmp.eq.f32.partialorder %v1540, inf
        %v1564 = vsel %vm1563, %v1540, %v1562
        %vm1565 = vcmp.eq.f32.partialorder %v1540, 0.0
        %v1566 = vand.u32 %v1540, 2147483648
        %v1567 = vsel %vm1565, %v1566, %v1564
        %v1568 = vrsqrt.pop %v1541
        %v1569 = vmul.f32 %v1568, %v1541
        %v1570 = vmul.f32 %v1569, %v1568
        %v1571 = vmul.f32 0.5, %v1570
        %v1572 = vsub.f32 1.5, %v1571
        %v1573 = vmul.f32 %v1568, %v1572
        %v1574 = vmul.f32 %v1541, %v1573
        %vm1575 = vcmp.eq.f32.partialorder %v1541, inf
        %v1576 = vsel %vm1575, %v1541, %v1574
        %vm1577 = vcmp.eq.f32.partialorder %v1541, 0.0
        %v1578 = vand.u32 %v1541, 2147483648
        %v1579 = vsel %vm1577, %v1578, %v1576
        %v1580 = vrsqrt.pop %v1542
        %v1581 = vmul.f32 %v1580, %v1542
        %v1582 = vmul.f32 %v1581, %v1580
        %v1583 = vmul.f32 0.5, %v1582
        %v1584 = vsub.f32 1.5, %v1583
        %v1585 = vmul.f32 %v1580, %v1584
        %v1586 = vmul.f32 %v1542, %v1585
        %vm1587 = vcmp.eq.f32.partialorder %v1542, inf
        %v1588 = vsel %vm1587, %v1542, %v1586
        %vm1589 = vcmp.eq.f32.partialorder %v1542, 0.0
        %v1590 = vand.u32 %v1542, 2147483648
        %v1591 = vsel %vm1589, %v1590, %v1588
        %v1592 = vrsqrt.pop %v1543
        %v1593 = vmul.f32 %v1592, %v1543
        %v1594 = vmul.f32 %v1593, %v1592
        %v1595 = vmul.f32 0.5, %v1594
        %v1596 = vsub.f32 1.5, %v1595
        %v1597 = vmul.f32 %v1592, %v1596
        %v1598 = vmul.f32 %v1543, %v1597
        %vm1599 = vcmp.eq.f32.partialorder %v1543, inf
        %v1600 = vsel %vm1599, %v1543, %v1598
        %vm1601 = vcmp.eq.f32.partialorder %v1543, 0.0
        %v1602 = vand.u32 %v1543, 2147483648
        %v1603 = vsel %vm1601, %v1602, %v1600
        %v1604 = vrsqrt.pop %v1544
        %v1605 = vmul.f32 %v1604, %v1544
        %v1606 = vmul.f32 %v1605, %v1604
        %v1607 = vmul.f32 0.5, %v1606
        %v1608 = vsub.f32 1.5, %v1607
        %v1609 = vmul.f32 %v1604, %v1608
        %v1610 = vmul.f32 %v1544, %v1609
        %vm1611 = vcmp.eq.f32.partialorder %v1544, inf
        %v1612 = vsel %vm1611, %v1544, %v1610
        %vm1613 = vcmp.eq.f32.partialorder %v1544, 0.0
        %v1614 = vand.u32 %v1544, 2147483648
        %v1615 = vsel %vm1613, %v1614, %v1612
        %v1616 = vrsqrt.pop %v1545
        %v1617 = vmul.f32 %v1616, %v1545
        %v1618 = vmul.f32 %v1617, %v1616
        %v1619 = vmul.f32 0.5, %v1618
        %v1620 = vsub.f32 1.5, %v1619
        %v1621 = vmul.f32 %v1616, %v1620
        %v1622 = vmul.f32 %v1545, %v1621
        %vm1623 = vcmp.eq.f32.partialorder %v1545, inf
        %v1624 = vsel %vm1623, %v1545, %v1622
        %vm1625 = vcmp.eq.f32.partialorder %v1545, 0.0
        %v1626 = vand.u32 %v1545, 2147483648
        %v1627 = vsel %vm1625, %v1626, %v1624
        %v1628 = vrsqrt.pop %v1546
        %v1629 = vmul.f32 %v1628, %v1546
        %v1630 = vmul.f32 %v1629, %v1628
        %v1631 = vmul.f32 0.5, %v1630
        %v1632 = vsub.f32 1.5, %v1631
        %v1633 = vmul.f32 %v1628, %v1632
        %v1634 = vmul.f32 %v1546, %v1633
        %vm1635 = vcmp.eq.f32.partialorder %v1546, inf
        %v1636 = vsel %vm1635, %v1546, %v1634
        %vm1637 = vcmp.eq.f32.partialorder %v1546, 0.0
        %v1638 = vand.u32 %v1546, 2147483648
        %v1639 = vsel %vm1637, %v1638, %v1636
        %v1640 = vrsqrt.pop %v1547
        %v1641 = vmul.f32 %v1640, %v1547
        %v1642 = vmul.f32 %v1641, %v1640
        %v1643 = vmul.f32 0.5, %v1642
        %v1644 = vsub.f32 1.5, %v1643
        %v1645 = vmul.f32 %v1640, %v1644
        %v1646 = vmul.f32 %v1547, %v1645
        %vm1647 = vcmp.eq.f32.partialorder %v1547, inf
        %v1648 = vsel %vm1647, %v1547, %v1646
        %vm1649 = vcmp.eq.f32.partialorder %v1547, 0.0
        %v1650 = vand.u32 %v1547, 2147483648
        %v1651 = vsel %vm1649, %v1650, %v1648
        %v1652 = vrsqrt.pop %v1548
        %v1653 = vmul.f32 %v1652, %v1548
        %v1654 = vmul.f32 %v1653, %v1652
        %v1655 = vmul.f32 0.5, %v1654
        %v1656 = vsub.f32 1.5, %v1655
        %v1657 = vmul.f32 %v1652, %v1656
        %v1658 = vmul.f32 %v1548, %v1657
        %vm1659 = vcmp.eq.f32.partialorder %v1548, inf
        %v1660 = vsel %vm1659, %v1548, %v1658
        %vm1661 = vcmp.eq.f32.partialorder %v1548, 0.0
        %v1662 = vand.u32 %v1548, 2147483648
        %v1663 = vsel %vm1661, %v1662, %v1660
        %v1664 = vrsqrt.pop %v1549
        %v1665 = vmul.f32 %v1664, %v1549
        %v1666 = vmul.f32 %v1665, %v1664
        %v1667 = vmul.f32 0.5, %v1666
        %v1668 = vsub.f32 1.5, %v1667
        %v1669 = vmul.f32 %v1664, %v1668
        %v1670 = vmul.f32 %v1549, %v1669
        %vm1671 = vcmp.eq.f32.partialorder %v1549, inf
        %v1672 = vsel %vm1671, %v1549, %v1670
        %vm1673 = vcmp.eq.f32.partialorder %v1549, 0.0
        %v1674 = vand.u32 %v1549, 2147483648
        %v1675 = vsel %vm1673, %v1674, %v1672
        %v1676 = vrsqrt.pop %v1550
        %v1677 = vmul.f32 %v1676, %v1550
        %v1678 = vmul.f32 %v1677, %v1676
        %v1679 = vmul.f32 0.5, %v1678
        %v1680 = vsub.f32 1.5, %v1679
        %v1681 = vmul.f32 %v1676, %v1680
        %v1682 = vmul.f32 %v1550, %v1681
        %vm1683 = vcmp.eq.f32.partialorder %v1550, inf
        %v1684 = vsel %vm1683, %v1550, %v1682
        %vm1685 = vcmp.eq.f32.partialorder %v1550, 0.0
        %v1686 = vand.u32 %v1550, 2147483648
        %v1687 = vsel %vm1685, %v1686, %v1684
        %v1688 = vrsqrt.pop %v1551
        %v1689 = vmul.f32 %v1688, %v1551
        %v1690 = vmul.f32 %v1689, %v1688
        %v1691 = vmul.f32 0.5, %v1690
        %v1692 = vsub.f32 1.5, %v1691
        %v1693 = vmul.f32 %v1688, %v1692
        %v1694 = vmul.f32 %v1551, %v1693
        %vm1695 = vcmp.eq.f32.partialorder %v1551, inf
        %v1696 = vsel %vm1695, %v1551, %v1694
        %vm1697 = vcmp.eq.f32.partialorder %v1551, 0.0
        %v1698 = vand.u32 %v1551, 2147483648
        %v1699 = vsel %vm1697, %v1698, %v1696
        %v1700 = vrsqrt.pop %v1552
        %v1701 = vmul.f32 %v1700, %v1552
        %v1702 = vmul.f32 %v1701, %v1700
        %v1703 = vmul.f32 0.5, %v1702
        %v1704 = vsub.f32 1.5, %v1703
        %v1705 = vmul.f32 %v1700, %v1704
        %v1706 = vmul.f32 %v1552, %v1705
        %vm1707 = vcmp.eq.f32.partialorder %v1552, inf
        %v1708 = vsel %vm1707, %v1552, %v1706
        %vm1709 = vcmp.eq.f32.partialorder %v1552, 0.0
        %v1710 = vand.u32 %v1552, 2147483648
        %v1711 = vsel %vm1709, %v1710, %v1708
        %v1712 = vrsqrt.pop %v1553
        %v1713 = vmul.f32 %v1712, %v1553
        %v1714 = vmul.f32 %v1713, %v1712
        %v1715 = vmul.f32 0.5, %v1714
        %v1716 = vsub.f32 1.5, %v1715
        %v1717 = vmul.f32 %v1712, %v1716
        %v1718 = vmul.f32 %v1553, %v1717
        %vm1719 = vcmp.eq.f32.partialorder %v1553, inf
        %v1720 = vsel %vm1719, %v1553, %v1718
        %vm1721 = vcmp.eq.f32.partialorder %v1553, 0.0
        %v1722 = vand.u32 %v1553, 2147483648
        %v1723 = vsel %vm1721, %v1722, %v1720
        %v1724 = vrsqrt.pop %v1554
        %v1725 = vmul.f32 %v1724, %v1554
        %v1726 = vmul.f32 %v1725, %v1724
        %v1727 = vmul.f32 0.5, %v1726
        %v1728 = vsub.f32 1.5, %v1727
        %v1729 = vmul.f32 %v1724, %v1728
        %v1730 = vmul.f32 %v1554, %v1729
        %vm1731 = vcmp.eq.f32.partialorder %v1554, inf
        %v1732 = vsel %vm1731, %v1554, %v1730
        %vm1733 = vcmp.eq.f32.partialorder %v1554, 0.0
        %v1734 = vand.u32 %v1554, 2147483648
        %v1735 = vsel %vm1733, %v1734, %v1732
        %v1736 = vrsqrt.pop %v1555
        %v1737 = vmul.f32 %v1736, %v1555
        %v1738 = vmul.f32 %v1737, %v1736
        %v1739 = vmul.f32 0.5, %v1738
        %v1740 = vsub.f32 1.5, %v1739
        %v1741 = vmul.f32 %v1736, %v1740
        %v1742 = vmul.f32 %v1555, %v1741
        %vm1743 = vcmp.eq.f32.partialorder %v1555, inf
        %v1744 = vsel %vm1743, %v1555, %v1742
        %vm1745 = vcmp.eq.f32.partialorder %v1555, 0.0
        %v1746 = vand.u32 %v1555, 2147483648
        %v1747 = vsel %vm1745, %v1746, %v1744
        %v1748 = vsub.f32 0.0, %v1540
        %v1749 = vsub.f32 0.0, %v1541
        %v1750 = vsub.f32 0.0, %v1542
        %v1751 = vsub.f32 0.0, %v1543
        %v1752 = vsub.f32 0.0, %v1544
        %v1753 = vsub.f32 0.0, %v1545
        %v1754 = vsub.f32 0.0, %v1546
        %v1755 = vsub.f32 0.0, %v1547
        %v1756 = vsub.f32 0.0, %v1548
        %v1757 = vsub.f32 0.0, %v1549
        %v1758 = vsub.f32 0.0, %v1550
        %v1759 = vsub.f32 0.0, %v1551
        %v1760 = vsub.f32 0.0, %v1552
        %v1761 = vsub.f32 0.0, %v1553
        %v1762 = vsub.f32 0.0, %v1554
        %v1763 = vsub.f32 0.0, %v1555
        %v1764 = vmul.f32 %v1748, 1111.1111
        %v1765 = vmul.f32 %v1749, 1111.1111
        %v1766 = vmul.f32 %v1750, 1111.1111
        %v1767 = vmul.f32 %v1751, 1111.1111
        %v1768 = vmul.f32 %v1752, 1111.1111
        %v1769 = vmul.f32 %v1753, 1111.1111
        %v1770 = vmul.f32 %v1754, 1111.1111
        %v1771 = vmul.f32 %v1755, 1111.1111
        %v1772 = vmul.f32 %v1756, 1111.1111
        %v1773 = vmul.f32 %v1757, 1111.1111
        %v1774 = vmul.f32 %v1758, 1111.1111
        %v1775 = vmul.f32 %v1759, 1111.1111
        %v1776 = vmul.f32 %v1760, 1111.1111
        %v1777 = vmul.f32 %v1761, 1111.1111
        %v1778 = vmul.f32 %v1762, 1111.1111
        %v1779 = vmul.f32 %v1763, 1111.1111
        %v1780 = vmul.f32 %v1764, 1.442695
        %v1781 = vpow.pop %v1780
        %v1782 = vmul.f32 %v1765, 1.442695
        %v1783 = vpow.pop %v1782
        %v1784 = vmul.f32 %v1766, 1.442695
        %v1785 = vpow.pop %v1784
        %v1786 = vmul.f32 %v1767, 1.442695
        %v1787 = vpow.pop %v1786
        %v1788 = vmul.f32 %v1768, 1.442695
        %v1789 = vpow.pop %v1788
        %v1790 = vmul.f32 %v1769, 1.442695
        %v1791 = vpow.pop %v1790
        %v1792 = vmul.f32 %v1770, 1.442695
        %v1793 = vpow.pop %v1792
        %v1794 = vmul.f32 %v1771, 1.442695
        %v1795 = vpow.pop %v1794
        %v1796 = vmul.f32 %v1772, 1.442695
        %v1797 = vpow.pop %v1796
        %v1798 = vmul.f32 %v1773, 1.442695
        %v1799 = vpow.pop %v1798
        %v1800 = vmul.f32 %v1774, 1.442695
        %v1801 = vpow.pop %v1800
        %v1802 = vmul.f32 %v1775, 1.442695
        %v1803 = vpow.pop %v1802
        %v1804 = vmul.f32 %v1776, 1.442695
        %v1805 = vpow.pop %v1804
        %v1806 = vmul.f32 %v1777, 1.442695
        %v1807 = vpow.pop %v1806
        %v1808 = vmul.f32 %v1778, 1.442695
        %v1809 = vpow.pop %v1808
        %v1810 = vmul.f32 %v1779, 1.442695
        %v1811 = vpow.pop %v1810
        %v1812 = vsub.f32 0.07, %v1567
        %v1813 = vsub.f32 0.07, %v1579
        %v1814 = vsub.f32 0.07, %v1591
        %v1815 = vsub.f32 0.07, %v1603
        %v1816 = vsub.f32 0.07, %v1615
        %v1817 = vsub.f32 0.07, %v1627
        %v1818 = vsub.f32 0.07, %v1639
        %v1819 = vsub.f32 0.07, %v1651
        %v1820 = vsub.f32 0.07, %v1663
        %v1821 = vsub.f32 0.07, %v1675
        %v1822 = vsub.f32 0.07, %v1687
        %v1823 = vsub.f32 0.07, %v1699
        %v1824 = vsub.f32 0.07, %v1711
        %v1825 = vsub.f32 0.07, %v1723
        %v1826 = vsub.f32 0.07, %v1735
        %v1827 = vsub.f32 0.07, %v1747
        %v1828 = vmul.f32 %v1812, %v1781
        %v1829 = vmul.f32 %v1813, %v1783
        %v1830 = vmul.f32 %v1814, %v1785
        %v1831 = vmul.f32 %v1815, %v1787
        %v1832 = vmul.f32 %v1816, %v1789
        %v1833 = vmul.f32 %v1817, %v1791
        %v1834 = vmul.f32 %v1818, %v1793
        %v1835 = vmul.f32 %v1819, %v1795
        %v1836 = vmul.f32 %v1820, %v1797
        %v1837 = vmul.f32 %v1821, %v1799
        %v1838 = vmul.f32 %v1822, %v1801
        %v1839 = vmul.f32 %v1823, %v1803
        %v1840 = vmul.f32 %v1824, %v1805
        %v1841 = vmul.f32 %v1825, %v1807
        %v1842 = vmul.f32 %v1826, %v1809
        %v1843 = vmul.f32 %v1827, %v1811
        %v1844 = vadd.f32 %v1268, %v1828
        %v1845 = vadd.f32 %v1269, %v1829
        %v1846 = vadd.f32 %v1270, %v1830
        %v1847 = vadd.f32 %v1271, %v1831
        %v1848 = vadd.f32 %v1272, %v1832
        %v1849 = vadd.f32 %v1273, %v1833
        %v1850 = vadd.f32 %v1274, %v1834
        %v1851 = vadd.f32 %v1275, %v1835
        %v1852 = vadd.f32 %v1276, %v1836
        %v1853 = vadd.f32 %v1277, %v1837
        %v1854 = vadd.f32 %v1278, %v1838
        %v1855 = vadd.f32 %v1279, %v1839
        %v1856 = vadd.f32 %v1280, %v1840
        %v1857 = vadd.f32 %v1281, %v1841
        %v1858 = vadd.f32 %v1282, %v1842
        %v1859 = vadd.f32 %v1283, %v1843
        %v1860 = vadd.f32 %v1284, 1.0
        %v1861 = vadd.f32 %v1285, 1.0
        %v1862 = vadd.f32 %v1286, 1.0
        %v1863 = vadd.f32 %v1287, 1.0
        %v1864 = vadd.f32 %v1288, 1.0
        %v1865 = vadd.f32 %v1289, 1.0
        %v1866 = vadd.f32 %v1290, 1.0
        %v1867 = vadd.f32 %v1291, 1.0
        %v1868 = vadd.f32 %v1292, 1.0
        %v1869 = vadd.f32 %v1293, 1.0
        %v1870 = vadd.f32 %v1294, 1.0
        %v1871 = vadd.f32 %v1295, 1.0
        %v1872 = vadd.f32 %v1296, 1.0
        %v1873 = vadd.f32 %v1297, 1.0
        %v1874 = vadd.f32 %v1298, 1.0
        %v1875 = vadd.f32 %v1299, 1.0
        %v1876 = vsel %vm1412, %v1860, 1.0
        %v1877 = vsel %vm1413, %v1861, 1.0
        %v1878 = vsel %vm1414, %v1862, 1.0
        %v1879 = vsel %vm1415, %v1863, 1.0
        %v1880 = vsel %vm1416, %v1864, 1.0
        %v1881 = vsel %vm1417, %v1865, 1.0
        %v1882 = vsel %vm1418, %v1866, 1.0
        %v1883 = vsel %vm1419, %v1867, 1.0
        %v1884 = vsel %vm1420, %v1868, 1.0
        %v1885 = vsel %vm1421, %v1869, 1.0
        %v1886 = vsel %vm1422, %v1870, 1.0
        %v1887 = vsel %vm1423, %v1871, 1.0
        %v1888 = vsel %vm1424, %v1872, 1.0
        %v1889 = vsel %vm1425, %v1873, 1.0
        %v1890 = vsel %vm1426, %v1874, 1.0
        %v1891 = vsel %vm1427, %v1875, 1.0
        %vm1892 = vcmp.eq.f32.partialorder %v692, %v1540
        %vm1893 = vcmp.eq.f32.partialorder %v693, %v1540
        %vm1894 = vcmp.eq.f32.partialorder %v694, %v1541
        %vm1895 = vcmp.eq.f32.partialorder %v695, %v1541
        %vm1896 = vcmp.eq.f32.partialorder %v696, %v1542
        %vm1897 = vcmp.eq.f32.partialorder %v697, %v1542
        %vm1898 = vcmp.eq.f32.partialorder %v698, %v1543
        %vm1899 = vcmp.eq.f32.partialorder %v699, %v1543
        %vm1900 = vcmp.eq.f32.partialorder %v700, %v1544
        %vm1901 = vcmp.eq.f32.partialorder %v701, %v1544
        %vm1902 = vcmp.eq.f32.partialorder %v702, %v1545
        %vm1903 = vcmp.eq.f32.partialorder %v703, %v1545
        %vm1904 = vcmp.eq.f32.partialorder %v704, %v1546
        %vm1905 = vcmp.eq.f32.partialorder %v705, %v1546
        %vm1906 = vcmp.eq.f32.partialorder %v706, %v1547
        %vm1907 = vcmp.eq.f32.partialorder %v707, %v1547
        %vm1908 = vcmp.eq.f32.partialorder %v708, %v1548
        %vm1909 = vcmp.eq.f32.partialorder %v709, %v1548
        %vm1910 = vcmp.eq.f32.partialorder %v710, %v1549
        %vm1911 = vcmp.eq.f32.partialorder %v711, %v1549
        %vm1912 = vcmp.eq.f32.partialorder %v712, %v1550
        %vm1913 = vcmp.eq.f32.partialorder %v713, %v1550
        %vm1914 = vcmp.eq.f32.partialorder %v714, %v1551
        %vm1915 = vcmp.eq.f32.partialorder %v715, %v1551
        %vm1916 = vcmp.eq.f32.partialorder %v716, %v1552
        %vm1917 = vcmp.eq.f32.partialorder %v717, %v1552
        %vm1918 = vcmp.eq.f32.partialorder %v718, %v1553
        %vm1919 = vcmp.eq.f32.partialorder %v719, %v1553
        %vm1920 = vcmp.eq.f32.partialorder %v720, %v1554
        %vm1921 = vcmp.eq.f32.partialorder %v721, %v1554
        %vm1922 = vcmp.eq.f32.partialorder %v722, %v1555
        %vm1923 = vcmp.eq.f32.partialorder %v723, %v1555
        %v1924 = vsel %vm1892, 1.0, 0.0
        %v1925 = vsel %vm1893, 1.0, 0.0
        %v1926 = vsel %vm1894, 1.0, 0.0
        %v1927 = vsel %vm1895, 1.0, 0.0
        %v1928 = vsel %vm1896, 1.0, 0.0
        %v1929 = vsel %vm1897, 1.0, 0.0
        %v1930 = vsel %vm1898, 1.0, 0.0
        %v1931 = vsel %vm1899, 1.0, 0.0
        %v1932 = vsel %vm1900, 1.0, 0.0
        %v1933 = vsel %vm1901, 1.0, 0.0
        %v1934 = vsel %vm1902, 1.0, 0.0
        %v1935 = vsel %vm1903, 1.0, 0.0
        %v1936 = vsel %vm1904, 1.0, 0.0
        %v1937 = vsel %vm1905, 1.0, 0.0
        %v1938 = vsel %vm1906, 1.0, 0.0
        %v1939 = vsel %vm1907, 1.0, 0.0
        %v1940 = vsel %vm1908, 1.0, 0.0
        %v1941 = vsel %vm1909, 1.0, 0.0
        %v1942 = vsel %vm1910, 1.0, 0.0
        %v1943 = vsel %vm1911, 1.0, 0.0
        %v1944 = vsel %vm1912, 1.0, 0.0
        %v1945 = vsel %vm1913, 1.0, 0.0
        %v1946 = vsel %vm1914, 1.0, 0.0
        %v1947 = vsel %vm1915, 1.0, 0.0
        %v1948 = vsel %vm1916, 1.0, 0.0
        %v1949 = vsel %vm1917, 1.0, 0.0
        %v1950 = vsel %vm1918, 1.0, 0.0
        %v1951 = vsel %vm1919, 1.0, 0.0
        %v1952 = vsel %vm1920, 1.0, 0.0
        %v1953 = vsel %vm1921, 1.0, 0.0
        %v1954 = vsel %vm1922, 1.0, 0.0
        %v1955 = vsel %vm1923, 1.0, 0.0
        %v1956 = vadd.f32 %v1924, %v1925
        %1957 = vadd.xlane.f32.xlu0 %v1956
        %v1958 = vpop.xlane.xlu0 %1957
        %v1959 = vadd.f32 %v1926, %v1927
        %1960 = vadd.xlane.f32.xlu0 %v1959
        %v1961 = vpop.xlane.xlu0 %1960
        %v1962 = vadd.f32 %v1928, %v1929
        %1963 = vadd.xlane.f32.xlu0 %v1962
        %v1964 = vpop.xlane.xlu0 %1963
        %v1965 = vadd.f32 %v1930, %v1931
        %1966 = vadd.xlane.f32.xlu0 %v1965
        %v1967 = vpop.xlane.xlu0 %1966
        %v1968 = vadd.f32 %v1932, %v1933
        %1969 = vadd.xlane.f32.xlu0 %v1968
        %v1970 = vpop.xlane.xlu0 %1969
        %v1971 = vadd.f32 %v1934, %v1935
        %1972 = vadd.xlane.f32.xlu0 %v1971
        %v1973 = vpop.xlane.xlu0 %1972
        %v1974 = vadd.f32 %v1936, %v1937
        %1975 = vadd.xlane.f32.xlu0 %v1974
        %v1976 = vpop.xlane.xlu0 %1975
        %v1977 = vadd.f32 %v1938, %v1939
        %1978 = vadd.xlane.f32.xlu0 %v1977
        %v1979 = vpop.xlane.xlu0 %1978
        %v1980 = vadd.f32 %v1940, %v1941
        %1981 = vadd.xlane.f32.xlu0 %v1980
        %v1982 = vpop.xlane.xlu0 %1981
        %v1983 = vadd.f32 %v1942, %v1943
        %1984 = vadd.xlane.f32.xlu0 %v1983
        %v1985 = vpop.xlane.xlu0 %1984
        %v1986 = vadd.f32 %v1944, %v1945
        %1987 = vadd.xlane.f32.xlu0 %v1986
        %v1988 = vpop.xlane.xlu0 %1987
        %v1989 = vadd.f32 %v1946, %v1947
        %1990 = vadd.xlane.f32.xlu0 %v1989
        %v1991 = vpop.xlane.xlu0 %1990
        %v1992 = vadd.f32 %v1948, %v1949
        %1993 = vadd.xlane.f32.xlu0 %v1992
        %v1994 = vpop.xlane.xlu0 %1993
        %v1995 = vadd.f32 %v1950, %v1951
        %1996 = vadd.xlane.f32.xlu0 %v1995
        %v1997 = vpop.xlane.xlu0 %1996
        %v1998 = vadd.f32 %v1952, %v1953
        %1999 = vadd.xlane.f32.xlu0 %v1998
        %v2000 = vpop.xlane.xlu0 %1999
        %v2001 = vadd.f32 %v1954, %v1955
        %2002 = vadd.xlane.f32.xlu0 %v2001
        %v2003 = vpop.xlane.xlu0 %2002
        %vm2004 = vcmp.gt.f32.partialorder %v1958, %v1876
        %vm2005 = vcmp.gt.f32.partialorder %v1961, %v1877
        %vm2006 = vcmp.gt.f32.partialorder %v1964, %v1878
        %vm2007 = vcmp.gt.f32.partialorder %v1967, %v1879
        %vm2008 = vcmp.gt.f32.partialorder %v1970, %v1880
        %vm2009 = vcmp.gt.f32.partialorder %v1973, %v1881
        %vm2010 = vcmp.gt.f32.partialorder %v1976, %v1882
        %vm2011 = vcmp.gt.f32.partialorder %v1979, %v1883
        %vm2012 = vcmp.gt.f32.partialorder %v1982, %v1884
        %vm2013 = vcmp.gt.f32.partialorder %v1985, %v1885
        %vm2014 = vcmp.gt.f32.partialorder %v1988, %v1886
        %vm2015 = vcmp.gt.f32.partialorder %v1991, %v1887
        %vm2016 = vcmp.gt.f32.partialorder %v1994, %v1888
        %vm2017 = vcmp.gt.f32.partialorder %v1997, %v1889
        %vm2018 = vcmp.gt.f32.partialorder %v2000, %v1890
        %vm2019 = vcmp.gt.f32.partialorder %v2003, %v1891
        %vm2020 = vcmp.gt.f32.partialorder %v692, %v1540
        %vm2021 = vcmp.gt.f32.partialorder %v693, %v1540
        %vm2022 = vcmp.gt.f32.partialorder %v694, %v1541
        %vm2023 = vcmp.gt.f32.partialorder %v695, %v1541
        %vm2024 = vcmp.gt.f32.partialorder %v696, %v1542
        %vm2025 = vcmp.gt.f32.partialorder %v697, %v1542
        %vm2026 = vcmp.gt.f32.partialorder %v698, %v1543
        %vm2027 = vcmp.gt.f32.partialorder %v699, %v1543
        %vm2028 = vcmp.gt.f32.partialorder %v700, %v1544
        %vm2029 = vcmp.gt.f32.partialorder %v701, %v1544
        %vm2030 = vcmp.gt.f32.partialorder %v702, %v1545
        %vm2031 = vcmp.gt.f32.partialorder %v703, %v1545
        %vm2032 = vcmp.gt.f32.partialorder %v704, %v1546
        %vm2033 = vcmp.gt.f32.partialorder %v705, %v1546
        %vm2034 = vcmp.gt.f32.partialorder %v706, %v1547
        %vm2035 = vcmp.gt.f32.partialorder %v707, %v1547
        %vm2036 = vcmp.gt.f32.partialorder %v708, %v1548
        %vm2037 = vcmp.gt.f32.partialorder %v709, %v1548
        %vm2038 = vcmp.gt.f32.partialorder %v710, %v1549
        %vm2039 = vcmp.gt.f32.partialorder %v711, %v1549
        %vm2040 = vcmp.gt.f32.partialorder %v712, %v1550
        %vm2041 = vcmp.gt.f32.partialorder %v713, %v1550
        %vm2042 = vcmp.gt.f32.partialorder %v714, %v1551
        %vm2043 = vcmp.gt.f32.partialorder %v715, %v1551
        %vm2044 = vcmp.gt.f32.partialorder %v716, %v1552
        %vm2045 = vcmp.gt.f32.partialorder %v717, %v1552
        %vm2046 = vcmp.gt.f32.partialorder %v718, %v1553
        %vm2047 = vcmp.gt.f32.partialorder %v719, %v1553
        %vm2048 = vcmp.gt.f32.partialorder %v720, %v1554
        %vm2049 = vcmp.gt.f32.partialorder %v721, %v1554
        %vm2050 = vcmp.gt.f32.partialorder %v722, %v1555
        %vm2051 = vcmp.gt.f32.partialorder %v723, %v1555
        %v2052 = vsel %vm2020, %v692, inf
        %v2053 = vsel %vm2021, %v693, inf
        %v2054 = vsel %vm2022, %v694, inf
        %v2055 = vsel %vm2023, %v695, inf
        %v2056 = vsel %vm2024, %v696, inf
        %v2057 = vsel %vm2025, %v697, inf
        %v2058 = vsel %vm2026, %v698, inf
        %v2059 = vsel %vm2027, %v699, inf
        %v2060 = vsel %vm2028, %v700, inf
        %v2061 = vsel %vm2029, %v701, inf
        %v2062 = vsel %vm2030, %v702, inf
        %v2063 = vsel %vm2031, %v703, inf
        %v2064 = vsel %vm2032, %v704, inf
        %v2065 = vsel %vm2033, %v705, inf
        %v2066 = vsel %vm2034, %v706, inf
        %v2067 = vsel %vm2035, %v707, inf
        %v2068 = vsel %vm2036, %v708, inf
        %v2069 = vsel %vm2037, %v709, inf
        %v2070 = vsel %vm2038, %v710, inf
        %v2071 = vsel %vm2039, %v711, inf
        %v2072 = vsel %vm2040, %v712, inf
        %v2073 = vsel %vm2041, %v713, inf
        %v2074 = vsel %vm2042, %v714, inf
        %v2075 = vsel %vm2043, %v715, inf
        %v2076 = vsel %vm2044, %v716, inf
        %v2077 = vsel %vm2045, %v717, inf
        %v2078 = vsel %vm2046, %v718, inf
        %v2079 = vsel %vm2047, %v719, inf
        %v2080 = vsel %vm2048, %v720, inf
        %v2081 = vsel %vm2049, %v721, inf
        %v2082 = vsel %vm2050, %v722, inf
        %v2083 = vsel %vm2051, %v723, inf
        %v2084 = vmin.f32 %v2052, %v2053
        %2085 = vmin.xlane.f32.xlu0 %v2084
        %v2086 = vpop.xlane.xlu0 %2085
        %v2087 = vmin.f32 %v2054, %v2055
        %2088 = vmin.xlane.f32.xlu0 %v2087
        %v2089 = vpop.xlane.xlu0 %2088
        %v2090 = vmin.f32 %v2056, %v2057
        %2091 = vmin.xlane.f32.xlu0 %v2090
        %v2092 = vpop.xlane.xlu0 %2091
        %v2093 = vmin.f32 %v2058, %v2059
        %2094 = vmin.xlane.f32.xlu0 %v2093
        %v2095 = vpop.xlane.xlu0 %2094
        %v2096 = vmin.f32 %v2060, %v2061
        %2097 = vmin.xlane.f32.xlu0 %v2096
        %v2098 = vpop.xlane.xlu0 %2097
        %v2099 = vmin.f32 %v2062, %v2063
        %2100 = vmin.xlane.f32.xlu0 %v2099
        %v2101 = vpop.xlane.xlu0 %2100
        %v2102 = vmin.f32 %v2064, %v2065
        %2103 = vmin.xlane.f32.xlu0 %v2102
        %v2104 = vpop.xlane.xlu0 %2103
        %v2105 = vmin.f32 %v2066, %v2067
        %2106 = vmin.xlane.f32.xlu0 %v2105
        %v2107 = vpop.xlane.xlu0 %2106
        %v2108 = vmin.f32 %v2068, %v2069
        %2109 = vmin.xlane.f32.xlu0 %v2108
        %v2110 = vpop.xlane.xlu0 %2109
        %v2111 = vmin.f32 %v2070, %v2071
        %2112 = vmin.xlane.f32.xlu0 %v2111
        %v2113 = vpop.xlane.xlu0 %2112
        %v2114 = vmin.f32 %v2072, %v2073
        %2115 = vmin.xlane.f32.xlu0 %v2114
        %v2116 = vpop.xlane.xlu0 %2115
        %v2117 = vmin.f32 %v2074, %v2075
        %2118 = vmin.xlane.f32.xlu0 %v2117
        %v2119 = vpop.xlane.xlu0 %2118
        %v2120 = vmin.f32 %v2076, %v2077
        %2121 = vmin.xlane.f32.xlu0 %v2120
        %v2122 = vpop.xlane.xlu0 %2121
        %v2123 = vmin.f32 %v2078, %v2079
        %2124 = vmin.xlane.f32.xlu0 %v2123
        %v2125 = vpop.xlane.xlu0 %2124
        %v2126 = vmin.f32 %v2080, %v2081
        %2127 = vmin.xlane.f32.xlu0 %v2126
        %v2128 = vpop.xlane.xlu0 %2127
        %v2129 = vmin.f32 %v2082, %v2083
        %2130 = vmin.xlane.f32.xlu0 %v2129
        %v2131 = vpop.xlane.xlu0 %2130
        %v2132 = vsel %vm2004, %v1540, %v2086
        %v2133 = vsel %vm2005, %v1541, %v2089
        %v2134 = vsel %vm2006, %v1542, %v2092
        %v2135 = vsel %vm2007, %v1543, %v2095
        %v2136 = vsel %vm2008, %v1544, %v2098
        %v2137 = vsel %vm2009, %v1545, %v2101
        %v2138 = vsel %vm2010, %v1546, %v2104
        %v2139 = vsel %vm2011, %v1547, %v2107
        %v2140 = vsel %vm2012, %v1548, %v2110
        %v2141 = vsel %vm2013, %v1549, %v2113
        %v2142 = vsel %vm2014, %v1550, %v2116
        %v2143 = vsel %vm2015, %v1551, %v2119
        %v2144 = vsel %vm2016, %v1552, %v2122
        %v2145 = vsel %vm2017, %v1553, %v2125
        %v2146 = vsel %vm2018, %v1554, %v2128
        %v2147 = vsel %vm2019, %v1555, %v2131
        %v2148 = vrsqrt.pop %v2132
        %v2149 = vmul.f32 %v2148, %v2132
        %v2150 = vmul.f32 %v2149, %v2148
        %v2151 = vmul.f32 0.5, %v2150
        %v2152 = vsub.f32 1.5, %v2151
        %v2153 = vmul.f32 %v2148, %v2152
        %v2154 = vmul.f32 %v2132, %v2153
        %vm2155 = vcmp.eq.f32.partialorder %v2132, inf
        %v2156 = vsel %vm2155, %v2132, %v2154
        %vm2157 = vcmp.eq.f32.partialorder %v2132, 0.0
        %v2158 = vand.u32 %v2132, 2147483648
        %v2159 = vsel %vm2157, %v2158, %v2156
        %v2160 = vrsqrt.pop %v2133
        %v2161 = vmul.f32 %v2160, %v2133
        %v2162 = vmul.f32 %v2161, %v2160
        %v2163 = vmul.f32 0.5, %v2162
        %v2164 = vsub.f32 1.5, %v2163
        %v2165 = vmul.f32 %v2160, %v2164
        %v2166 = vmul.f32 %v2133, %v2165
        %vm2167 = vcmp.eq.f32.partialorder %v2133, inf
        %v2168 = vsel %vm2167, %v2133, %v2166
        %vm2169 = vcmp.eq.f32.partialorder %v2133, 0.0
        %v2170 = vand.u32 %v2133, 2147483648
        %v2171 = vsel %vm2169, %v2170, %v2168
        %v2172 = vrsqrt.pop %v2134
        %v2173 = vmul.f32 %v2172, %v2134
        %v2174 = vmul.f32 %v2173, %v2172
        %v2175 = vmul.f32 0.5, %v2174
        %v2176 = vsub.f32 1.5, %v2175
        %v2177 = vmul.f32 %v2172, %v2176
        %v2178 = vmul.f32 %v2134, %v2177
        %vm2179 = vcmp.eq.f32.partialorder %v2134, inf
        %v2180 = vsel %vm2179, %v2134, %v2178
        %vm2181 = vcmp.eq.f32.partialorder %v2134, 0.0
        %v2182 = vand.u32 %v2134, 2147483648
        %v2183 = vsel %vm2181, %v2182, %v2180
        %v2184 = vrsqrt.pop %v2135
        %v2185 = vmul.f32 %v2184, %v2135
        %v2186 = vmul.f32 %v2185, %v2184
        %v2187 = vmul.f32 0.5, %v2186
        %v2188 = vsub.f32 1.5, %v2187
        %v2189 = vmul.f32 %v2184, %v2188
        %v2190 = vmul.f32 %v2135, %v2189
        %vm2191 = vcmp.eq.f32.partialorder %v2135, inf
        %v2192 = vsel %vm2191, %v2135, %v2190
        %vm2193 = vcmp.eq.f32.partialorder %v2135, 0.0
        %v2194 = vand.u32 %v2135, 2147483648
        %v2195 = vsel %vm2193, %v2194, %v2192
        %v2196 = vrsqrt.pop %v2136
        %v2197 = vmul.f32 %v2196, %v2136
        %v2198 = vmul.f32 %v2197, %v2196
        %v2199 = vmul.f32 0.5, %v2198
        %v2200 = vsub.f32 1.5, %v2199
        %v2201 = vmul.f32 %v2196, %v2200
        %v2202 = vmul.f32 %v2136, %v2201
        %vm2203 = vcmp.eq.f32.partialorder %v2136, inf
        %v2204 = vsel %vm2203, %v2136, %v2202
        %vm2205 = vcmp.eq.f32.partialorder %v2136, 0.0
        %v2206 = vand.u32 %v2136, 2147483648
        %v2207 = vsel %vm2205, %v2206, %v2204
        %v2208 = vrsqrt.pop %v2137
        %v2209 = vmul.f32 %v2208, %v2137
        %v2210 = vmul.f32 %v2209, %v2208
        %v2211 = vmul.f32 0.5, %v2210
        %v2212 = vsub.f32 1.5, %v2211
        %v2213 = vmul.f32 %v2208, %v2212
        %v2214 = vmul.f32 %v2137, %v2213
        %vm2215 = vcmp.eq.f32.partialorder %v2137, inf
        %v2216 = vsel %vm2215, %v2137, %v2214
        %vm2217 = vcmp.eq.f32.partialorder %v2137, 0.0
        %v2218 = vand.u32 %v2137, 2147483648
        %v2219 = vsel %vm2217, %v2218, %v2216
        %v2220 = vrsqrt.pop %v2138
        %v2221 = vmul.f32 %v2220, %v2138
        %v2222 = vmul.f32 %v2221, %v2220
        %v2223 = vmul.f32 0.5, %v2222
        %v2224 = vsub.f32 1.5, %v2223
        %v2225 = vmul.f32 %v2220, %v2224
        %v2226 = vmul.f32 %v2138, %v2225
        %vm2227 = vcmp.eq.f32.partialorder %v2138, inf
        %v2228 = vsel %vm2227, %v2138, %v2226
        %vm2229 = vcmp.eq.f32.partialorder %v2138, 0.0
        %v2230 = vand.u32 %v2138, 2147483648
        %v2231 = vsel %vm2229, %v2230, %v2228
        %v2232 = vrsqrt.pop %v2139
        %v2233 = vmul.f32 %v2232, %v2139
        %v2234 = vmul.f32 %v2233, %v2232
        %v2235 = vmul.f32 0.5, %v2234
        %v2236 = vsub.f32 1.5, %v2235
        %v2237 = vmul.f32 %v2232, %v2236
        %v2238 = vmul.f32 %v2139, %v2237
        %vm2239 = vcmp.eq.f32.partialorder %v2139, inf
        %v2240 = vsel %vm2239, %v2139, %v2238
        %vm2241 = vcmp.eq.f32.partialorder %v2139, 0.0
        %v2242 = vand.u32 %v2139, 2147483648
        %v2243 = vsel %vm2241, %v2242, %v2240
        %v2244 = vrsqrt.pop %v2140
        %v2245 = vmul.f32 %v2244, %v2140
        %v2246 = vmul.f32 %v2245, %v2244
        %v2247 = vmul.f32 0.5, %v2246
        %v2248 = vsub.f32 1.5, %v2247
        %v2249 = vmul.f32 %v2244, %v2248
        %v2250 = vmul.f32 %v2140, %v2249
        %vm2251 = vcmp.eq.f32.partialorder %v2140, inf
        %v2252 = vsel %vm2251, %v2140, %v2250
        %vm2253 = vcmp.eq.f32.partialorder %v2140, 0.0
        %v2254 = vand.u32 %v2140, 2147483648
        %v2255 = vsel %vm2253, %v2254, %v2252
        %v2256 = vrsqrt.pop %v2141
        %v2257 = vmul.f32 %v2256, %v2141
        %v2258 = vmul.f32 %v2257, %v2256
        %v2259 = vmul.f32 0.5, %v2258
        %v2260 = vsub.f32 1.5, %v2259
        %v2261 = vmul.f32 %v2256, %v2260
        %v2262 = vmul.f32 %v2141, %v2261
        %vm2263 = vcmp.eq.f32.partialorder %v2141, inf
        %v2264 = vsel %vm2263, %v2141, %v2262
        %vm2265 = vcmp.eq.f32.partialorder %v2141, 0.0
        %v2266 = vand.u32 %v2141, 2147483648
        %v2267 = vsel %vm2265, %v2266, %v2264
        %v2268 = vrsqrt.pop %v2142
        %v2269 = vmul.f32 %v2268, %v2142
        %v2270 = vmul.f32 %v2269, %v2268
        %v2271 = vmul.f32 0.5, %v2270
        %v2272 = vsub.f32 1.5, %v2271
        %v2273 = vmul.f32 %v2268, %v2272
        %v2274 = vmul.f32 %v2142, %v2273
        %vm2275 = vcmp.eq.f32.partialorder %v2142, inf
        %v2276 = vsel %vm2275, %v2142, %v2274
        %vm2277 = vcmp.eq.f32.partialorder %v2142, 0.0
        %v2278 = vand.u32 %v2142, 2147483648
        %v2279 = vsel %vm2277, %v2278, %v2276
        %v2280 = vrsqrt.pop %v2143
        %v2281 = vmul.f32 %v2280, %v2143
        %v2282 = vmul.f32 %v2281, %v2280
        %v2283 = vmul.f32 0.5, %v2282
        %v2284 = vsub.f32 1.5, %v2283
        %v2285 = vmul.f32 %v2280, %v2284
        %v2286 = vmul.f32 %v2143, %v2285
        %vm2287 = vcmp.eq.f32.partialorder %v2143, inf
        %v2288 = vsel %vm2287, %v2143, %v2286
        %vm2289 = vcmp.eq.f32.partialorder %v2143, 0.0
        %v2290 = vand.u32 %v2143, 2147483648
        %v2291 = vsel %vm2289, %v2290, %v2288
        %v2292 = vrsqrt.pop %v2144
        %v2293 = vmul.f32 %v2292, %v2144
        %v2294 = vmul.f32 %v2293, %v2292
        %v2295 = vmul.f32 0.5, %v2294
        %v2296 = vsub.f32 1.5, %v2295
        %v2297 = vmul.f32 %v2292, %v2296
        %v2298 = vmul.f32 %v2144, %v2297
        %vm2299 = vcmp.eq.f32.partialorder %v2144, inf
        %v2300 = vsel %vm2299, %v2144, %v2298
        %vm2301 = vcmp.eq.f32.partialorder %v2144, 0.0
        %v2302 = vand.u32 %v2144, 2147483648
        %v2303 = vsel %vm2301, %v2302, %v2300
        %v2304 = vrsqrt.pop %v2145
        %v2305 = vmul.f32 %v2304, %v2145
        %v2306 = vmul.f32 %v2305, %v2304
        %v2307 = vmul.f32 0.5, %v2306
        %v2308 = vsub.f32 1.5, %v2307
        %v2309 = vmul.f32 %v2304, %v2308
        %v2310 = vmul.f32 %v2145, %v2309
        %vm2311 = vcmp.eq.f32.partialorder %v2145, inf
        %v2312 = vsel %vm2311, %v2145, %v2310
        %vm2313 = vcmp.eq.f32.partialorder %v2145, 0.0
        %v2314 = vand.u32 %v2145, 2147483648
        %v2315 = vsel %vm2313, %v2314, %v2312
        %v2316 = vrsqrt.pop %v2146
        %v2317 = vmul.f32 %v2316, %v2146
        %v2318 = vmul.f32 %v2317, %v2316
        %v2319 = vmul.f32 0.5, %v2318
        %v2320 = vsub.f32 1.5, %v2319
        %v2321 = vmul.f32 %v2316, %v2320
        %v2322 = vmul.f32 %v2146, %v2321
        %vm2323 = vcmp.eq.f32.partialorder %v2146, inf
        %v2324 = vsel %vm2323, %v2146, %v2322
        %vm2325 = vcmp.eq.f32.partialorder %v2146, 0.0
        %v2326 = vand.u32 %v2146, 2147483648
        %v2327 = vsel %vm2325, %v2326, %v2324
        %v2328 = vrsqrt.pop %v2147
        %v2329 = vmul.f32 %v2328, %v2147
        %v2330 = vmul.f32 %v2329, %v2328
        %v2331 = vmul.f32 0.5, %v2330
        %v2332 = vsub.f32 1.5, %v2331
        %v2333 = vmul.f32 %v2328, %v2332
        %v2334 = vmul.f32 %v2147, %v2333
        %vm2335 = vcmp.eq.f32.partialorder %v2147, inf
        %v2336 = vsel %vm2335, %v2147, %v2334
        %vm2337 = vcmp.eq.f32.partialorder %v2147, 0.0
        %v2338 = vand.u32 %v2147, 2147483648
        %v2339 = vsel %vm2337, %v2338, %v2336
        %v2340 = vsub.f32 0.0, %v2132
        %v2341 = vsub.f32 0.0, %v2133
        %v2342 = vsub.f32 0.0, %v2134
        %v2343 = vsub.f32 0.0, %v2135
        %v2344 = vsub.f32 0.0, %v2136
        %v2345 = vsub.f32 0.0, %v2137
        %v2346 = vsub.f32 0.0, %v2138
        %v2347 = vsub.f32 0.0, %v2139
        %v2348 = vsub.f32 0.0, %v2140
        %v2349 = vsub.f32 0.0, %v2141
        %v2350 = vsub.f32 0.0, %v2142
        %v2351 = vsub.f32 0.0, %v2143
        %v2352 = vsub.f32 0.0, %v2144
        %v2353 = vsub.f32 0.0, %v2145
        %v2354 = vsub.f32 0.0, %v2146
        %v2355 = vsub.f32 0.0, %v2147
        %v2356 = vmul.f32 %v2340, 1111.1111
        %v2357 = vmul.f32 %v2341, 1111.1111
        %v2358 = vmul.f32 %v2342, 1111.1111
        %v2359 = vmul.f32 %v2343, 1111.1111
        %v2360 = vmul.f32 %v2344, 1111.1111
        %v2361 = vmul.f32 %v2345, 1111.1111
        %v2362 = vmul.f32 %v2346, 1111.1111
        %v2363 = vmul.f32 %v2347, 1111.1111
        %v2364 = vmul.f32 %v2348, 1111.1111
        %v2365 = vmul.f32 %v2349, 1111.1111
        %v2366 = vmul.f32 %v2350, 1111.1111
        %v2367 = vmul.f32 %v2351, 1111.1111
        %v2368 = vmul.f32 %v2352, 1111.1111
        %v2369 = vmul.f32 %v2353, 1111.1111
        %v2370 = vmul.f32 %v2354, 1111.1111
        %v2371 = vmul.f32 %v2355, 1111.1111
        %v2372 = vmul.f32 %v2356, 1.442695
        %v2373 = vpow.pop %v2372
        %v2374 = vmul.f32 %v2357, 1.442695
        %v2375 = vpow.pop %v2374
        %v2376 = vmul.f32 %v2358, 1.442695
        %v2377 = vpow.pop %v2376
        %v2378 = vmul.f32 %v2359, 1.442695
        %v2379 = vpow.pop %v2378
        %v2380 = vmul.f32 %v2360, 1.442695
        %v2381 = vpow.pop %v2380
        %v2382 = vmul.f32 %v2361, 1.442695
        %v2383 = vpow.pop %v2382
        %v2384 = vmul.f32 %v2362, 1.442695
        %v2385 = vpow.pop %v2384
        %v2386 = vmul.f32 %v2363, 1.442695
        %v2387 = vpow.pop %v2386
        %v2388 = vmul.f32 %v2364, 1.442695
        %v2389 = vpow.pop %v2388
        %v2390 = vmul.f32 %v2365, 1.442695
        %v2391 = vpow.pop %v2390
        %v2392 = vmul.f32 %v2366, 1.442695
        %v2393 = vpow.pop %v2392
        %v2394 = vmul.f32 %v2367, 1.442695
        %v2395 = vpow.pop %v2394
        %v2396 = vmul.f32 %v2368, 1.442695
        %v2397 = vpow.pop %v2396
        %v2398 = vmul.f32 %v2369, 1.442695
        %v2399 = vpow.pop %v2398
        %v2400 = vmul.f32 %v2370, 1.442695
        %v2401 = vpow.pop %v2400
        %v2402 = vmul.f32 %v2371, 1.442695
        %v2403 = vpow.pop %v2402
        %v2404 = vsub.f32 0.07, %v2159
        %v2405 = vsub.f32 0.07, %v2171
        %v2406 = vsub.f32 0.07, %v2183
        %v2407 = vsub.f32 0.07, %v2195
        %v2408 = vsub.f32 0.07, %v2207
        %v2409 = vsub.f32 0.07, %v2219
        %v2410 = vsub.f32 0.07, %v2231
        %v2411 = vsub.f32 0.07, %v2243
        %v2412 = vsub.f32 0.07, %v2255
        %v2413 = vsub.f32 0.07, %v2267
        %v2414 = vsub.f32 0.07, %v2279
        %v2415 = vsub.f32 0.07, %v2291
        %v2416 = vsub.f32 0.07, %v2303
        %v2417 = vsub.f32 0.07, %v2315
        %v2418 = vsub.f32 0.07, %v2327
        %v2419 = vsub.f32 0.07, %v2339
        %v2420 = vmul.f32 %v2404, %v2373
        %v2421 = vmul.f32 %v2405, %v2375
        %v2422 = vmul.f32 %v2406, %v2377
        %v2423 = vmul.f32 %v2407, %v2379
        %v2424 = vmul.f32 %v2408, %v2381
        %v2425 = vmul.f32 %v2409, %v2383
        %v2426 = vmul.f32 %v2410, %v2385
        %v2427 = vmul.f32 %v2411, %v2387
        %v2428 = vmul.f32 %v2412, %v2389
        %v2429 = vmul.f32 %v2413, %v2391
        %v2430 = vmul.f32 %v2414, %v2393
        %v2431 = vmul.f32 %v2415, %v2395
        %v2432 = vmul.f32 %v2416, %v2397
        %v2433 = vmul.f32 %v2417, %v2399
        %v2434 = vmul.f32 %v2418, %v2401
        %v2435 = vmul.f32 %v2419, %v2403
        %v2436 = vadd.f32 %v1844, %v2420
        %v2437 = vadd.f32 %v1845, %v2421
        %v2438 = vadd.f32 %v1846, %v2422
        %v2439 = vadd.f32 %v1847, %v2423
        %v2440 = vadd.f32 %v1848, %v2424
        %v2441 = vadd.f32 %v1849, %v2425
        %v2442 = vadd.f32 %v1850, %v2426
        %v2443 = vadd.f32 %v1851, %v2427
        %v2444 = vadd.f32 %v1852, %v2428
        %v2445 = vadd.f32 %v1853, %v2429
        %v2446 = vadd.f32 %v1854, %v2430
        %v2447 = vadd.f32 %v1855, %v2431
        %v2448 = vadd.f32 %v1856, %v2432
        %v2449 = vadd.f32 %v1857, %v2433
        %v2450 = vadd.f32 %v1858, %v2434
        %v2451 = vadd.f32 %v1859, %v2435
        %v2452 = vadd.f32 %v1876, 1.0
        %v2453 = vadd.f32 %v1877, 1.0
        %v2454 = vadd.f32 %v1878, 1.0
        %v2455 = vadd.f32 %v1879, 1.0
        %v2456 = vadd.f32 %v1880, 1.0
        %v2457 = vadd.f32 %v1881, 1.0
        %v2458 = vadd.f32 %v1882, 1.0
        %v2459 = vadd.f32 %v1883, 1.0
        %v2460 = vadd.f32 %v1884, 1.0
        %v2461 = vadd.f32 %v1885, 1.0
        %v2462 = vadd.f32 %v1886, 1.0
        %v2463 = vadd.f32 %v1887, 1.0
        %v2464 = vadd.f32 %v1888, 1.0
        %v2465 = vadd.f32 %v1889, 1.0
        %v2466 = vadd.f32 %v1890, 1.0
        %v2467 = vadd.f32 %v1891, 1.0
        %v2468 = vsel %vm2004, %v2452, 1.0
        %v2469 = vsel %vm2005, %v2453, 1.0
        %v2470 = vsel %vm2006, %v2454, 1.0
        %v2471 = vsel %vm2007, %v2455, 1.0
        %v2472 = vsel %vm2008, %v2456, 1.0
        %v2473 = vsel %vm2009, %v2457, 1.0
        %v2474 = vsel %vm2010, %v2458, 1.0
        %v2475 = vsel %vm2011, %v2459, 1.0
        %v2476 = vsel %vm2012, %v2460, 1.0
        %v2477 = vsel %vm2013, %v2461, 1.0
        %v2478 = vsel %vm2014, %v2462, 1.0
        %v2479 = vsel %vm2015, %v2463, 1.0
        %v2480 = vsel %vm2016, %v2464, 1.0
        %v2481 = vsel %vm2017, %v2465, 1.0
        %v2482 = vsel %vm2018, %v2466, 1.0
        %v2483 = vsel %vm2019, %v2467, 1.0
        %vm2484 = vcmp.eq.f32.partialorder %v692, %v2132
        %vm2485 = vcmp.eq.f32.partialorder %v693, %v2132
        %vm2486 = vcmp.eq.f32.partialorder %v694, %v2133
        %vm2487 = vcmp.eq.f32.partialorder %v695, %v2133
        %vm2488 = vcmp.eq.f32.partialorder %v696, %v2134
        %vm2489 = vcmp.eq.f32.partialorder %v697, %v2134
        %vm2490 = vcmp.eq.f32.partialorder %v698, %v2135
        %vm2491 = vcmp.eq.f32.partialorder %v699, %v2135
        %vm2492 = vcmp.eq.f32.partialorder %v700, %v2136
        %vm2493 = vcmp.eq.f32.partialorder %v701, %v2136
        %vm2494 = vcmp.eq.f32.partialorder %v702, %v2137
        %vm2495 = vcmp.eq.f32.partialorder %v703, %v2137
        %vm2496 = vcmp.eq.f32.partialorder %v704, %v2138
        %vm2497 = vcmp.eq.f32.partialorder %v705, %v2138
        %vm2498 = vcmp.eq.f32.partialorder %v706, %v2139
        %vm2499 = vcmp.eq.f32.partialorder %v707, %v2139
        %vm2500 = vcmp.eq.f32.partialorder %v708, %v2140
        %vm2501 = vcmp.eq.f32.partialorder %v709, %v2140
        %vm2502 = vcmp.eq.f32.partialorder %v710, %v2141
        %vm2503 = vcmp.eq.f32.partialorder %v711, %v2141
        %vm2504 = vcmp.eq.f32.partialorder %v712, %v2142
        %vm2505 = vcmp.eq.f32.partialorder %v713, %v2142
        %vm2506 = vcmp.eq.f32.partialorder %v714, %v2143
        %vm2507 = vcmp.eq.f32.partialorder %v715, %v2143
        %vm2508 = vcmp.eq.f32.partialorder %v716, %v2144
        %vm2509 = vcmp.eq.f32.partialorder %v717, %v2144
        %vm2510 = vcmp.eq.f32.partialorder %v718, %v2145
        %vm2511 = vcmp.eq.f32.partialorder %v719, %v2145
        %vm2512 = vcmp.eq.f32.partialorder %v720, %v2146
        %vm2513 = vcmp.eq.f32.partialorder %v721, %v2146
        %vm2514 = vcmp.eq.f32.partialorder %v722, %v2147
        %vm2515 = vcmp.eq.f32.partialorder %v723, %v2147
        %v2516 = vsel %vm2484, 1.0, 0.0
        %v2517 = vsel %vm2485, 1.0, 0.0
        %v2518 = vsel %vm2486, 1.0, 0.0
        %v2519 = vsel %vm2487, 1.0, 0.0
        %v2520 = vsel %vm2488, 1.0, 0.0
        %v2521 = vsel %vm2489, 1.0, 0.0
        %v2522 = vsel %vm2490, 1.0, 0.0
        %v2523 = vsel %vm2491, 1.0, 0.0
        %v2524 = vsel %vm2492, 1.0, 0.0
        %v2525 = vsel %vm2493, 1.0, 0.0
        %v2526 = vsel %vm2494, 1.0, 0.0
        %v2527 = vsel %vm2495, 1.0, 0.0
        %v2528 = vsel %vm2496, 1.0, 0.0
        %v2529 = vsel %vm2497, 1.0, 0.0
        %v2530 = vsel %vm2498, 1.0, 0.0
        %v2531 = vsel %vm2499, 1.0, 0.0
        %v2532 = vsel %vm2500, 1.0, 0.0
        %v2533 = vsel %vm2501, 1.0, 0.0
        %v2534 = vsel %vm2502, 1.0, 0.0
        %v2535 = vsel %vm2503, 1.0, 0.0
        %v2536 = vsel %vm2504, 1.0, 0.0
        %v2537 = vsel %vm2505, 1.0, 0.0
        %v2538 = vsel %vm2506, 1.0, 0.0
        %v2539 = vsel %vm2507, 1.0, 0.0
        %v2540 = vsel %vm2508, 1.0, 0.0
        %v2541 = vsel %vm2509, 1.0, 0.0
        %v2542 = vsel %vm2510, 1.0, 0.0
        %v2543 = vsel %vm2511, 1.0, 0.0
        %v2544 = vsel %vm2512, 1.0, 0.0
        %v2545 = vsel %vm2513, 1.0, 0.0
        %v2546 = vsel %vm2514, 1.0, 0.0
        %v2547 = vsel %vm2515, 1.0, 0.0
        %v2548 = vadd.f32 %v2516, %v2517
        %2549 = vadd.xlane.f32.xlu0 %v2548
        %v2550 = vpop.xlane.xlu0 %2549
        %v2551 = vadd.f32 %v2518, %v2519
        %2552 = vadd.xlane.f32.xlu0 %v2551
        %v2553 = vpop.xlane.xlu0 %2552
        %v2554 = vadd.f32 %v2520, %v2521
        %2555 = vadd.xlane.f32.xlu0 %v2554
        %v2556 = vpop.xlane.xlu0 %2555
        %v2557 = vadd.f32 %v2522, %v2523
        %2558 = vadd.xlane.f32.xlu0 %v2557
        %v2559 = vpop.xlane.xlu0 %2558
        %v2560 = vadd.f32 %v2524, %v2525
        %2561 = vadd.xlane.f32.xlu0 %v2560
        %v2562 = vpop.xlane.xlu0 %2561
        %v2563 = vadd.f32 %v2526, %v2527
        %2564 = vadd.xlane.f32.xlu0 %v2563
        %v2565 = vpop.xlane.xlu0 %2564
        %v2566 = vadd.f32 %v2528, %v2529
        %2567 = vadd.xlane.f32.xlu0 %v2566
        %v2568 = vpop.xlane.xlu0 %2567
        %v2569 = vadd.f32 %v2530, %v2531
        %2570 = vadd.xlane.f32.xlu0 %v2569
        %v2571 = vpop.xlane.xlu0 %2570
        %v2572 = vadd.f32 %v2532, %v2533
        %2573 = vadd.xlane.f32.xlu0 %v2572
        %v2574 = vpop.xlane.xlu0 %2573
        %v2575 = vadd.f32 %v2534, %v2535
        %2576 = vadd.xlane.f32.xlu0 %v2575
        %v2577 = vpop.xlane.xlu0 %2576
        %v2578 = vadd.f32 %v2536, %v2537
        %2579 = vadd.xlane.f32.xlu0 %v2578
        %v2580 = vpop.xlane.xlu0 %2579
        %v2581 = vadd.f32 %v2538, %v2539
        %2582 = vadd.xlane.f32.xlu0 %v2581
        %v2583 = vpop.xlane.xlu0 %2582
        %v2584 = vadd.f32 %v2540, %v2541
        %2585 = vadd.xlane.f32.xlu0 %v2584
        %v2586 = vpop.xlane.xlu0 %2585
        %v2587 = vadd.f32 %v2542, %v2543
        %2588 = vadd.xlane.f32.xlu0 %v2587
        %v2589 = vpop.xlane.xlu0 %2588
        %v2590 = vadd.f32 %v2544, %v2545
        %2591 = vadd.xlane.f32.xlu0 %v2590
        %v2592 = vpop.xlane.xlu0 %2591
        %v2593 = vadd.f32 %v2546, %v2547
        %2594 = vadd.xlane.f32.xlu0 %v2593
        %v2595 = vpop.xlane.xlu0 %2594
        %vm2596 = vcmp.gt.f32.partialorder %v2550, %v2468
        %vm2597 = vcmp.gt.f32.partialorder %v2553, %v2469
        %vm2598 = vcmp.gt.f32.partialorder %v2556, %v2470
        %vm2599 = vcmp.gt.f32.partialorder %v2559, %v2471
        %vm2600 = vcmp.gt.f32.partialorder %v2562, %v2472
        %vm2601 = vcmp.gt.f32.partialorder %v2565, %v2473
        %vm2602 = vcmp.gt.f32.partialorder %v2568, %v2474
        %vm2603 = vcmp.gt.f32.partialorder %v2571, %v2475
        %vm2604 = vcmp.gt.f32.partialorder %v2574, %v2476
        %vm2605 = vcmp.gt.f32.partialorder %v2577, %v2477
        %vm2606 = vcmp.gt.f32.partialorder %v2580, %v2478
        %vm2607 = vcmp.gt.f32.partialorder %v2583, %v2479
        %vm2608 = vcmp.gt.f32.partialorder %v2586, %v2480
        %vm2609 = vcmp.gt.f32.partialorder %v2589, %v2481
        %vm2610 = vcmp.gt.f32.partialorder %v2592, %v2482
        %vm2611 = vcmp.gt.f32.partialorder %v2595, %v2483
        %vm2612 = vcmp.gt.f32.partialorder %v692, %v2132
        %vm2613 = vcmp.gt.f32.partialorder %v693, %v2132
        %vm2614 = vcmp.gt.f32.partialorder %v694, %v2133
        %vm2615 = vcmp.gt.f32.partialorder %v695, %v2133
        %vm2616 = vcmp.gt.f32.partialorder %v696, %v2134
        %vm2617 = vcmp.gt.f32.partialorder %v697, %v2134
        %vm2618 = vcmp.gt.f32.partialorder %v698, %v2135
        %vm2619 = vcmp.gt.f32.partialorder %v699, %v2135
        %vm2620 = vcmp.gt.f32.partialorder %v700, %v2136
        %vm2621 = vcmp.gt.f32.partialorder %v701, %v2136
        %vm2622 = vcmp.gt.f32.partialorder %v702, %v2137
        %vm2623 = vcmp.gt.f32.partialorder %v703, %v2137
        %vm2624 = vcmp.gt.f32.partialorder %v704, %v2138
        %vm2625 = vcmp.gt.f32.partialorder %v705, %v2138
        %vm2626 = vcmp.gt.f32.partialorder %v706, %v2139
        %vm2627 = vcmp.gt.f32.partialorder %v707, %v2139
        %vm2628 = vcmp.gt.f32.partialorder %v708, %v2140
        %vm2629 = vcmp.gt.f32.partialorder %v709, %v2140
        %vm2630 = vcmp.gt.f32.partialorder %v710, %v2141
        %vm2631 = vcmp.gt.f32.partialorder %v711, %v2141
        %vm2632 = vcmp.gt.f32.partialorder %v712, %v2142
        %vm2633 = vcmp.gt.f32.partialorder %v713, %v2142
        %vm2634 = vcmp.gt.f32.partialorder %v714, %v2143
        %vm2635 = vcmp.gt.f32.partialorder %v715, %v2143
        %vm2636 = vcmp.gt.f32.partialorder %v716, %v2144
        %vm2637 = vcmp.gt.f32.partialorder %v717, %v2144
        %vm2638 = vcmp.gt.f32.partialorder %v718, %v2145
        %vm2639 = vcmp.gt.f32.partialorder %v719, %v2145
        %vm2640 = vcmp.gt.f32.partialorder %v720, %v2146
        %vm2641 = vcmp.gt.f32.partialorder %v721, %v2146
        %vm2642 = vcmp.gt.f32.partialorder %v722, %v2147
        %vm2643 = vcmp.gt.f32.partialorder %v723, %v2147
        %v2644 = vsel %vm2612, %v692, inf
        %v2645 = vsel %vm2613, %v693, inf
        %v2646 = vsel %vm2614, %v694, inf
        %v2647 = vsel %vm2615, %v695, inf
        %v2648 = vsel %vm2616, %v696, inf
        %v2649 = vsel %vm2617, %v697, inf
        %v2650 = vsel %vm2618, %v698, inf
        %v2651 = vsel %vm2619, %v699, inf
        %v2652 = vsel %vm2620, %v700, inf
        %v2653 = vsel %vm2621, %v701, inf
        %v2654 = vsel %vm2622, %v702, inf
        %v2655 = vsel %vm2623, %v703, inf
        %v2656 = vsel %vm2624, %v704, inf
        %v2657 = vsel %vm2625, %v705, inf
        %v2658 = vsel %vm2626, %v706, inf
        %v2659 = vsel %vm2627, %v707, inf
        %v2660 = vsel %vm2628, %v708, inf
        %v2661 = vsel %vm2629, %v709, inf
        %v2662 = vsel %vm2630, %v710, inf
        %v2663 = vsel %vm2631, %v711, inf
        %v2664 = vsel %vm2632, %v712, inf
        %v2665 = vsel %vm2633, %v713, inf
        %v2666 = vsel %vm2634, %v714, inf
        %v2667 = vsel %vm2635, %v715, inf
        %v2668 = vsel %vm2636, %v716, inf
        %v2669 = vsel %vm2637, %v717, inf
        %v2670 = vsel %vm2638, %v718, inf
        %v2671 = vsel %vm2639, %v719, inf
        %v2672 = vsel %vm2640, %v720, inf
        %v2673 = vsel %vm2641, %v721, inf
        %v2674 = vsel %vm2642, %v722, inf
        %v2675 = vsel %vm2643, %v723, inf
        %v2676 = vmin.f32 %v2644, %v2645
        %2677 = vmin.xlane.f32.xlu0 %v2676
        %v2678 = vpop.xlane.xlu0 %2677
        %v2679 = vmin.f32 %v2646, %v2647
        %2680 = vmin.xlane.f32.xlu0 %v2679
        %v2681 = vpop.xlane.xlu0 %2680
        %v2682 = vmin.f32 %v2648, %v2649
        %2683 = vmin.xlane.f32.xlu0 %v2682
        %v2684 = vpop.xlane.xlu0 %2683
        %v2685 = vmin.f32 %v2650, %v2651
        %2686 = vmin.xlane.f32.xlu0 %v2685
        %v2687 = vpop.xlane.xlu0 %2686
        %v2688 = vmin.f32 %v2652, %v2653
        %2689 = vmin.xlane.f32.xlu0 %v2688
        %v2690 = vpop.xlane.xlu0 %2689
        %v2691 = vmin.f32 %v2654, %v2655
        %2692 = vmin.xlane.f32.xlu0 %v2691
        %v2693 = vpop.xlane.xlu0 %2692
        %v2694 = vmin.f32 %v2656, %v2657
        %2695 = vmin.xlane.f32.xlu0 %v2694
        %v2696 = vpop.xlane.xlu0 %2695
        %v2697 = vmin.f32 %v2658, %v2659
        %2698 = vmin.xlane.f32.xlu0 %v2697
        %v2699 = vpop.xlane.xlu0 %2698
        %v2700 = vmin.f32 %v2660, %v2661
        %2701 = vmin.xlane.f32.xlu0 %v2700
        %v2702 = vpop.xlane.xlu0 %2701
        %v2703 = vmin.f32 %v2662, %v2663
        %2704 = vmin.xlane.f32.xlu0 %v2703
        %v2705 = vpop.xlane.xlu0 %2704
        %v2706 = vmin.f32 %v2664, %v2665
        %2707 = vmin.xlane.f32.xlu0 %v2706
        %v2708 = vpop.xlane.xlu0 %2707
        %v2709 = vmin.f32 %v2666, %v2667
        %2710 = vmin.xlane.f32.xlu0 %v2709
        %v2711 = vpop.xlane.xlu0 %2710
        %v2712 = vmin.f32 %v2668, %v2669
        %2713 = vmin.xlane.f32.xlu0 %v2712
        %v2714 = vpop.xlane.xlu0 %2713
        %v2715 = vmin.f32 %v2670, %v2671
        %2716 = vmin.xlane.f32.xlu0 %v2715
        %v2717 = vpop.xlane.xlu0 %2716
        %v2718 = vmin.f32 %v2672, %v2673
        %2719 = vmin.xlane.f32.xlu0 %v2718
        %v2720 = vpop.xlane.xlu0 %2719
        %v2721 = vmin.f32 %v2674, %v2675
        %2722 = vmin.xlane.f32.xlu0 %v2721
        %v2723 = vpop.xlane.xlu0 %2722
        %v2724 = vsel %vm2596, %v2132, %v2678
        %v2725 = vsel %vm2597, %v2133, %v2681
        %v2726 = vsel %vm2598, %v2134, %v2684
        %v2727 = vsel %vm2599, %v2135, %v2687
        %v2728 = vsel %vm2600, %v2136, %v2690
        %v2729 = vsel %vm2601, %v2137, %v2693
        %v2730 = vsel %vm2602, %v2138, %v2696
        %v2731 = vsel %vm2603, %v2139, %v2699
        %v2732 = vsel %vm2604, %v2140, %v2702
        %v2733 = vsel %vm2605, %v2141, %v2705
        %v2734 = vsel %vm2606, %v2142, %v2708
        %v2735 = vsel %vm2607, %v2143, %v2711
        %v2736 = vsel %vm2608, %v2144, %v2714
        %v2737 = vsel %vm2609, %v2145, %v2717
        %v2738 = vsel %vm2610, %v2146, %v2720
        %v2739 = vsel %vm2611, %v2147, %v2723
        %v2740 = vrsqrt.pop %v2724
        %v2741 = vmul.f32 %v2740, %v2724
        %v2742 = vmul.f32 %v2741, %v2740
        %v2743 = vmul.f32 0.5, %v2742
        %v2744 = vsub.f32 1.5, %v2743
        %v2745 = vmul.f32 %v2740, %v2744
        %v2746 = vmul.f32 %v2724, %v2745
        %vm2747 = vcmp.eq.f32.partialorder %v2724, inf
        %v2748 = vsel %vm2747, %v2724, %v2746
        %vm2749 = vcmp.eq.f32.partialorder %v2724, 0.0
        %v2750 = vand.u32 %v2724, 2147483648
        %v2751 = vsel %vm2749, %v2750, %v2748
        %v2752 = vrsqrt.pop %v2725
        %v2753 = vmul.f32 %v2752, %v2725
        %v2754 = vmul.f32 %v2753, %v2752
        %v2755 = vmul.f32 0.5, %v2754
        %v2756 = vsub.f32 1.5, %v2755
        %v2757 = vmul.f32 %v2752, %v2756
        %v2758 = vmul.f32 %v2725, %v2757
        %vm2759 = vcmp.eq.f32.partialorder %v2725, inf
        %v2760 = vsel %vm2759, %v2725, %v2758
        %vm2761 = vcmp.eq.f32.partialorder %v2725, 0.0
        %v2762 = vand.u32 %v2725, 2147483648
        %v2763 = vsel %vm2761, %v2762, %v2760
        %v2764 = vrsqrt.pop %v2726
        %v2765 = vmul.f32 %v2764, %v2726
        %v2766 = vmul.f32 %v2765, %v2764
        %v2767 = vmul.f32 0.5, %v2766
        %v2768 = vsub.f32 1.5, %v2767
        %v2769 = vmul.f32 %v2764, %v2768
        %v2770 = vmul.f32 %v2726, %v2769
        %vm2771 = vcmp.eq.f32.partialorder %v2726, inf
        %v2772 = vsel %vm2771, %v2726, %v2770
        %vm2773 = vcmp.eq.f32.partialorder %v2726, 0.0
        %v2774 = vand.u32 %v2726, 2147483648
        %v2775 = vsel %vm2773, %v2774, %v2772
        %v2776 = vrsqrt.pop %v2727
        %v2777 = vmul.f32 %v2776, %v2727
        %v2778 = vmul.f32 %v2777, %v2776
        %v2779 = vmul.f32 0.5, %v2778
        %v2780 = vsub.f32 1.5, %v2779
        %v2781 = vmul.f32 %v2776, %v2780
        %v2782 = vmul.f32 %v2727, %v2781
        %vm2783 = vcmp.eq.f32.partialorder %v2727, inf
        %v2784 = vsel %vm2783, %v2727, %v2782
        %vm2785 = vcmp.eq.f32.partialorder %v2727, 0.0
        %v2786 = vand.u32 %v2727, 2147483648
        %v2787 = vsel %vm2785, %v2786, %v2784
        %v2788 = vrsqrt.pop %v2728
        %v2789 = vmul.f32 %v2788, %v2728
        %v2790 = vmul.f32 %v2789, %v2788
        %v2791 = vmul.f32 0.5, %v2790
        %v2792 = vsub.f32 1.5, %v2791
        %v2793 = vmul.f32 %v2788, %v2792
        %v2794 = vmul.f32 %v2728, %v2793
        %vm2795 = vcmp.eq.f32.partialorder %v2728, inf
        %v2796 = vsel %vm2795, %v2728, %v2794
        %vm2797 = vcmp.eq.f32.partialorder %v2728, 0.0
        %v2798 = vand.u32 %v2728, 2147483648
        %v2799 = vsel %vm2797, %v2798, %v2796
        %v2800 = vrsqrt.pop %v2729
        %v2801 = vmul.f32 %v2800, %v2729
        %v2802 = vmul.f32 %v2801, %v2800
        %v2803 = vmul.f32 0.5, %v2802
        %v2804 = vsub.f32 1.5, %v2803
        %v2805 = vmul.f32 %v2800, %v2804
        %v2806 = vmul.f32 %v2729, %v2805
        %vm2807 = vcmp.eq.f32.partialorder %v2729, inf
        %v2808 = vsel %vm2807, %v2729, %v2806
        %vm2809 = vcmp.eq.f32.partialorder %v2729, 0.0
        %v2810 = vand.u32 %v2729, 2147483648
        %v2811 = vsel %vm2809, %v2810, %v2808
        %v2812 = vrsqrt.pop %v2730
        %v2813 = vmul.f32 %v2812, %v2730
        %v2814 = vmul.f32 %v2813, %v2812
        %v2815 = vmul.f32 0.5, %v2814
        %v2816 = vsub.f32 1.5, %v2815
        %v2817 = vmul.f32 %v2812, %v2816
        %v2818 = vmul.f32 %v2730, %v2817
        %vm2819 = vcmp.eq.f32.partialorder %v2730, inf
        %v2820 = vsel %vm2819, %v2730, %v2818
        %vm2821 = vcmp.eq.f32.partialorder %v2730, 0.0
        %v2822 = vand.u32 %v2730, 2147483648
        %v2823 = vsel %vm2821, %v2822, %v2820
        %v2824 = vrsqrt.pop %v2731
        %v2825 = vmul.f32 %v2824, %v2731
        %v2826 = vmul.f32 %v2825, %v2824
        %v2827 = vmul.f32 0.5, %v2826
        %v2828 = vsub.f32 1.5, %v2827
        %v2829 = vmul.f32 %v2824, %v2828
        %v2830 = vmul.f32 %v2731, %v2829
        %vm2831 = vcmp.eq.f32.partialorder %v2731, inf
        %v2832 = vsel %vm2831, %v2731, %v2830
        %vm2833 = vcmp.eq.f32.partialorder %v2731, 0.0
        %v2834 = vand.u32 %v2731, 2147483648
        %v2835 = vsel %vm2833, %v2834, %v2832
        %v2836 = vrsqrt.pop %v2732
        %v2837 = vmul.f32 %v2836, %v2732
        %v2838 = vmul.f32 %v2837, %v2836
        %v2839 = vmul.f32 0.5, %v2838
        %v2840 = vsub.f32 1.5, %v2839
        %v2841 = vmul.f32 %v2836, %v2840
        %v2842 = vmul.f32 %v2732, %v2841
        %vm2843 = vcmp.eq.f32.partialorder %v2732, inf
        %v2844 = vsel %vm2843, %v2732, %v2842
        %vm2845 = vcmp.eq.f32.partialorder %v2732, 0.0
        %v2846 = vand.u32 %v2732, 2147483648
        %v2847 = vsel %vm2845, %v2846, %v2844
        %v2848 = vrsqrt.pop %v2733
        %v2849 = vmul.f32 %v2848, %v2733
        %v2850 = vmul.f32 %v2849, %v2848
        %v2851 = vmul.f32 0.5, %v2850
        %v2852 = vsub.f32 1.5, %v2851
        %v2853 = vmul.f32 %v2848, %v2852
        %v2854 = vmul.f32 %v2733, %v2853
        %vm2855 = vcmp.eq.f32.partialorder %v2733, inf
        %v2856 = vsel %vm2855, %v2733, %v2854
        %vm2857 = vcmp.eq.f32.partialorder %v2733, 0.0
        %v2858 = vand.u32 %v2733, 2147483648
        %v2859 = vsel %vm2857, %v2858, %v2856
        %v2860 = vrsqrt.pop %v2734
        %v2861 = vmul.f32 %v2860, %v2734
        %v2862 = vmul.f32 %v2861, %v2860
        %v2863 = vmul.f32 0.5, %v2862
        %v2864 = vsub.f32 1.5, %v2863
        %v2865 = vmul.f32 %v2860, %v2864
        %v2866 = vmul.f32 %v2734, %v2865
        %vm2867 = vcmp.eq.f32.partialorder %v2734, inf
        %v2868 = vsel %vm2867, %v2734, %v2866
        %vm2869 = vcmp.eq.f32.partialorder %v2734, 0.0
        %v2870 = vand.u32 %v2734, 2147483648
        %v2871 = vsel %vm2869, %v2870, %v2868
        %v2872 = vrsqrt.pop %v2735
        %v2873 = vmul.f32 %v2872, %v2735
        %v2874 = vmul.f32 %v2873, %v2872
        %v2875 = vmul.f32 0.5, %v2874
        %v2876 = vsub.f32 1.5, %v2875
        %v2877 = vmul.f32 %v2872, %v2876
        %v2878 = vmul.f32 %v2735, %v2877
        %vm2879 = vcmp.eq.f32.partialorder %v2735, inf
        %v2880 = vsel %vm2879, %v2735, %v2878
        %vm2881 = vcmp.eq.f32.partialorder %v2735, 0.0
        %v2882 = vand.u32 %v2735, 2147483648
        %v2883 = vsel %vm2881, %v2882, %v2880
        %v2884 = vrsqrt.pop %v2736
        %v2885 = vmul.f32 %v2884, %v2736
        %v2886 = vmul.f32 %v2885, %v2884
        %v2887 = vmul.f32 0.5, %v2886
        %v2888 = vsub.f32 1.5, %v2887
        %v2889 = vmul.f32 %v2884, %v2888
        %v2890 = vmul.f32 %v2736, %v2889
        %vm2891 = vcmp.eq.f32.partialorder %v2736, inf
        %v2892 = vsel %vm2891, %v2736, %v2890
        %vm2893 = vcmp.eq.f32.partialorder %v2736, 0.0
        %v2894 = vand.u32 %v2736, 2147483648
        %v2895 = vsel %vm2893, %v2894, %v2892
        %v2896 = vrsqrt.pop %v2737
        %v2897 = vmul.f32 %v2896, %v2737
        %v2898 = vmul.f32 %v2897, %v2896
        %v2899 = vmul.f32 0.5, %v2898
        %v2900 = vsub.f32 1.5, %v2899
        %v2901 = vmul.f32 %v2896, %v2900
        %v2902 = vmul.f32 %v2737, %v2901
        %vm2903 = vcmp.eq.f32.partialorder %v2737, inf
        %v2904 = vsel %vm2903, %v2737, %v2902
        %vm2905 = vcmp.eq.f32.partialorder %v2737, 0.0
        %v2906 = vand.u32 %v2737, 2147483648
        %v2907 = vsel %vm2905, %v2906, %v2904
        %v2908 = vrsqrt.pop %v2738
        %v2909 = vmul.f32 %v2908, %v2738
        %v2910 = vmul.f32 %v2909, %v2908
        %v2911 = vmul.f32 0.5, %v2910
        %v2912 = vsub.f32 1.5, %v2911
        %v2913 = vmul.f32 %v2908, %v2912
        %v2914 = vmul.f32 %v2738, %v2913
        %vm2915 = vcmp.eq.f32.partialorder %v2738, inf
        %v2916 = vsel %vm2915, %v2738, %v2914
        %vm2917 = vcmp.eq.f32.partialorder %v2738, 0.0
        %v2918 = vand.u32 %v2738, 2147483648
        %v2919 = vsel %vm2917, %v2918, %v2916
        %v2920 = vrsqrt.pop %v2739
        %v2921 = vmul.f32 %v2920, %v2739
        %v2922 = vmul.f32 %v2921, %v2920
        %v2923 = vmul.f32 0.5, %v2922
        %v2924 = vsub.f32 1.5, %v2923
        %v2925 = vmul.f32 %v2920, %v2924
        %v2926 = vmul.f32 %v2739, %v2925
        %vm2927 = vcmp.eq.f32.partialorder %v2739, inf
        %v2928 = vsel %vm2927, %v2739, %v2926
        %vm2929 = vcmp.eq.f32.partialorder %v2739, 0.0
        %v2930 = vand.u32 %v2739, 2147483648
        %v2931 = vsel %vm2929, %v2930, %v2928
        %v2932 = vsub.f32 0.0, %v2724
        %v2933 = vsub.f32 0.0, %v2725
        %v2934 = vsub.f32 0.0, %v2726
        %v2935 = vsub.f32 0.0, %v2727
        %v2936 = vsub.f32 0.0, %v2728
        %v2937 = vsub.f32 0.0, %v2729
        %v2938 = vsub.f32 0.0, %v2730
        %v2939 = vsub.f32 0.0, %v2731
        %v2940 = vsub.f32 0.0, %v2732
        %v2941 = vsub.f32 0.0, %v2733
        %v2942 = vsub.f32 0.0, %v2734
        %v2943 = vsub.f32 0.0, %v2735
        %v2944 = vsub.f32 0.0, %v2736
        %v2945 = vsub.f32 0.0, %v2737
        %v2946 = vsub.f32 0.0, %v2738
        %v2947 = vsub.f32 0.0, %v2739
        %v2948 = vmul.f32 %v2932, 1111.1111
        %v2949 = vmul.f32 %v2933, 1111.1111
        %v2950 = vmul.f32 %v2934, 1111.1111
        %v2951 = vmul.f32 %v2935, 1111.1111
        %v2952 = vmul.f32 %v2936, 1111.1111
        %v2953 = vmul.f32 %v2937, 1111.1111
        %v2954 = vmul.f32 %v2938, 1111.1111
        %v2955 = vmul.f32 %v2939, 1111.1111
        %v2956 = vmul.f32 %v2940, 1111.1111
        %v2957 = vmul.f32 %v2941, 1111.1111
        %v2958 = vmul.f32 %v2942, 1111.1111
        %v2959 = vmul.f32 %v2943, 1111.1111
        %v2960 = vmul.f32 %v2944, 1111.1111
        %v2961 = vmul.f32 %v2945, 1111.1111
        %v2962 = vmul.f32 %v2946, 1111.1111
        %v2963 = vmul.f32 %v2947, 1111.1111
        %v2964 = vmul.f32 %v2948, 1.442695
        %v2965 = vpow.pop %v2964
        %v2966 = vmul.f32 %v2949, 1.442695
        %v2967 = vpow.pop %v2966
        %v2968 = vmul.f32 %v2950, 1.442695
        %v2969 = vpow.pop %v2968
        %v2970 = vmul.f32 %v2951, 1.442695
        %v2971 = vpow.pop %v2970
        %v2972 = vmul.f32 %v2952, 1.442695
        %v2973 = vpow.pop %v2972
        %v2974 = vmul.f32 %v2953, 1.442695
        %v2975 = vpow.pop %v2974
        %v2976 = vmul.f32 %v2954, 1.442695
        %v2977 = vpow.pop %v2976
        %v2978 = vmul.f32 %v2955, 1.442695
        %v2979 = vpow.pop %v2978
        %v2980 = vmul.f32 %v2956, 1.442695
        %v2981 = vpow.pop %v2980
        %v2982 = vmul.f32 %v2957, 1.442695
        %v2983 = vpow.pop %v2982
        %v2984 = vmul.f32 %v2958, 1.442695
        %v2985 = vpow.pop %v2984
        %v2986 = vmul.f32 %v2959, 1.442695
        %v2987 = vpow.pop %v2986
        %v2988 = vmul.f32 %v2960, 1.442695
        %v2989 = vpow.pop %v2988
        %v2990 = vmul.f32 %v2961, 1.442695
        %v2991 = vpow.pop %v2990
        %v2992 = vmul.f32 %v2962, 1.442695
        %v2993 = vpow.pop %v2992
        %v2994 = vmul.f32 %v2963, 1.442695
        %v2995 = vpow.pop %v2994
        %v2996 = vsub.f32 0.07, %v2751
        %v2997 = vsub.f32 0.07, %v2763
        %v2998 = vsub.f32 0.07, %v2775
        %v2999 = vsub.f32 0.07, %v2787
        %v3000 = vsub.f32 0.07, %v2799
        %v3001 = vsub.f32 0.07, %v2811
        %v3002 = vsub.f32 0.07, %v2823
        %v3003 = vsub.f32 0.07, %v2835
        %v3004 = vsub.f32 0.07, %v2847
        %v3005 = vsub.f32 0.07, %v2859
        %v3006 = vsub.f32 0.07, %v2871
        %v3007 = vsub.f32 0.07, %v2883
        %v3008 = vsub.f32 0.07, %v2895
        %v3009 = vsub.f32 0.07, %v2907
        %v3010 = vsub.f32 0.07, %v2919
        %v3011 = vsub.f32 0.07, %v2931
        %v3012 = vmul.f32 %v2996, %v2965
        %v3013 = vmul.f32 %v2997, %v2967
        %v3014 = vmul.f32 %v2998, %v2969
        %v3015 = vmul.f32 %v2999, %v2971
        %v3016 = vmul.f32 %v3000, %v2973
        %v3017 = vmul.f32 %v3001, %v2975
        %v3018 = vmul.f32 %v3002, %v2977
        %v3019 = vmul.f32 %v3003, %v2979
        %v3020 = vmul.f32 %v3004, %v2981
        %v3021 = vmul.f32 %v3005, %v2983
        %v3022 = vmul.f32 %v3006, %v2985
        %v3023 = vmul.f32 %v3007, %v2987
        %v3024 = vmul.f32 %v3008, %v2989
        %v3025 = vmul.f32 %v3009, %v2991
        %v3026 = vmul.f32 %v3010, %v2993
        %v3027 = vmul.f32 %v3011, %v2995
        %v3028 = vadd.f32 %v2436, %v3012
        %v3029 = vadd.f32 %v2437, %v3013
        %v3030 = vadd.f32 %v2438, %v3014
        %v3031 = vadd.f32 %v2439, %v3015
        %v3032 = vadd.f32 %v2440, %v3016
        %v3033 = vadd.f32 %v2441, %v3017
        %v3034 = vadd.f32 %v2442, %v3018
        %v3035 = vadd.f32 %v2443, %v3019
        %v3036 = vadd.f32 %v2444, %v3020
        %v3037 = vadd.f32 %v2445, %v3021
        %v3038 = vadd.f32 %v2446, %v3022
        %v3039 = vadd.f32 %v2447, %v3023
        %v3040 = vadd.f32 %v2448, %v3024
        %v3041 = vadd.f32 %v2449, %v3025
        %v3042 = vadd.f32 %v2450, %v3026
        %v3043 = vadd.f32 %v2451, %v3027
        %v3044 = vadd.f32 %v2468, 1.0
        %v3045 = vadd.f32 %v2469, 1.0
        %v3046 = vadd.f32 %v2470, 1.0
        %v3047 = vadd.f32 %v2471, 1.0
        %v3048 = vadd.f32 %v2472, 1.0
        %v3049 = vadd.f32 %v2473, 1.0
        %v3050 = vadd.f32 %v2474, 1.0
        %v3051 = vadd.f32 %v2475, 1.0
        %v3052 = vadd.f32 %v2476, 1.0
        %v3053 = vadd.f32 %v2477, 1.0
        %v3054 = vadd.f32 %v2478, 1.0
        %v3055 = vadd.f32 %v2479, 1.0
        %v3056 = vadd.f32 %v2480, 1.0
        %v3057 = vadd.f32 %v2481, 1.0
        %v3058 = vadd.f32 %v2482, 1.0
        %v3059 = vadd.f32 %v2483, 1.0
        %v3060 = vsel %vm2596, %v3044, 1.0
        %v3061 = vsel %vm2597, %v3045, 1.0
        %v3062 = vsel %vm2598, %v3046, 1.0
        %v3063 = vsel %vm2599, %v3047, 1.0
        %v3064 = vsel %vm2600, %v3048, 1.0
        %v3065 = vsel %vm2601, %v3049, 1.0
        %v3066 = vsel %vm2602, %v3050, 1.0
        %v3067 = vsel %vm2603, %v3051, 1.0
        %v3068 = vsel %vm2604, %v3052, 1.0
        %v3069 = vsel %vm2605, %v3053, 1.0
        %v3070 = vsel %vm2606, %v3054, 1.0
        %v3071 = vsel %vm2607, %v3055, 1.0
        %v3072 = vsel %vm2608, %v3056, 1.0
        %v3073 = vsel %vm2609, %v3057, 1.0
        %v3074 = vsel %vm2610, %v3058, 1.0
        %v3075 = vsel %vm2611, %v3059, 1.0
        %vm3076 = vcmp.eq.f32.partialorder %v692, %v2724
        %vm3077 = vcmp.eq.f32.partialorder %v693, %v2724
        %vm3078 = vcmp.eq.f32.partialorder %v694, %v2725
        %vm3079 = vcmp.eq.f32.partialorder %v695, %v2725
        %vm3080 = vcmp.eq.f32.partialorder %v696, %v2726
        %vm3081 = vcmp.eq.f32.partialorder %v697, %v2726
        %vm3082 = vcmp.eq.f32.partialorder %v698, %v2727
        %vm3083 = vcmp.eq.f32.partialorder %v699, %v2727
        %vm3084 = vcmp.eq.f32.partialorder %v700, %v2728
        %vm3085 = vcmp.eq.f32.partialorder %v701, %v2728
        %vm3086 = vcmp.eq.f32.partialorder %v702, %v2729
        %vm3087 = vcmp.eq.f32.partialorder %v703, %v2729
        %vm3088 = vcmp.eq.f32.partialorder %v704, %v2730
        %vm3089 = vcmp.eq.f32.partialorder %v705, %v2730
        %vm3090 = vcmp.eq.f32.partialorder %v706, %v2731
        %vm3091 = vcmp.eq.f32.partialorder %v707, %v2731
        %vm3092 = vcmp.eq.f32.partialorder %v708, %v2732
        %vm3093 = vcmp.eq.f32.partialorder %v709, %v2732
        %vm3094 = vcmp.eq.f32.partialorder %v710, %v2733
        %vm3095 = vcmp.eq.f32.partialorder %v711, %v2733
        %vm3096 = vcmp.eq.f32.partialorder %v712, %v2734
        %vm3097 = vcmp.eq.f32.partialorder %v713, %v2734
        %vm3098 = vcmp.eq.f32.partialorder %v714, %v2735
        %vm3099 = vcmp.eq.f32.partialorder %v715, %v2735
        %vm3100 = vcmp.eq.f32.partialorder %v716, %v2736
        %vm3101 = vcmp.eq.f32.partialorder %v717, %v2736
        %vm3102 = vcmp.eq.f32.partialorder %v718, %v2737
        %vm3103 = vcmp.eq.f32.partialorder %v719, %v2737
        %vm3104 = vcmp.eq.f32.partialorder %v720, %v2738
        %vm3105 = vcmp.eq.f32.partialorder %v721, %v2738
        %vm3106 = vcmp.eq.f32.partialorder %v722, %v2739
        %vm3107 = vcmp.eq.f32.partialorder %v723, %v2739
        %v3108 = vsel %vm3076, 1.0, 0.0
        %v3109 = vsel %vm3077, 1.0, 0.0
        %v3110 = vsel %vm3078, 1.0, 0.0
        %v3111 = vsel %vm3079, 1.0, 0.0
        %v3112 = vsel %vm3080, 1.0, 0.0
        %v3113 = vsel %vm3081, 1.0, 0.0
        %v3114 = vsel %vm3082, 1.0, 0.0
        %v3115 = vsel %vm3083, 1.0, 0.0
        %v3116 = vsel %vm3084, 1.0, 0.0
        %v3117 = vsel %vm3085, 1.0, 0.0
        %v3118 = vsel %vm3086, 1.0, 0.0
        %v3119 = vsel %vm3087, 1.0, 0.0
        %v3120 = vsel %vm3088, 1.0, 0.0
        %v3121 = vsel %vm3089, 1.0, 0.0
        %v3122 = vsel %vm3090, 1.0, 0.0
        %v3123 = vsel %vm3091, 1.0, 0.0
        %v3124 = vsel %vm3092, 1.0, 0.0
        %v3125 = vsel %vm3093, 1.0, 0.0
        %v3126 = vsel %vm3094, 1.0, 0.0
        %v3127 = vsel %vm3095, 1.0, 0.0
        %v3128 = vsel %vm3096, 1.0, 0.0
        %v3129 = vsel %vm3097, 1.0, 0.0
        %v3130 = vsel %vm3098, 1.0, 0.0
        %v3131 = vsel %vm3099, 1.0, 0.0
        %v3132 = vsel %vm3100, 1.0, 0.0
        %v3133 = vsel %vm3101, 1.0, 0.0
        %v3134 = vsel %vm3102, 1.0, 0.0
        %v3135 = vsel %vm3103, 1.0, 0.0
        %v3136 = vsel %vm3104, 1.0, 0.0
        %v3137 = vsel %vm3105, 1.0, 0.0
        %v3138 = vsel %vm3106, 1.0, 0.0
        %v3139 = vsel %vm3107, 1.0, 0.0
        %v3140 = vadd.f32 %v3108, %v3109
        %3141 = vadd.xlane.f32.xlu0 %v3140
        %v3142 = vpop.xlane.xlu0 %3141
        %v3143 = vadd.f32 %v3110, %v3111
        %3144 = vadd.xlane.f32.xlu0 %v3143
        %v3145 = vpop.xlane.xlu0 %3144
        %v3146 = vadd.f32 %v3112, %v3113
        %3147 = vadd.xlane.f32.xlu0 %v3146
        %v3148 = vpop.xlane.xlu0 %3147
        %v3149 = vadd.f32 %v3114, %v3115
        %3150 = vadd.xlane.f32.xlu0 %v3149
        %v3151 = vpop.xlane.xlu0 %3150
        %v3152 = vadd.f32 %v3116, %v3117
        %3153 = vadd.xlane.f32.xlu0 %v3152
        %v3154 = vpop.xlane.xlu0 %3153
        %v3155 = vadd.f32 %v3118, %v3119
        %3156 = vadd.xlane.f32.xlu0 %v3155
        %v3157 = vpop.xlane.xlu0 %3156
        %v3158 = vadd.f32 %v3120, %v3121
        %3159 = vadd.xlane.f32.xlu0 %v3158
        %v3160 = vpop.xlane.xlu0 %3159
        %v3161 = vadd.f32 %v3122, %v3123
        %3162 = vadd.xlane.f32.xlu0 %v3161
        %v3163 = vpop.xlane.xlu0 %3162
        %v3164 = vadd.f32 %v3124, %v3125
        %3165 = vadd.xlane.f32.xlu0 %v3164
        %v3166 = vpop.xlane.xlu0 %3165
        %v3167 = vadd.f32 %v3126, %v3127
        %3168 = vadd.xlane.f32.xlu0 %v3167
        %v3169 = vpop.xlane.xlu0 %3168
        %v3170 = vadd.f32 %v3128, %v3129
        %3171 = vadd.xlane.f32.xlu0 %v3170
        %v3172 = vpop.xlane.xlu0 %3171
        %v3173 = vadd.f32 %v3130, %v3131
        %3174 = vadd.xlane.f32.xlu0 %v3173
        %v3175 = vpop.xlane.xlu0 %3174
        %v3176 = vadd.f32 %v3132, %v3133
        %3177 = vadd.xlane.f32.xlu0 %v3176
        %v3178 = vpop.xlane.xlu0 %3177
        %v3179 = vadd.f32 %v3134, %v3135
        %3180 = vadd.xlane.f32.xlu0 %v3179
        %v3181 = vpop.xlane.xlu0 %3180
        %v3182 = vadd.f32 %v3136, %v3137
        %3183 = vadd.xlane.f32.xlu0 %v3182
        %v3184 = vpop.xlane.xlu0 %3183
        %v3185 = vadd.f32 %v3138, %v3139
        %3186 = vadd.xlane.f32.xlu0 %v3185
        %v3187 = vpop.xlane.xlu0 %3186
        %vm3188 = vcmp.gt.f32.partialorder %v3142, %v3060
        %vm3189 = vcmp.gt.f32.partialorder %v3145, %v3061
        %vm3190 = vcmp.gt.f32.partialorder %v3148, %v3062
        %vm3191 = vcmp.gt.f32.partialorder %v3151, %v3063
        %vm3192 = vcmp.gt.f32.partialorder %v3154, %v3064
        %vm3193 = vcmp.gt.f32.partialorder %v3157, %v3065
        %vm3194 = vcmp.gt.f32.partialorder %v3160, %v3066
        %vm3195 = vcmp.gt.f32.partialorder %v3163, %v3067
        %vm3196 = vcmp.gt.f32.partialorder %v3166, %v3068
        %vm3197 = vcmp.gt.f32.partialorder %v3169, %v3069
        %vm3198 = vcmp.gt.f32.partialorder %v3172, %v3070
        %vm3199 = vcmp.gt.f32.partialorder %v3175, %v3071
        %vm3200 = vcmp.gt.f32.partialorder %v3178, %v3072
        %vm3201 = vcmp.gt.f32.partialorder %v3181, %v3073
        %vm3202 = vcmp.gt.f32.partialorder %v3184, %v3074
        %vm3203 = vcmp.gt.f32.partialorder %v3187, %v3075
        %vm3204 = vcmp.gt.f32.partialorder %v692, %v2724
        %vm3205 = vcmp.gt.f32.partialorder %v693, %v2724
        %vm3206 = vcmp.gt.f32.partialorder %v694, %v2725
        %vm3207 = vcmp.gt.f32.partialorder %v695, %v2725
        %vm3208 = vcmp.gt.f32.partialorder %v696, %v2726
        %vm3209 = vcmp.gt.f32.partialorder %v697, %v2726
        %vm3210 = vcmp.gt.f32.partialorder %v698, %v2727
        %vm3211 = vcmp.gt.f32.partialorder %v699, %v2727
        %vm3212 = vcmp.gt.f32.partialorder %v700, %v2728
        %vm3213 = vcmp.gt.f32.partialorder %v701, %v2728
        %vm3214 = vcmp.gt.f32.partialorder %v702, %v2729
        %vm3215 = vcmp.gt.f32.partialorder %v703, %v2729
        %vm3216 = vcmp.gt.f32.partialorder %v704, %v2730
        %vm3217 = vcmp.gt.f32.partialorder %v705, %v2730
        %vm3218 = vcmp.gt.f32.partialorder %v706, %v2731
        %vm3219 = vcmp.gt.f32.partialorder %v707, %v2731
        %vm3220 = vcmp.gt.f32.partialorder %v708, %v2732
        %vm3221 = vcmp.gt.f32.partialorder %v709, %v2732
        %vm3222 = vcmp.gt.f32.partialorder %v710, %v2733
        %vm3223 = vcmp.gt.f32.partialorder %v711, %v2733
        %vm3224 = vcmp.gt.f32.partialorder %v712, %v2734
        %vm3225 = vcmp.gt.f32.partialorder %v713, %v2734
        %vm3226 = vcmp.gt.f32.partialorder %v714, %v2735
        %vm3227 = vcmp.gt.f32.partialorder %v715, %v2735
        %vm3228 = vcmp.gt.f32.partialorder %v716, %v2736
        %vm3229 = vcmp.gt.f32.partialorder %v717, %v2736
        %vm3230 = vcmp.gt.f32.partialorder %v718, %v2737
        %vm3231 = vcmp.gt.f32.partialorder %v719, %v2737
        %vm3232 = vcmp.gt.f32.partialorder %v720, %v2738
        %vm3233 = vcmp.gt.f32.partialorder %v721, %v2738
        %vm3234 = vcmp.gt.f32.partialorder %v722, %v2739
        %vm3235 = vcmp.gt.f32.partialorder %v723, %v2739
        %v3236 = vsel %vm3204, %v692, inf
        %v3237 = vsel %vm3205, %v693, inf
        %v3238 = vsel %vm3206, %v694, inf
        %v3239 = vsel %vm3207, %v695, inf
        %v3240 = vsel %vm3208, %v696, inf
        %v3241 = vsel %vm3209, %v697, inf
        %v3242 = vsel %vm3210, %v698, inf
        %v3243 = vsel %vm3211, %v699, inf
        %v3244 = vsel %vm3212, %v700, inf
        %v3245 = vsel %vm3213, %v701, inf
        %v3246 = vsel %vm3214, %v702, inf
        %v3247 = vsel %vm3215, %v703, inf
        %v3248 = vsel %vm3216, %v704, inf
        %v3249 = vsel %vm3217, %v705, inf
        %v3250 = vsel %vm3218, %v706, inf
        %v3251 = vsel %vm3219, %v707, inf
        %v3252 = vsel %vm3220, %v708, inf
        %v3253 = vsel %vm3221, %v709, inf
        %v3254 = vsel %vm3222, %v710, inf
        %v3255 = vsel %vm3223, %v711, inf
        %v3256 = vsel %vm3224, %v712, inf
        %v3257 = vsel %vm3225, %v713, inf
        %v3258 = vsel %vm3226, %v714, inf
        %v3259 = vsel %vm3227, %v715, inf
        %v3260 = vsel %vm3228, %v716, inf
        %v3261 = vsel %vm3229, %v717, inf
        %v3262 = vsel %vm3230, %v718, inf
        %v3263 = vsel %vm3231, %v719, inf
        %v3264 = vsel %vm3232, %v720, inf
        %v3265 = vsel %vm3233, %v721, inf
        %v3266 = vsel %vm3234, %v722, inf
        %v3267 = vsel %vm3235, %v723, inf
        %v3268 = vmin.f32 %v3236, %v3237
        %3269 = vmin.xlane.f32.xlu0 %v3268
        %v3270 = vpop.xlane.xlu0 %3269
        %v3271 = vmin.f32 %v3238, %v3239
        %3272 = vmin.xlane.f32.xlu0 %v3271
        %v3273 = vpop.xlane.xlu0 %3272
        %v3274 = vmin.f32 %v3240, %v3241
        %3275 = vmin.xlane.f32.xlu0 %v3274
        %v3276 = vpop.xlane.xlu0 %3275
        %v3277 = vmin.f32 %v3242, %v3243
        %3278 = vmin.xlane.f32.xlu0 %v3277
        %v3279 = vpop.xlane.xlu0 %3278
        %v3280 = vmin.f32 %v3244, %v3245
        %3281 = vmin.xlane.f32.xlu0 %v3280
        %v3282 = vpop.xlane.xlu0 %3281
        %v3283 = vmin.f32 %v3246, %v3247
        %3284 = vmin.xlane.f32.xlu0 %v3283
        %v3285 = vpop.xlane.xlu0 %3284
        %v3286 = vmin.f32 %v3248, %v3249
        %3287 = vmin.xlane.f32.xlu0 %v3286
        %v3288 = vpop.xlane.xlu0 %3287
        %v3289 = vmin.f32 %v3250, %v3251
        %3290 = vmin.xlane.f32.xlu0 %v3289
        %v3291 = vpop.xlane.xlu0 %3290
        %v3292 = vmin.f32 %v3252, %v3253
        %3293 = vmin.xlane.f32.xlu0 %v3292
        %v3294 = vpop.xlane.xlu0 %3293
        %v3295 = vmin.f32 %v3254, %v3255
        %3296 = vmin.xlane.f32.xlu0 %v3295
        %v3297 = vpop.xlane.xlu0 %3296
        %v3298 = vmin.f32 %v3256, %v3257
        %3299 = vmin.xlane.f32.xlu0 %v3298
        %v3300 = vpop.xlane.xlu0 %3299
        %v3301 = vmin.f32 %v3258, %v3259
        %3302 = vmin.xlane.f32.xlu0 %v3301
        %v3303 = vpop.xlane.xlu0 %3302
        %v3304 = vmin.f32 %v3260, %v3261
        %3305 = vmin.xlane.f32.xlu0 %v3304
        %v3306 = vpop.xlane.xlu0 %3305
        %v3307 = vmin.f32 %v3262, %v3263
        %3308 = vmin.xlane.f32.xlu0 %v3307
        %v3309 = vpop.xlane.xlu0 %3308
        %v3310 = vmin.f32 %v3264, %v3265
        %3311 = vmin.xlane.f32.xlu0 %v3310
        %v3312 = vpop.xlane.xlu0 %3311
        %v3313 = vmin.f32 %v3266, %v3267
        %3314 = vmin.xlane.f32.xlu0 %v3313
        %v3315 = vpop.xlane.xlu0 %3314
        %v3316 = vsel %vm3188, %v2724, %v3270
        %v3317 = vsel %vm3189, %v2725, %v3273
        %v3318 = vsel %vm3190, %v2726, %v3276
        %v3319 = vsel %vm3191, %v2727, %v3279
        %v3320 = vsel %vm3192, %v2728, %v3282
        %v3321 = vsel %vm3193, %v2729, %v3285
        %v3322 = vsel %vm3194, %v2730, %v3288
        %v3323 = vsel %vm3195, %v2731, %v3291
        %v3324 = vsel %vm3196, %v2732, %v3294
        %v3325 = vsel %vm3197, %v2733, %v3297
        %v3326 = vsel %vm3198, %v2734, %v3300
        %v3327 = vsel %vm3199, %v2735, %v3303
        %v3328 = vsel %vm3200, %v2736, %v3306
        %v3329 = vsel %vm3201, %v2737, %v3309
        %v3330 = vsel %vm3202, %v2738, %v3312
        %v3331 = vsel %vm3203, %v2739, %v3315
        %v3332 = vrsqrt.pop %v3316
        %v3333 = vmul.f32 %v3332, %v3316
        %v3334 = vmul.f32 %v3333, %v3332
        %v3335 = vmul.f32 0.5, %v3334
        %v3336 = vsub.f32 1.5, %v3335
        %v3337 = vmul.f32 %v3332, %v3336
        %v3338 = vmul.f32 %v3316, %v3337
        %vm3339 = vcmp.eq.f32.partialorder %v3316, inf
        %v3340 = vsel %vm3339, %v3316, %v3338
        %vm3341 = vcmp.eq.f32.partialorder %v3316, 0.0
        %v3342 = vand.u32 %v3316, 2147483648
        %v3343 = vsel %vm3341, %v3342, %v3340
        %v3344 = vrsqrt.pop %v3317
        %v3345 = vmul.f32 %v3344, %v3317
        %v3346 = vmul.f32 %v3345, %v3344
        %v3347 = vmul.f32 0.5, %v3346
        %v3348 = vsub.f32 1.5, %v3347
        %v3349 = vmul.f32 %v3344, %v3348
        %v3350 = vmul.f32 %v3317, %v3349
        %vm3351 = vcmp.eq.f32.partialorder %v3317, inf
        %v3352 = vsel %vm3351, %v3317, %v3350
        %vm3353 = vcmp.eq.f32.partialorder %v3317, 0.0
        %v3354 = vand.u32 %v3317, 2147483648
        %v3355 = vsel %vm3353, %v3354, %v3352
        %v3356 = vrsqrt.pop %v3318
        %v3357 = vmul.f32 %v3356, %v3318
        %v3358 = vmul.f32 %v3357, %v3356
        %v3359 = vmul.f32 0.5, %v3358
        %v3360 = vsub.f32 1.5, %v3359
        %v3361 = vmul.f32 %v3356, %v3360
        %v3362 = vmul.f32 %v3318, %v3361
        %vm3363 = vcmp.eq.f32.partialorder %v3318, inf
        %v3364 = vsel %vm3363, %v3318, %v3362
        %vm3365 = vcmp.eq.f32.partialorder %v3318, 0.0
        %v3366 = vand.u32 %v3318, 2147483648
        %v3367 = vsel %vm3365, %v3366, %v3364
        %v3368 = vrsqrt.pop %v3319
        %v3369 = vmul.f32 %v3368, %v3319
        %v3370 = vmul.f32 %v3369, %v3368
        %v3371 = vmul.f32 0.5, %v3370
        %v3372 = vsub.f32 1.5, %v3371
        %v3373 = vmul.f32 %v3368, %v3372
        %v3374 = vmul.f32 %v3319, %v3373
        %vm3375 = vcmp.eq.f32.partialorder %v3319, inf
        %v3376 = vsel %vm3375, %v3319, %v3374
        %vm3377 = vcmp.eq.f32.partialorder %v3319, 0.0
        %v3378 = vand.u32 %v3319, 2147483648
        %v3379 = vsel %vm3377, %v3378, %v3376
        %v3380 = vrsqrt.pop %v3320
        %v3381 = vmul.f32 %v3380, %v3320
        %v3382 = vmul.f32 %v3381, %v3380
        %v3383 = vmul.f32 0.5, %v3382
        %v3384 = vsub.f32 1.5, %v3383
        %v3385 = vmul.f32 %v3380, %v3384
        %v3386 = vmul.f32 %v3320, %v3385
        %vm3387 = vcmp.eq.f32.partialorder %v3320, inf
        %v3388 = vsel %vm3387, %v3320, %v3386
        %vm3389 = vcmp.eq.f32.partialorder %v3320, 0.0
        %v3390 = vand.u32 %v3320, 2147483648
        %v3391 = vsel %vm3389, %v3390, %v3388
        %v3392 = vrsqrt.pop %v3321
        %v3393 = vmul.f32 %v3392, %v3321
        %v3394 = vmul.f32 %v3393, %v3392
        %v3395 = vmul.f32 0.5, %v3394
        %v3396 = vsub.f32 1.5, %v3395
        %v3397 = vmul.f32 %v3392, %v3396
        %v3398 = vmul.f32 %v3321, %v3397
        %vm3399 = vcmp.eq.f32.partialorder %v3321, inf
        %v3400 = vsel %vm3399, %v3321, %v3398
        %vm3401 = vcmp.eq.f32.partialorder %v3321, 0.0
        %v3402 = vand.u32 %v3321, 2147483648
        %v3403 = vsel %vm3401, %v3402, %v3400
        %v3404 = vrsqrt.pop %v3322
        %v3405 = vmul.f32 %v3404, %v3322
        %v3406 = vmul.f32 %v3405, %v3404
        %v3407 = vmul.f32 0.5, %v3406
        %v3408 = vsub.f32 1.5, %v3407
        %v3409 = vmul.f32 %v3404, %v3408
        %v3410 = vmul.f32 %v3322, %v3409
        %vm3411 = vcmp.eq.f32.partialorder %v3322, inf
        %v3412 = vsel %vm3411, %v3322, %v3410
        %vm3413 = vcmp.eq.f32.partialorder %v3322, 0.0
        %v3414 = vand.u32 %v3322, 2147483648
        %v3415 = vsel %vm3413, %v3414, %v3412
        %v3416 = vrsqrt.pop %v3323
        %v3417 = vmul.f32 %v3416, %v3323
        %v3418 = vmul.f32 %v3417, %v3416
        %v3419 = vmul.f32 0.5, %v3418
        %v3420 = vsub.f32 1.5, %v3419
        %v3421 = vmul.f32 %v3416, %v3420
        %v3422 = vmul.f32 %v3323, %v3421
        %vm3423 = vcmp.eq.f32.partialorder %v3323, inf
        %v3424 = vsel %vm3423, %v3323, %v3422
        %vm3425 = vcmp.eq.f32.partialorder %v3323, 0.0
        %v3426 = vand.u32 %v3323, 2147483648
        %v3427 = vsel %vm3425, %v3426, %v3424
        %v3428 = vrsqrt.pop %v3324
        %v3429 = vmul.f32 %v3428, %v3324
        %v3430 = vmul.f32 %v3429, %v3428
        %v3431 = vmul.f32 0.5, %v3430
        %v3432 = vsub.f32 1.5, %v3431
        %v3433 = vmul.f32 %v3428, %v3432
        %v3434 = vmul.f32 %v3324, %v3433
        %vm3435 = vcmp.eq.f32.partialorder %v3324, inf
        %v3436 = vsel %vm3435, %v3324, %v3434
        %vm3437 = vcmp.eq.f32.partialorder %v3324, 0.0
        %v3438 = vand.u32 %v3324, 2147483648
        %v3439 = vsel %vm3437, %v3438, %v3436
        %v3440 = vrsqrt.pop %v3325
        %v3441 = vmul.f32 %v3440, %v3325
        %v3442 = vmul.f32 %v3441, %v3440
        %v3443 = vmul.f32 0.5, %v3442
        %v3444 = vsub.f32 1.5, %v3443
        %v3445 = vmul.f32 %v3440, %v3444
        %v3446 = vmul.f32 %v3325, %v3445
        %vm3447 = vcmp.eq.f32.partialorder %v3325, inf
        %v3448 = vsel %vm3447, %v3325, %v3446
        %vm3449 = vcmp.eq.f32.partialorder %v3325, 0.0
        %v3450 = vand.u32 %v3325, 2147483648
        %v3451 = vsel %vm3449, %v3450, %v3448
        %v3452 = vrsqrt.pop %v3326
        %v3453 = vmul.f32 %v3452, %v3326
        %v3454 = vmul.f32 %v3453, %v3452
        %v3455 = vmul.f32 0.5, %v3454
        %v3456 = vsub.f32 1.5, %v3455
        %v3457 = vmul.f32 %v3452, %v3456
        %v3458 = vmul.f32 %v3326, %v3457
        %vm3459 = vcmp.eq.f32.partialorder %v3326, inf
        %v3460 = vsel %vm3459, %v3326, %v3458
        %vm3461 = vcmp.eq.f32.partialorder %v3326, 0.0
        %v3462 = vand.u32 %v3326, 2147483648
        %v3463 = vsel %vm3461, %v3462, %v3460
        %v3464 = vrsqrt.pop %v3327
        %v3465 = vmul.f32 %v3464, %v3327
        %v3466 = vmul.f32 %v3465, %v3464
        %v3467 = vmul.f32 0.5, %v3466
        %v3468 = vsub.f32 1.5, %v3467
        %v3469 = vmul.f32 %v3464, %v3468
        %v3470 = vmul.f32 %v3327, %v3469
        %vm3471 = vcmp.eq.f32.partialorder %v3327, inf
        %v3472 = vsel %vm3471, %v3327, %v3470
        %vm3473 = vcmp.eq.f32.partialorder %v3327, 0.0
        %v3474 = vand.u32 %v3327, 2147483648
        %v3475 = vsel %vm3473, %v3474, %v3472
        %v3476 = vrsqrt.pop %v3328
        %v3477 = vmul.f32 %v3476, %v3328
        %v3478 = vmul.f32 %v3477, %v3476
        %v3479 = vmul.f32 0.5, %v3478
        %v3480 = vsub.f32 1.5, %v3479
        %v3481 = vmul.f32 %v3476, %v3480
        %v3482 = vmul.f32 %v3328, %v3481
        %vm3483 = vcmp.eq.f32.partialorder %v3328, inf
        %v3484 = vsel %vm3483, %v3328, %v3482
        %vm3485 = vcmp.eq.f32.partialorder %v3328, 0.0
        %v3486 = vand.u32 %v3328, 2147483648
        %v3487 = vsel %vm3485, %v3486, %v3484
        %v3488 = vrsqrt.pop %v3329
        %v3489 = vmul.f32 %v3488, %v3329
        %v3490 = vmul.f32 %v3489, %v3488
        %v3491 = vmul.f32 0.5, %v3490
        %v3492 = vsub.f32 1.5, %v3491
        %v3493 = vmul.f32 %v3488, %v3492
        %v3494 = vmul.f32 %v3329, %v3493
        %vm3495 = vcmp.eq.f32.partialorder %v3329, inf
        %v3496 = vsel %vm3495, %v3329, %v3494
        %vm3497 = vcmp.eq.f32.partialorder %v3329, 0.0
        %v3498 = vand.u32 %v3329, 2147483648
        %v3499 = vsel %vm3497, %v3498, %v3496
        %v3500 = vrsqrt.pop %v3330
        %v3501 = vmul.f32 %v3500, %v3330
        %v3502 = vmul.f32 %v3501, %v3500
        %v3503 = vmul.f32 0.5, %v3502
        %v3504 = vsub.f32 1.5, %v3503
        %v3505 = vmul.f32 %v3500, %v3504
        %v3506 = vmul.f32 %v3330, %v3505
        %vm3507 = vcmp.eq.f32.partialorder %v3330, inf
        %v3508 = vsel %vm3507, %v3330, %v3506
        %vm3509 = vcmp.eq.f32.partialorder %v3330, 0.0
        %v3510 = vand.u32 %v3330, 2147483648
        %v3511 = vsel %vm3509, %v3510, %v3508
        %v3512 = vrsqrt.pop %v3331
        %v3513 = vmul.f32 %v3512, %v3331
        %v3514 = vmul.f32 %v3513, %v3512
        %v3515 = vmul.f32 0.5, %v3514
        %v3516 = vsub.f32 1.5, %v3515
        %v3517 = vmul.f32 %v3512, %v3516
        %v3518 = vmul.f32 %v3331, %v3517
        %vm3519 = vcmp.eq.f32.partialorder %v3331, inf
        %v3520 = vsel %vm3519, %v3331, %v3518
        %vm3521 = vcmp.eq.f32.partialorder %v3331, 0.0
        %v3522 = vand.u32 %v3331, 2147483648
        %v3523 = vsel %vm3521, %v3522, %v3520
        %v3524 = vsub.f32 0.0, %v3316
        %v3525 = vsub.f32 0.0, %v3317
        %v3526 = vsub.f32 0.0, %v3318
        %v3527 = vsub.f32 0.0, %v3319
        %v3528 = vsub.f32 0.0, %v3320
        %v3529 = vsub.f32 0.0, %v3321
        %v3530 = vsub.f32 0.0, %v3322
        %v3531 = vsub.f32 0.0, %v3323
        %v3532 = vsub.f32 0.0, %v3324
        %v3533 = vsub.f32 0.0, %v3325
        %v3534 = vsub.f32 0.0, %v3326
        %v3535 = vsub.f32 0.0, %v3327
        %v3536 = vsub.f32 0.0, %v3328
        %v3537 = vsub.f32 0.0, %v3329
        %v3538 = vsub.f32 0.0, %v3330
        %v3539 = vsub.f32 0.0, %v3331
        %v3540 = vmul.f32 %v3524, 1111.1111
        %v3541 = vmul.f32 %v3525, 1111.1111
        %v3542 = vmul.f32 %v3526, 1111.1111
        %v3543 = vmul.f32 %v3527, 1111.1111
        %v3544 = vmul.f32 %v3528, 1111.1111
        %v3545 = vmul.f32 %v3529, 1111.1111
        %v3546 = vmul.f32 %v3530, 1111.1111
        %v3547 = vmul.f32 %v3531, 1111.1111
        %v3548 = vmul.f32 %v3532, 1111.1111
        %v3549 = vmul.f32 %v3533, 1111.1111
        %v3550 = vmul.f32 %v3534, 1111.1111
        %v3551 = vmul.f32 %v3535, 1111.1111
        %v3552 = vmul.f32 %v3536, 1111.1111
        %v3553 = vmul.f32 %v3537, 1111.1111
        %v3554 = vmul.f32 %v3538, 1111.1111
        %v3555 = vmul.f32 %v3539, 1111.1111
        %v3556 = vmul.f32 %v3540, 1.442695
        %v3557 = vpow.pop %v3556
        %v3558 = vmul.f32 %v3541, 1.442695
        %v3559 = vpow.pop %v3558
        %v3560 = vmul.f32 %v3542, 1.442695
        %v3561 = vpow.pop %v3560
        %v3562 = vmul.f32 %v3543, 1.442695
        %v3563 = vpow.pop %v3562
        %v3564 = vmul.f32 %v3544, 1.442695
        %v3565 = vpow.pop %v3564
        %v3566 = vmul.f32 %v3545, 1.442695
        %v3567 = vpow.pop %v3566
        %v3568 = vmul.f32 %v3546, 1.442695
        %v3569 = vpow.pop %v3568
        %v3570 = vmul.f32 %v3547, 1.442695
        %v3571 = vpow.pop %v3570
        %v3572 = vmul.f32 %v3548, 1.442695
        %v3573 = vpow.pop %v3572
        %v3574 = vmul.f32 %v3549, 1.442695
        %v3575 = vpow.pop %v3574
        %v3576 = vmul.f32 %v3550, 1.442695
        %v3577 = vpow.pop %v3576
        %v3578 = vmul.f32 %v3551, 1.442695
        %v3579 = vpow.pop %v3578
        %v3580 = vmul.f32 %v3552, 1.442695
        %v3581 = vpow.pop %v3580
        %v3582 = vmul.f32 %v3553, 1.442695
        %v3583 = vpow.pop %v3582
        %v3584 = vmul.f32 %v3554, 1.442695
        %v3585 = vpow.pop %v3584
        %v3586 = vmul.f32 %v3555, 1.442695
        %v3587 = vpow.pop %v3586
        %v3588 = vsub.f32 0.07, %v3343
        %v3589 = vsub.f32 0.07, %v3355
        %v3590 = vsub.f32 0.07, %v3367
        %v3591 = vsub.f32 0.07, %v3379
        %v3592 = vsub.f32 0.07, %v3391
        %v3593 = vsub.f32 0.07, %v3403
        %v3594 = vsub.f32 0.07, %v3415
        %v3595 = vsub.f32 0.07, %v3427
        %v3596 = vsub.f32 0.07, %v3439
        %v3597 = vsub.f32 0.07, %v3451
        %v3598 = vsub.f32 0.07, %v3463
        %v3599 = vsub.f32 0.07, %v3475
        %v3600 = vsub.f32 0.07, %v3487
        %v3601 = vsub.f32 0.07, %v3499
        %v3602 = vsub.f32 0.07, %v3511
        %v3603 = vsub.f32 0.07, %v3523
        %v3604 = vmul.f32 %v3588, %v3557
        %v3605 = vmul.f32 %v3589, %v3559
        %v3606 = vmul.f32 %v3590, %v3561
        %v3607 = vmul.f32 %v3591, %v3563
        %v3608 = vmul.f32 %v3592, %v3565
        %v3609 = vmul.f32 %v3593, %v3567
        %v3610 = vmul.f32 %v3594, %v3569
        %v3611 = vmul.f32 %v3595, %v3571
        %v3612 = vmul.f32 %v3596, %v3573
        %v3613 = vmul.f32 %v3597, %v3575
        %v3614 = vmul.f32 %v3598, %v3577
        %v3615 = vmul.f32 %v3599, %v3579
        %v3616 = vmul.f32 %v3600, %v3581
        %v3617 = vmul.f32 %v3601, %v3583
        %v3618 = vmul.f32 %v3602, %v3585
        %v3619 = vmul.f32 %v3603, %v3587
        %v3620 = vadd.f32 %v3028, %v3604
        %v3621 = vadd.f32 %v3029, %v3605
        %v3622 = vadd.f32 %v3030, %v3606
        %v3623 = vadd.f32 %v3031, %v3607
        %v3624 = vadd.f32 %v3032, %v3608
        %v3625 = vadd.f32 %v3033, %v3609
        %v3626 = vadd.f32 %v3034, %v3610
        %v3627 = vadd.f32 %v3035, %v3611
        %v3628 = vadd.f32 %v3036, %v3612
        %v3629 = vadd.f32 %v3037, %v3613
        %v3630 = vadd.f32 %v3038, %v3614
        %v3631 = vadd.f32 %v3039, %v3615
        %v3632 = vadd.f32 %v3040, %v3616
        %v3633 = vadd.f32 %v3041, %v3617
        %v3634 = vadd.f32 %v3042, %v3618
        %v3635 = vadd.f32 %v3043, %v3619
        %v3636 = vadd.f32 %v3060, 1.0
        %v3637 = vadd.f32 %v3061, 1.0
        %v3638 = vadd.f32 %v3062, 1.0
        %v3639 = vadd.f32 %v3063, 1.0
        %v3640 = vadd.f32 %v3064, 1.0
        %v3641 = vadd.f32 %v3065, 1.0
        %v3642 = vadd.f32 %v3066, 1.0
        %v3643 = vadd.f32 %v3067, 1.0
        %v3644 = vadd.f32 %v3068, 1.0
        %v3645 = vadd.f32 %v3069, 1.0
        %v3646 = vadd.f32 %v3070, 1.0
        %v3647 = vadd.f32 %v3071, 1.0
        %v3648 = vadd.f32 %v3072, 1.0
        %v3649 = vadd.f32 %v3073, 1.0
        %v3650 = vadd.f32 %v3074, 1.0
        %v3651 = vadd.f32 %v3075, 1.0
        %v3652 = vsel %vm3188, %v3636, 1.0
        %v3653 = vsel %vm3189, %v3637, 1.0
        %v3654 = vsel %vm3190, %v3638, 1.0
        %v3655 = vsel %vm3191, %v3639, 1.0
        %v3656 = vsel %vm3192, %v3640, 1.0
        %v3657 = vsel %vm3193, %v3641, 1.0
        %v3658 = vsel %vm3194, %v3642, 1.0
        %v3659 = vsel %vm3195, %v3643, 1.0
        %v3660 = vsel %vm3196, %v3644, 1.0
        %v3661 = vsel %vm3197, %v3645, 1.0
        %v3662 = vsel %vm3198, %v3646, 1.0
        %v3663 = vsel %vm3199, %v3647, 1.0
        %v3664 = vsel %vm3200, %v3648, 1.0
        %v3665 = vsel %vm3201, %v3649, 1.0
        %v3666 = vsel %vm3202, %v3650, 1.0
        %v3667 = vsel %vm3203, %v3651, 1.0
        %vm3668 = vcmp.eq.f32.partialorder %v692, %v3316
        %vm3669 = vcmp.eq.f32.partialorder %v693, %v3316
        %vm3670 = vcmp.eq.f32.partialorder %v694, %v3317
        %vm3671 = vcmp.eq.f32.partialorder %v695, %v3317
        %vm3672 = vcmp.eq.f32.partialorder %v696, %v3318
        %vm3673 = vcmp.eq.f32.partialorder %v697, %v3318
        %vm3674 = vcmp.eq.f32.partialorder %v698, %v3319
        %vm3675 = vcmp.eq.f32.partialorder %v699, %v3319
        %vm3676 = vcmp.eq.f32.partialorder %v700, %v3320
        %vm3677 = vcmp.eq.f32.partialorder %v701, %v3320
        %vm3678 = vcmp.eq.f32.partialorder %v702, %v3321
        %vm3679 = vcmp.eq.f32.partialorder %v703, %v3321
        %vm3680 = vcmp.eq.f32.partialorder %v704, %v3322
        %vm3681 = vcmp.eq.f32.partialorder %v705, %v3322
        %vm3682 = vcmp.eq.f32.partialorder %v706, %v3323
        %vm3683 = vcmp.eq.f32.partialorder %v707, %v3323
        %vm3684 = vcmp.eq.f32.partialorder %v708, %v3324
        %vm3685 = vcmp.eq.f32.partialorder %v709, %v3324
        %vm3686 = vcmp.eq.f32.partialorder %v710, %v3325
        %vm3687 = vcmp.eq.f32.partialorder %v711, %v3325
        %vm3688 = vcmp.eq.f32.partialorder %v712, %v3326
        %vm3689 = vcmp.eq.f32.partialorder %v713, %v3326
        %vm3690 = vcmp.eq.f32.partialorder %v714, %v3327
        %vm3691 = vcmp.eq.f32.partialorder %v715, %v3327
        %vm3692 = vcmp.eq.f32.partialorder %v716, %v3328
        %vm3693 = vcmp.eq.f32.partialorder %v717, %v3328
        %vm3694 = vcmp.eq.f32.partialorder %v718, %v3329
        %vm3695 = vcmp.eq.f32.partialorder %v719, %v3329
        %vm3696 = vcmp.eq.f32.partialorder %v720, %v3330
        %vm3697 = vcmp.eq.f32.partialorder %v721, %v3330
        %vm3698 = vcmp.eq.f32.partialorder %v722, %v3331
        %vm3699 = vcmp.eq.f32.partialorder %v723, %v3331
        %v3700 = vsel %vm3668, 1.0, 0.0
        %v3701 = vsel %vm3669, 1.0, 0.0
        %v3702 = vsel %vm3670, 1.0, 0.0
        %v3703 = vsel %vm3671, 1.0, 0.0
        %v3704 = vsel %vm3672, 1.0, 0.0
        %v3705 = vsel %vm3673, 1.0, 0.0
        %v3706 = vsel %vm3674, 1.0, 0.0
        %v3707 = vsel %vm3675, 1.0, 0.0
        %v3708 = vsel %vm3676, 1.0, 0.0
        %v3709 = vsel %vm3677, 1.0, 0.0
        %v3710 = vsel %vm3678, 1.0, 0.0
        %v3711 = vsel %vm3679, 1.0, 0.0
        %v3712 = vsel %vm3680, 1.0, 0.0
        %v3713 = vsel %vm3681, 1.0, 0.0
        %v3714 = vsel %vm3682, 1.0, 0.0
        %v3715 = vsel %vm3683, 1.0, 0.0
        %v3716 = vsel %vm3684, 1.0, 0.0
        %v3717 = vsel %vm3685, 1.0, 0.0
        %v3718 = vsel %vm3686, 1.0, 0.0
        %v3719 = vsel %vm3687, 1.0, 0.0
        %v3720 = vsel %vm3688, 1.0, 0.0
        %v3721 = vsel %vm3689, 1.0, 0.0
        %v3722 = vsel %vm3690, 1.0, 0.0
        %v3723 = vsel %vm3691, 1.0, 0.0
        %v3724 = vsel %vm3692, 1.0, 0.0
        %v3725 = vsel %vm3693, 1.0, 0.0
        %v3726 = vsel %vm3694, 1.0, 0.0
        %v3727 = vsel %vm3695, 1.0, 0.0
        %v3728 = vsel %vm3696, 1.0, 0.0
        %v3729 = vsel %vm3697, 1.0, 0.0
        %v3730 = vsel %vm3698, 1.0, 0.0
        %v3731 = vsel %vm3699, 1.0, 0.0
        %v3732 = vadd.f32 %v3700, %v3701
        %3733 = vadd.xlane.f32.xlu0 %v3732
        %v3734 = vpop.xlane.xlu0 %3733
        %v3735 = vadd.f32 %v3702, %v3703
        %3736 = vadd.xlane.f32.xlu0 %v3735
        %v3737 = vpop.xlane.xlu0 %3736
        %v3738 = vadd.f32 %v3704, %v3705
        %3739 = vadd.xlane.f32.xlu0 %v3738
        %v3740 = vpop.xlane.xlu0 %3739
        %v3741 = vadd.f32 %v3706, %v3707
        %3742 = vadd.xlane.f32.xlu0 %v3741
        %v3743 = vpop.xlane.xlu0 %3742
        %v3744 = vadd.f32 %v3708, %v3709
        %3745 = vadd.xlane.f32.xlu0 %v3744
        %v3746 = vpop.xlane.xlu0 %3745
        %v3747 = vadd.f32 %v3710, %v3711
        %3748 = vadd.xlane.f32.xlu0 %v3747
        %v3749 = vpop.xlane.xlu0 %3748
        %v3750 = vadd.f32 %v3712, %v3713
        %3751 = vadd.xlane.f32.xlu0 %v3750
        %v3752 = vpop.xlane.xlu0 %3751
        %v3753 = vadd.f32 %v3714, %v3715
        %3754 = vadd.xlane.f32.xlu0 %v3753
        %v3755 = vpop.xlane.xlu0 %3754
        %v3756 = vadd.f32 %v3716, %v3717
        %3757 = vadd.xlane.f32.xlu0 %v3756
        %v3758 = vpop.xlane.xlu0 %3757
        %v3759 = vadd.f32 %v3718, %v3719
        %3760 = vadd.xlane.f32.xlu0 %v3759
        %v3761 = vpop.xlane.xlu0 %3760
        %v3762 = vadd.f32 %v3720, %v3721
        %3763 = vadd.xlane.f32.xlu0 %v3762
        %v3764 = vpop.xlane.xlu0 %3763
        %v3765 = vadd.f32 %v3722, %v3723
        %3766 = vadd.xlane.f32.xlu0 %v3765
        %v3767 = vpop.xlane.xlu0 %3766
        %v3768 = vadd.f32 %v3724, %v3725
        %3769 = vadd.xlane.f32.xlu0 %v3768
        %v3770 = vpop.xlane.xlu0 %3769
        %v3771 = vadd.f32 %v3726, %v3727
        %3772 = vadd.xlane.f32.xlu0 %v3771
        %v3773 = vpop.xlane.xlu0 %3772
        %v3774 = vadd.f32 %v3728, %v3729
        %3775 = vadd.xlane.f32.xlu0 %v3774
        %v3776 = vpop.xlane.xlu0 %3775
        %v3777 = vadd.f32 %v3730, %v3731
        %3778 = vadd.xlane.f32.xlu0 %v3777
        %v3779 = vpop.xlane.xlu0 %3778
        %vm3780 = vcmp.gt.f32.partialorder %v3734, %v3652
        %vm3781 = vcmp.gt.f32.partialorder %v3737, %v3653
        %vm3782 = vcmp.gt.f32.partialorder %v3740, %v3654
        %vm3783 = vcmp.gt.f32.partialorder %v3743, %v3655
        %vm3784 = vcmp.gt.f32.partialorder %v3746, %v3656
        %vm3785 = vcmp.gt.f32.partialorder %v3749, %v3657
        %vm3786 = vcmp.gt.f32.partialorder %v3752, %v3658
        %vm3787 = vcmp.gt.f32.partialorder %v3755, %v3659
        %vm3788 = vcmp.gt.f32.partialorder %v3758, %v3660
        %vm3789 = vcmp.gt.f32.partialorder %v3761, %v3661
        %vm3790 = vcmp.gt.f32.partialorder %v3764, %v3662
        %vm3791 = vcmp.gt.f32.partialorder %v3767, %v3663
        %vm3792 = vcmp.gt.f32.partialorder %v3770, %v3664
        %vm3793 = vcmp.gt.f32.partialorder %v3773, %v3665
        %vm3794 = vcmp.gt.f32.partialorder %v3776, %v3666
        %vm3795 = vcmp.gt.f32.partialorder %v3779, %v3667
        %vm3796 = vcmp.gt.f32.partialorder %v692, %v3316
        %vm3797 = vcmp.gt.f32.partialorder %v693, %v3316
        %vm3798 = vcmp.gt.f32.partialorder %v694, %v3317
        %vm3799 = vcmp.gt.f32.partialorder %v695, %v3317
        %vm3800 = vcmp.gt.f32.partialorder %v696, %v3318
        %vm3801 = vcmp.gt.f32.partialorder %v697, %v3318
        %vm3802 = vcmp.gt.f32.partialorder %v698, %v3319
        %vm3803 = vcmp.gt.f32.partialorder %v699, %v3319
        %vm3804 = vcmp.gt.f32.partialorder %v700, %v3320
        %vm3805 = vcmp.gt.f32.partialorder %v701, %v3320
        %vm3806 = vcmp.gt.f32.partialorder %v702, %v3321
        %vm3807 = vcmp.gt.f32.partialorder %v703, %v3321
        %vm3808 = vcmp.gt.f32.partialorder %v704, %v3322
        %vm3809 = vcmp.gt.f32.partialorder %v705, %v3322
        %vm3810 = vcmp.gt.f32.partialorder %v706, %v3323
        %vm3811 = vcmp.gt.f32.partialorder %v707, %v3323
        %vm3812 = vcmp.gt.f32.partialorder %v708, %v3324
        %vm3813 = vcmp.gt.f32.partialorder %v709, %v3324
        %vm3814 = vcmp.gt.f32.partialorder %v710, %v3325
        %vm3815 = vcmp.gt.f32.partialorder %v711, %v3325
        %vm3816 = vcmp.gt.f32.partialorder %v712, %v3326
        %vm3817 = vcmp.gt.f32.partialorder %v713, %v3326
        %vm3818 = vcmp.gt.f32.partialorder %v714, %v3327
        %vm3819 = vcmp.gt.f32.partialorder %v715, %v3327
        %vm3820 = vcmp.gt.f32.partialorder %v716, %v3328
        %vm3821 = vcmp.gt.f32.partialorder %v717, %v3328
        %vm3822 = vcmp.gt.f32.partialorder %v718, %v3329
        %vm3823 = vcmp.gt.f32.partialorder %v719, %v3329
        %vm3824 = vcmp.gt.f32.partialorder %v720, %v3330
        %vm3825 = vcmp.gt.f32.partialorder %v721, %v3330
        %vm3826 = vcmp.gt.f32.partialorder %v722, %v3331
        %vm3827 = vcmp.gt.f32.partialorder %v723, %v3331
        %v3828 = vsel %vm3796, %v692, inf
        %v3829 = vsel %vm3797, %v693, inf
        %v3830 = vsel %vm3798, %v694, inf
        %v3831 = vsel %vm3799, %v695, inf
        %v3832 = vsel %vm3800, %v696, inf
        %v3833 = vsel %vm3801, %v697, inf
        %v3834 = vsel %vm3802, %v698, inf
        %v3835 = vsel %vm3803, %v699, inf
        %v3836 = vsel %vm3804, %v700, inf
        %v3837 = vsel %vm3805, %v701, inf
        %v3838 = vsel %vm3806, %v702, inf
        %v3839 = vsel %vm3807, %v703, inf
        %v3840 = vsel %vm3808, %v704, inf
        %v3841 = vsel %vm3809, %v705, inf
        %v3842 = vsel %vm3810, %v706, inf
        %v3843 = vsel %vm3811, %v707, inf
        %v3844 = vsel %vm3812, %v708, inf
        %v3845 = vsel %vm3813, %v709, inf
        %v3846 = vsel %vm3814, %v710, inf
        %v3847 = vsel %vm3815, %v711, inf
        %v3848 = vsel %vm3816, %v712, inf
        %v3849 = vsel %vm3817, %v713, inf
        %v3850 = vsel %vm3818, %v714, inf
        %v3851 = vsel %vm3819, %v715, inf
        %v3852 = vsel %vm3820, %v716, inf
        %v3853 = vsel %vm3821, %v717, inf
        %v3854 = vsel %vm3822, %v718, inf
        %v3855 = vsel %vm3823, %v719, inf
        %v3856 = vsel %vm3824, %v720, inf
        %v3857 = vsel %vm3825, %v721, inf
        %v3858 = vsel %vm3826, %v722, inf
        %v3859 = vsel %vm3827, %v723, inf
        %v3860 = vmin.f32 %v3828, %v3829
        %3861 = vmin.xlane.f32.xlu0 %v3860
        %v3862 = vpop.xlane.xlu0 %3861
        %v3863 = vmin.f32 %v3830, %v3831
        %3864 = vmin.xlane.f32.xlu0 %v3863
        %v3865 = vpop.xlane.xlu0 %3864
        %v3866 = vmin.f32 %v3832, %v3833
        %3867 = vmin.xlane.f32.xlu0 %v3866
        %v3868 = vpop.xlane.xlu0 %3867
        %v3869 = vmin.f32 %v3834, %v3835
        %3870 = vmin.xlane.f32.xlu0 %v3869
        %v3871 = vpop.xlane.xlu0 %3870
        %v3872 = vmin.f32 %v3836, %v3837
        %3873 = vmin.xlane.f32.xlu0 %v3872
        %v3874 = vpop.xlane.xlu0 %3873
        %v3875 = vmin.f32 %v3838, %v3839
        %3876 = vmin.xlane.f32.xlu0 %v3875
        %v3877 = vpop.xlane.xlu0 %3876
        %v3878 = vmin.f32 %v3840, %v3841
        %3879 = vmin.xlane.f32.xlu0 %v3878
        %v3880 = vpop.xlane.xlu0 %3879
        %v3881 = vmin.f32 %v3842, %v3843
        %3882 = vmin.xlane.f32.xlu0 %v3881
        %v3883 = vpop.xlane.xlu0 %3882
        %v3884 = vmin.f32 %v3844, %v3845
        %3885 = vmin.xlane.f32.xlu0 %v3884
        %v3886 = vpop.xlane.xlu0 %3885
        %v3887 = vmin.f32 %v3846, %v3847
        %3888 = vmin.xlane.f32.xlu0 %v3887
        %v3889 = vpop.xlane.xlu0 %3888
        %v3890 = vmin.f32 %v3848, %v3849
        %3891 = vmin.xlane.f32.xlu0 %v3890
        %v3892 = vpop.xlane.xlu0 %3891
        %v3893 = vmin.f32 %v3850, %v3851
        %3894 = vmin.xlane.f32.xlu0 %v3893
        %v3895 = vpop.xlane.xlu0 %3894
        %v3896 = vmin.f32 %v3852, %v3853
        %3897 = vmin.xlane.f32.xlu0 %v3896
        %v3898 = vpop.xlane.xlu0 %3897
        %v3899 = vmin.f32 %v3854, %v3855
        %3900 = vmin.xlane.f32.xlu0 %v3899
        %v3901 = vpop.xlane.xlu0 %3900
        %v3902 = vmin.f32 %v3856, %v3857
        %3903 = vmin.xlane.f32.xlu0 %v3902
        %v3904 = vpop.xlane.xlu0 %3903
        %v3905 = vmin.f32 %v3858, %v3859
        %3906 = vmin.xlane.f32.xlu0 %v3905
        %v3907 = vpop.xlane.xlu0 %3906
        %v3908 = vsel %vm3780, %v3316, %v3862
        %v3909 = vsel %vm3781, %v3317, %v3865
        %v3910 = vsel %vm3782, %v3318, %v3868
        %v3911 = vsel %vm3783, %v3319, %v3871
        %v3912 = vsel %vm3784, %v3320, %v3874
        %v3913 = vsel %vm3785, %v3321, %v3877
        %v3914 = vsel %vm3786, %v3322, %v3880
        %v3915 = vsel %vm3787, %v3323, %v3883
        %v3916 = vsel %vm3788, %v3324, %v3886
        %v3917 = vsel %vm3789, %v3325, %v3889
        %v3918 = vsel %vm3790, %v3326, %v3892
        %v3919 = vsel %vm3791, %v3327, %v3895
        %v3920 = vsel %vm3792, %v3328, %v3898
        %v3921 = vsel %vm3793, %v3329, %v3901
        %v3922 = vsel %vm3794, %v3330, %v3904
        %v3923 = vsel %vm3795, %v3331, %v3907
        %v3924 = vrsqrt.pop %v3908
        %v3925 = vmul.f32 %v3924, %v3908
        %v3926 = vmul.f32 %v3925, %v3924
        %v3927 = vmul.f32 0.5, %v3926
        %v3928 = vsub.f32 1.5, %v3927
        %v3929 = vmul.f32 %v3924, %v3928
        %v3930 = vmul.f32 %v3908, %v3929
        %vm3931 = vcmp.eq.f32.partialorder %v3908, inf
        %v3932 = vsel %vm3931, %v3908, %v3930
        %vm3933 = vcmp.eq.f32.partialorder %v3908, 0.0
        %v3934 = vand.u32 %v3908, 2147483648
        %v3935 = vsel %vm3933, %v3934, %v3932
        %v3936 = vrsqrt.pop %v3909
        %v3937 = vmul.f32 %v3936, %v3909
        %v3938 = vmul.f32 %v3937, %v3936
        %v3939 = vmul.f32 0.5, %v3938
        %v3940 = vsub.f32 1.5, %v3939
        %v3941 = vmul.f32 %v3936, %v3940
        %v3942 = vmul.f32 %v3909, %v3941
        %vm3943 = vcmp.eq.f32.partialorder %v3909, inf
        %v3944 = vsel %vm3943, %v3909, %v3942
        %vm3945 = vcmp.eq.f32.partialorder %v3909, 0.0
        %v3946 = vand.u32 %v3909, 2147483648
        %v3947 = vsel %vm3945, %v3946, %v3944
        %v3948 = vrsqrt.pop %v3910
        %v3949 = vmul.f32 %v3948, %v3910
        %v3950 = vmul.f32 %v3949, %v3948
        %v3951 = vmul.f32 0.5, %v3950
        %v3952 = vsub.f32 1.5, %v3951
        %v3953 = vmul.f32 %v3948, %v3952
        %v3954 = vmul.f32 %v3910, %v3953
        %vm3955 = vcmp.eq.f32.partialorder %v3910, inf
        %v3956 = vsel %vm3955, %v3910, %v3954
        %vm3957 = vcmp.eq.f32.partialorder %v3910, 0.0
        %v3958 = vand.u32 %v3910, 2147483648
        %v3959 = vsel %vm3957, %v3958, %v3956
        %v3960 = vrsqrt.pop %v3911
        %v3961 = vmul.f32 %v3960, %v3911
        %v3962 = vmul.f32 %v3961, %v3960
        %v3963 = vmul.f32 0.5, %v3962
        %v3964 = vsub.f32 1.5, %v3963
        %v3965 = vmul.f32 %v3960, %v3964
        %v3966 = vmul.f32 %v3911, %v3965
        %vm3967 = vcmp.eq.f32.partialorder %v3911, inf
        %v3968 = vsel %vm3967, %v3911, %v3966
        %vm3969 = vcmp.eq.f32.partialorder %v3911, 0.0
        %v3970 = vand.u32 %v3911, 2147483648
        %v3971 = vsel %vm3969, %v3970, %v3968
        %v3972 = vrsqrt.pop %v3912
        %v3973 = vmul.f32 %v3972, %v3912
        %v3974 = vmul.f32 %v3973, %v3972
        %v3975 = vmul.f32 0.5, %v3974
        %v3976 = vsub.f32 1.5, %v3975
        %v3977 = vmul.f32 %v3972, %v3976
        %v3978 = vmul.f32 %v3912, %v3977
        %vm3979 = vcmp.eq.f32.partialorder %v3912, inf
        %v3980 = vsel %vm3979, %v3912, %v3978
        %vm3981 = vcmp.eq.f32.partialorder %v3912, 0.0
        %v3982 = vand.u32 %v3912, 2147483648
        %v3983 = vsel %vm3981, %v3982, %v3980
        %v3984 = vrsqrt.pop %v3913
        %v3985 = vmul.f32 %v3984, %v3913
        %v3986 = vmul.f32 %v3985, %v3984
        %v3987 = vmul.f32 0.5, %v3986
        %v3988 = vsub.f32 1.5, %v3987
        %v3989 = vmul.f32 %v3984, %v3988
        %v3990 = vmul.f32 %v3913, %v3989
        %vm3991 = vcmp.eq.f32.partialorder %v3913, inf
        %v3992 = vsel %vm3991, %v3913, %v3990
        %vm3993 = vcmp.eq.f32.partialorder %v3913, 0.0
        %v3994 = vand.u32 %v3913, 2147483648
        %v3995 = vsel %vm3993, %v3994, %v3992
        %v3996 = vrsqrt.pop %v3914
        %v3997 = vmul.f32 %v3996, %v3914
        %v3998 = vmul.f32 %v3997, %v3996
        %v3999 = vmul.f32 0.5, %v3998
        %v4000 = vsub.f32 1.5, %v3999
        %v4001 = vmul.f32 %v3996, %v4000
        %v4002 = vmul.f32 %v3914, %v4001
        %vm4003 = vcmp.eq.f32.partialorder %v3914, inf
        %v4004 = vsel %vm4003, %v3914, %v4002
        %vm4005 = vcmp.eq.f32.partialorder %v3914, 0.0
        %v4006 = vand.u32 %v3914, 2147483648
        %v4007 = vsel %vm4005, %v4006, %v4004
        %v4008 = vrsqrt.pop %v3915
        %v4009 = vmul.f32 %v4008, %v3915
        %v4010 = vmul.f32 %v4009, %v4008
        %v4011 = vmul.f32 0.5, %v4010
        %v4012 = vsub.f32 1.5, %v4011
        %v4013 = vmul.f32 %v4008, %v4012
        %v4014 = vmul.f32 %v3915, %v4013
        %vm4015 = vcmp.eq.f32.partialorder %v3915, inf
        %v4016 = vsel %vm4015, %v3915, %v4014
        %vm4017 = vcmp.eq.f32.partialorder %v3915, 0.0
        %v4018 = vand.u32 %v3915, 2147483648
        %v4019 = vsel %vm4017, %v4018, %v4016
        %v4020 = vrsqrt.pop %v3916
        %v4021 = vmul.f32 %v4020, %v3916
        %v4022 = vmul.f32 %v4021, %v4020
        %v4023 = vmul.f32 0.5, %v4022
        %v4024 = vsub.f32 1.5, %v4023
        %v4025 = vmul.f32 %v4020, %v4024
        %v4026 = vmul.f32 %v3916, %v4025
        %vm4027 = vcmp.eq.f32.partialorder %v3916, inf
        %v4028 = vsel %vm4027, %v3916, %v4026
        %vm4029 = vcmp.eq.f32.partialorder %v3916, 0.0
        %v4030 = vand.u32 %v3916, 2147483648
        %v4031 = vsel %vm4029, %v4030, %v4028
        %v4032 = vrsqrt.pop %v3917
        %v4033 = vmul.f32 %v4032, %v3917
        %v4034 = vmul.f32 %v4033, %v4032
        %v4035 = vmul.f32 0.5, %v4034
        %v4036 = vsub.f32 1.5, %v4035
        %v4037 = vmul.f32 %v4032, %v4036
        %v4038 = vmul.f32 %v3917, %v4037
        %vm4039 = vcmp.eq.f32.partialorder %v3917, inf
        %v4040 = vsel %vm4039, %v3917, %v4038
        %vm4041 = vcmp.eq.f32.partialorder %v3917, 0.0
        %v4042 = vand.u32 %v3917, 2147483648
        %v4043 = vsel %vm4041, %v4042, %v4040
        %v4044 = vrsqrt.pop %v3918
        %v4045 = vmul.f32 %v4044, %v3918
        %v4046 = vmul.f32 %v4045, %v4044
        %v4047 = vmul.f32 0.5, %v4046
        %v4048 = vsub.f32 1.5, %v4047
        %v4049 = vmul.f32 %v4044, %v4048
        %v4050 = vmul.f32 %v3918, %v4049
        %vm4051 = vcmp.eq.f32.partialorder %v3918, inf
        %v4052 = vsel %vm4051, %v3918, %v4050
        %vm4053 = vcmp.eq.f32.partialorder %v3918, 0.0
        %v4054 = vand.u32 %v3918, 2147483648
        %v4055 = vsel %vm4053, %v4054, %v4052
        %v4056 = vrsqrt.pop %v3919
        %v4057 = vmul.f32 %v4056, %v3919
        %v4058 = vmul.f32 %v4057, %v4056
        %v4059 = vmul.f32 0.5, %v4058
        %v4060 = vsub.f32 1.5, %v4059
        %v4061 = vmul.f32 %v4056, %v4060
        %v4062 = vmul.f32 %v3919, %v4061
        %vm4063 = vcmp.eq.f32.partialorder %v3919, inf
        %v4064 = vsel %vm4063, %v3919, %v4062
        %vm4065 = vcmp.eq.f32.partialorder %v3919, 0.0
        %v4066 = vand.u32 %v3919, 2147483648
        %v4067 = vsel %vm4065, %v4066, %v4064
        %v4068 = vrsqrt.pop %v3920
        %v4069 = vmul.f32 %v4068, %v3920
        %v4070 = vmul.f32 %v4069, %v4068
        %v4071 = vmul.f32 0.5, %v4070
        %v4072 = vsub.f32 1.5, %v4071
        %v4073 = vmul.f32 %v4068, %v4072
        %v4074 = vmul.f32 %v3920, %v4073
        %vm4075 = vcmp.eq.f32.partialorder %v3920, inf
        %v4076 = vsel %vm4075, %v3920, %v4074
        %vm4077 = vcmp.eq.f32.partialorder %v3920, 0.0
        %v4078 = vand.u32 %v3920, 2147483648
        %v4079 = vsel %vm4077, %v4078, %v4076
        %v4080 = vrsqrt.pop %v3921
        %v4081 = vmul.f32 %v4080, %v3921
        %v4082 = vmul.f32 %v4081, %v4080
        %v4083 = vmul.f32 0.5, %v4082
        %v4084 = vsub.f32 1.5, %v4083
        %v4085 = vmul.f32 %v4080, %v4084
        %v4086 = vmul.f32 %v3921, %v4085
        %vm4087 = vcmp.eq.f32.partialorder %v3921, inf
        %v4088 = vsel %vm4087, %v3921, %v4086
        %vm4089 = vcmp.eq.f32.partialorder %v3921, 0.0
        %v4090 = vand.u32 %v3921, 2147483648
        %v4091 = vsel %vm4089, %v4090, %v4088
        %v4092 = vrsqrt.pop %v3922
        %v4093 = vmul.f32 %v4092, %v3922
        %v4094 = vmul.f32 %v4093, %v4092
        %v4095 = vmul.f32 0.5, %v4094
        %v4096 = vsub.f32 1.5, %v4095
        %v4097 = vmul.f32 %v4092, %v4096
        %v4098 = vmul.f32 %v3922, %v4097
        %vm4099 = vcmp.eq.f32.partialorder %v3922, inf
        %v4100 = vsel %vm4099, %v3922, %v4098
        %vm4101 = vcmp.eq.f32.partialorder %v3922, 0.0
        %v4102 = vand.u32 %v3922, 2147483648
        %v4103 = vsel %vm4101, %v4102, %v4100
        %v4104 = vrsqrt.pop %v3923
        %v4105 = vmul.f32 %v4104, %v3923
        %v4106 = vmul.f32 %v4105, %v4104
        %v4107 = vmul.f32 0.5, %v4106
        %v4108 = vsub.f32 1.5, %v4107
        %v4109 = vmul.f32 %v4104, %v4108
        %v4110 = vmul.f32 %v3923, %v4109
        %vm4111 = vcmp.eq.f32.partialorder %v3923, inf
        %v4112 = vsel %vm4111, %v3923, %v4110
        %vm4113 = vcmp.eq.f32.partialorder %v3923, 0.0
        %v4114 = vand.u32 %v3923, 2147483648
        %v4115 = vsel %vm4113, %v4114, %v4112
        %v4116 = vsub.f32 0.0, %v3908
        %v4117 = vsub.f32 0.0, %v3909
        %v4118 = vsub.f32 0.0, %v3910
        %v4119 = vsub.f32 0.0, %v3911
        %v4120 = vsub.f32 0.0, %v3912
        %v4121 = vsub.f32 0.0, %v3913
        %v4122 = vsub.f32 0.0, %v3914
        %v4123 = vsub.f32 0.0, %v3915
        %v4124 = vsub.f32 0.0, %v3916
        %v4125 = vsub.f32 0.0, %v3917
        %v4126 = vsub.f32 0.0, %v3918
        %v4127 = vsub.f32 0.0, %v3919
        %v4128 = vsub.f32 0.0, %v3920
        %v4129 = vsub.f32 0.0, %v3921
        %v4130 = vsub.f32 0.0, %v3922
        %v4131 = vsub.f32 0.0, %v3923
        %v4132 = vmul.f32 %v4116, 1111.1111
        %v4133 = vmul.f32 %v4117, 1111.1111
        %v4134 = vmul.f32 %v4118, 1111.1111
        %v4135 = vmul.f32 %v4119, 1111.1111
        %v4136 = vmul.f32 %v4120, 1111.1111
        %v4137 = vmul.f32 %v4121, 1111.1111
        %v4138 = vmul.f32 %v4122, 1111.1111
        %v4139 = vmul.f32 %v4123, 1111.1111
        %v4140 = vmul.f32 %v4124, 1111.1111
        %v4141 = vmul.f32 %v4125, 1111.1111
        %v4142 = vmul.f32 %v4126, 1111.1111
        %v4143 = vmul.f32 %v4127, 1111.1111
        %v4144 = vmul.f32 %v4128, 1111.1111
        %v4145 = vmul.f32 %v4129, 1111.1111
        %v4146 = vmul.f32 %v4130, 1111.1111
        %v4147 = vmul.f32 %v4131, 1111.1111
        %v4148 = vmul.f32 %v4132, 1.442695
        %v4149 = vpow.pop %v4148
        %v4150 = vmul.f32 %v4133, 1.442695
        %v4151 = vpow.pop %v4150
        %v4152 = vmul.f32 %v4134, 1.442695
        %v4153 = vpow.pop %v4152
        %v4154 = vmul.f32 %v4135, 1.442695
        %v4155 = vpow.pop %v4154
        %v4156 = vmul.f32 %v4136, 1.442695
        %v4157 = vpow.pop %v4156
        %v4158 = vmul.f32 %v4137, 1.442695
        %v4159 = vpow.pop %v4158
        %v4160 = vmul.f32 %v4138, 1.442695
        %v4161 = vpow.pop %v4160
        %v4162 = vmul.f32 %v4139, 1.442695
        %v4163 = vpow.pop %v4162
        %v4164 = vmul.f32 %v4140, 1.442695
        %v4165 = vpow.pop %v4164
        %v4166 = vmul.f32 %v4141, 1.442695
        %v4167 = vpow.pop %v4166
        %v4168 = vmul.f32 %v4142, 1.442695
        %v4169 = vpow.pop %v4168
        %v4170 = vmul.f32 %v4143, 1.442695
        %v4171 = vpow.pop %v4170
        %v4172 = vmul.f32 %v4144, 1.442695
        %v4173 = vpow.pop %v4172
        %v4174 = vmul.f32 %v4145, 1.442695
        %v4175 = vpow.pop %v4174
        %v4176 = vmul.f32 %v4146, 1.442695
        %v4177 = vpow.pop %v4176
        %v4178 = vmul.f32 %v4147, 1.442695
        %v4179 = vpow.pop %v4178
        %v4180 = vsub.f32 0.07, %v3935
        %v4181 = vsub.f32 0.07, %v3947
        %v4182 = vsub.f32 0.07, %v3959
        %v4183 = vsub.f32 0.07, %v3971
        %v4184 = vsub.f32 0.07, %v3983
        %v4185 = vsub.f32 0.07, %v3995
        %v4186 = vsub.f32 0.07, %v4007
        %v4187 = vsub.f32 0.07, %v4019
        %v4188 = vsub.f32 0.07, %v4031
        %v4189 = vsub.f32 0.07, %v4043
        %v4190 = vsub.f32 0.07, %v4055
        %v4191 = vsub.f32 0.07, %v4067
        %v4192 = vsub.f32 0.07, %v4079
        %v4193 = vsub.f32 0.07, %v4091
        %v4194 = vsub.f32 0.07, %v4103
        %v4195 = vsub.f32 0.07, %v4115
        %v4196 = vmul.f32 %v4180, %v4149
        %v4197 = vmul.f32 %v4181, %v4151
        %v4198 = vmul.f32 %v4182, %v4153
        %v4199 = vmul.f32 %v4183, %v4155
        %v4200 = vmul.f32 %v4184, %v4157
        %v4201 = vmul.f32 %v4185, %v4159
        %v4202 = vmul.f32 %v4186, %v4161
        %v4203 = vmul.f32 %v4187, %v4163
        %v4204 = vmul.f32 %v4188, %v4165
        %v4205 = vmul.f32 %v4189, %v4167
        %v4206 = vmul.f32 %v4190, %v4169
        %v4207 = vmul.f32 %v4191, %v4171
        %v4208 = vmul.f32 %v4192, %v4173
        %v4209 = vmul.f32 %v4193, %v4175
        %v4210 = vmul.f32 %v4194, %v4177
        %v4211 = vmul.f32 %v4195, %v4179
        %v4212 = vadd.f32 %v3620, %v4196
        %v4213 = vadd.f32 %v3621, %v4197
        %v4214 = vadd.f32 %v3622, %v4198
        %v4215 = vadd.f32 %v3623, %v4199
        %v4216 = vadd.f32 %v3624, %v4200
        %v4217 = vadd.f32 %v3625, %v4201
        %v4218 = vadd.f32 %v3626, %v4202
        %v4219 = vadd.f32 %v3627, %v4203
        %v4220 = vadd.f32 %v3628, %v4204
        %v4221 = vadd.f32 %v3629, %v4205
        %v4222 = vadd.f32 %v3630, %v4206
        %v4223 = vadd.f32 %v3631, %v4207
        %v4224 = vadd.f32 %v3632, %v4208
        %v4225 = vadd.f32 %v3633, %v4209
        %v4226 = vadd.f32 %v3634, %v4210
        %v4227 = vadd.f32 %v3635, %v4211
        %v4228 = vadd.f32 %v3652, 1.0
        %v4229 = vadd.f32 %v3653, 1.0
        %v4230 = vadd.f32 %v3654, 1.0
        %v4231 = vadd.f32 %v3655, 1.0
        %v4232 = vadd.f32 %v3656, 1.0
        %v4233 = vadd.f32 %v3657, 1.0
        %v4234 = vadd.f32 %v3658, 1.0
        %v4235 = vadd.f32 %v3659, 1.0
        %v4236 = vadd.f32 %v3660, 1.0
        %v4237 = vadd.f32 %v3661, 1.0
        %v4238 = vadd.f32 %v3662, 1.0
        %v4239 = vadd.f32 %v3663, 1.0
        %v4240 = vadd.f32 %v3664, 1.0
        %v4241 = vadd.f32 %v3665, 1.0
        %v4242 = vadd.f32 %v3666, 1.0
        %v4243 = vadd.f32 %v3667, 1.0
        %v4244 = vsel %vm3780, %v4228, 1.0
        %v4245 = vsel %vm3781, %v4229, 1.0
        %v4246 = vsel %vm3782, %v4230, 1.0
        %v4247 = vsel %vm3783, %v4231, 1.0
        %v4248 = vsel %vm3784, %v4232, 1.0
        %v4249 = vsel %vm3785, %v4233, 1.0
        %v4250 = vsel %vm3786, %v4234, 1.0
        %v4251 = vsel %vm3787, %v4235, 1.0
        %v4252 = vsel %vm3788, %v4236, 1.0
        %v4253 = vsel %vm3789, %v4237, 1.0
        %v4254 = vsel %vm3790, %v4238, 1.0
        %v4255 = vsel %vm3791, %v4239, 1.0
        %v4256 = vsel %vm3792, %v4240, 1.0
        %v4257 = vsel %vm3793, %v4241, 1.0
        %v4258 = vsel %vm3794, %v4242, 1.0
        %v4259 = vsel %vm3795, %v4243, 1.0
        %vm4260 = vcmp.eq.f32.partialorder %v692, %v3908
        %vm4261 = vcmp.eq.f32.partialorder %v693, %v3908
        %vm4262 = vcmp.eq.f32.partialorder %v694, %v3909
        %vm4263 = vcmp.eq.f32.partialorder %v695, %v3909
        %vm4264 = vcmp.eq.f32.partialorder %v696, %v3910
        %vm4265 = vcmp.eq.f32.partialorder %v697, %v3910
        %vm4266 = vcmp.eq.f32.partialorder %v698, %v3911
        %vm4267 = vcmp.eq.f32.partialorder %v699, %v3911
        %vm4268 = vcmp.eq.f32.partialorder %v700, %v3912
        %vm4269 = vcmp.eq.f32.partialorder %v701, %v3912
        %vm4270 = vcmp.eq.f32.partialorder %v702, %v3913
        %vm4271 = vcmp.eq.f32.partialorder %v703, %v3913
        %vm4272 = vcmp.eq.f32.partialorder %v704, %v3914
        %vm4273 = vcmp.eq.f32.partialorder %v705, %v3914
        %vm4274 = vcmp.eq.f32.partialorder %v706, %v3915
        %vm4275 = vcmp.eq.f32.partialorder %v707, %v3915
        %vm4276 = vcmp.eq.f32.partialorder %v708, %v3916
        %vm4277 = vcmp.eq.f32.partialorder %v709, %v3916
        %vm4278 = vcmp.eq.f32.partialorder %v710, %v3917
        %vm4279 = vcmp.eq.f32.partialorder %v711, %v3917
        %vm4280 = vcmp.eq.f32.partialorder %v712, %v3918
        %vm4281 = vcmp.eq.f32.partialorder %v713, %v3918
        %vm4282 = vcmp.eq.f32.partialorder %v714, %v3919
        %vm4283 = vcmp.eq.f32.partialorder %v715, %v3919
        %vm4284 = vcmp.eq.f32.partialorder %v716, %v3920
        %vm4285 = vcmp.eq.f32.partialorder %v717, %v3920
        %vm4286 = vcmp.eq.f32.partialorder %v718, %v3921
        %vm4287 = vcmp.eq.f32.partialorder %v719, %v3921
        %vm4288 = vcmp.eq.f32.partialorder %v720, %v3922
        %vm4289 = vcmp.eq.f32.partialorder %v721, %v3922
        %vm4290 = vcmp.eq.f32.partialorder %v722, %v3923
        %vm4291 = vcmp.eq.f32.partialorder %v723, %v3923
        %v4292 = vsel %vm4260, 1.0, 0.0
        %v4293 = vsel %vm4261, 1.0, 0.0
        %v4294 = vsel %vm4262, 1.0, 0.0
        %v4295 = vsel %vm4263, 1.0, 0.0
        %v4296 = vsel %vm4264, 1.0, 0.0
        %v4297 = vsel %vm4265, 1.0, 0.0
        %v4298 = vsel %vm4266, 1.0, 0.0
        %v4299 = vsel %vm4267, 1.0, 0.0
        %v4300 = vsel %vm4268, 1.0, 0.0
        %v4301 = vsel %vm4269, 1.0, 0.0
        %v4302 = vsel %vm4270, 1.0, 0.0
        %v4303 = vsel %vm4271, 1.0, 0.0
        %v4304 = vsel %vm4272, 1.0, 0.0
        %v4305 = vsel %vm4273, 1.0, 0.0
        %v4306 = vsel %vm4274, 1.0, 0.0
        %v4307 = vsel %vm4275, 1.0, 0.0
        %v4308 = vsel %vm4276, 1.0, 0.0
        %v4309 = vsel %vm4277, 1.0, 0.0
        %v4310 = vsel %vm4278, 1.0, 0.0
        %v4311 = vsel %vm4279, 1.0, 0.0
        %v4312 = vsel %vm4280, 1.0, 0.0
        %v4313 = vsel %vm4281, 1.0, 0.0
        %v4314 = vsel %vm4282, 1.0, 0.0
        %v4315 = vsel %vm4283, 1.0, 0.0
        %v4316 = vsel %vm4284, 1.0, 0.0
        %v4317 = vsel %vm4285, 1.0, 0.0
        %v4318 = vsel %vm4286, 1.0, 0.0
        %v4319 = vsel %vm4287, 1.0, 0.0
        %v4320 = vsel %vm4288, 1.0, 0.0
        %v4321 = vsel %vm4289, 1.0, 0.0
        %v4322 = vsel %vm4290, 1.0, 0.0
        %v4323 = vsel %vm4291, 1.0, 0.0
        %v4324 = vadd.f32 %v4292, %v4293
        %4325 = vadd.xlane.f32.xlu0 %v4324
        %v4326 = vpop.xlane.xlu0 %4325
        %v4327 = vadd.f32 %v4294, %v4295
        %4328 = vadd.xlane.f32.xlu0 %v4327
        %v4329 = vpop.xlane.xlu0 %4328
        %v4330 = vadd.f32 %v4296, %v4297
        %4331 = vadd.xlane.f32.xlu0 %v4330
        %v4332 = vpop.xlane.xlu0 %4331
        %v4333 = vadd.f32 %v4298, %v4299
        %4334 = vadd.xlane.f32.xlu0 %v4333
        %v4335 = vpop.xlane.xlu0 %4334
        %v4336 = vadd.f32 %v4300, %v4301
        %4337 = vadd.xlane.f32.xlu0 %v4336
        %v4338 = vpop.xlane.xlu0 %4337
        %v4339 = vadd.f32 %v4302, %v4303
        %4340 = vadd.xlane.f32.xlu0 %v4339
        %v4341 = vpop.xlane.xlu0 %4340
        %v4342 = vadd.f32 %v4304, %v4305
        %4343 = vadd.xlane.f32.xlu0 %v4342
        %v4344 = vpop.xlane.xlu0 %4343
        %v4345 = vadd.f32 %v4306, %v4307
        %4346 = vadd.xlane.f32.xlu0 %v4345
        %v4347 = vpop.xlane.xlu0 %4346
        %v4348 = vadd.f32 %v4308, %v4309
        %4349 = vadd.xlane.f32.xlu0 %v4348
        %v4350 = vpop.xlane.xlu0 %4349
        %v4351 = vadd.f32 %v4310, %v4311
        %4352 = vadd.xlane.f32.xlu0 %v4351
        %v4353 = vpop.xlane.xlu0 %4352
        %v4354 = vadd.f32 %v4312, %v4313
        %4355 = vadd.xlane.f32.xlu0 %v4354
        %v4356 = vpop.xlane.xlu0 %4355
        %v4357 = vadd.f32 %v4314, %v4315
        %4358 = vadd.xlane.f32.xlu0 %v4357
        %v4359 = vpop.xlane.xlu0 %4358
        %v4360 = vadd.f32 %v4316, %v4317
        %4361 = vadd.xlane.f32.xlu0 %v4360
        %v4362 = vpop.xlane.xlu0 %4361
        %v4363 = vadd.f32 %v4318, %v4319
        %4364 = vadd.xlane.f32.xlu0 %v4363
        %v4365 = vpop.xlane.xlu0 %4364
        %v4366 = vadd.f32 %v4320, %v4321
        %4367 = vadd.xlane.f32.xlu0 %v4366
        %v4368 = vpop.xlane.xlu0 %4367
        %v4369 = vadd.f32 %v4322, %v4323
        %4370 = vadd.xlane.f32.xlu0 %v4369
        %v4371 = vpop.xlane.xlu0 %4370
        %vm4372 = vcmp.gt.f32.partialorder %v4326, %v4244
        %vm4373 = vcmp.gt.f32.partialorder %v4329, %v4245
        %vm4374 = vcmp.gt.f32.partialorder %v4332, %v4246
        %vm4375 = vcmp.gt.f32.partialorder %v4335, %v4247
        %vm4376 = vcmp.gt.f32.partialorder %v4338, %v4248
        %vm4377 = vcmp.gt.f32.partialorder %v4341, %v4249
        %vm4378 = vcmp.gt.f32.partialorder %v4344, %v4250
        %vm4379 = vcmp.gt.f32.partialorder %v4347, %v4251
        %vm4380 = vcmp.gt.f32.partialorder %v4350, %v4252
        %vm4381 = vcmp.gt.f32.partialorder %v4353, %v4253
        %vm4382 = vcmp.gt.f32.partialorder %v4356, %v4254
        %vm4383 = vcmp.gt.f32.partialorder %v4359, %v4255
        %vm4384 = vcmp.gt.f32.partialorder %v4362, %v4256
        %vm4385 = vcmp.gt.f32.partialorder %v4365, %v4257
        %vm4386 = vcmp.gt.f32.partialorder %v4368, %v4258
        %vm4387 = vcmp.gt.f32.partialorder %v4371, %v4259
        %vm4388 = vcmp.gt.f32.partialorder %v692, %v3908
        %vm4389 = vcmp.gt.f32.partialorder %v693, %v3908
        %vm4390 = vcmp.gt.f32.partialorder %v694, %v3909
        %vm4391 = vcmp.gt.f32.partialorder %v695, %v3909
        %vm4392 = vcmp.gt.f32.partialorder %v696, %v3910
        %vm4393 = vcmp.gt.f32.partialorder %v697, %v3910
        %vm4394 = vcmp.gt.f32.partialorder %v698, %v3911
        %vm4395 = vcmp.gt.f32.partialorder %v699, %v3911
        %vm4396 = vcmp.gt.f32.partialorder %v700, %v3912
        %vm4397 = vcmp.gt.f32.partialorder %v701, %v3912
        %vm4398 = vcmp.gt.f32.partialorder %v702, %v3913
        %vm4399 = vcmp.gt.f32.partialorder %v703, %v3913
        %vm4400 = vcmp.gt.f32.partialorder %v704, %v3914
        %vm4401 = vcmp.gt.f32.partialorder %v705, %v3914
        %vm4402 = vcmp.gt.f32.partialorder %v706, %v3915
        %vm4403 = vcmp.gt.f32.partialorder %v707, %v3915
        %vm4404 = vcmp.gt.f32.partialorder %v708, %v3916
        %vm4405 = vcmp.gt.f32.partialorder %v709, %v3916
        %vm4406 = vcmp.gt.f32.partialorder %v710, %v3917
        %vm4407 = vcmp.gt.f32.partialorder %v711, %v3917
        %vm4408 = vcmp.gt.f32.partialorder %v712, %v3918
        %vm4409 = vcmp.gt.f32.partialorder %v713, %v3918
        %vm4410 = vcmp.gt.f32.partialorder %v714, %v3919
        %vm4411 = vcmp.gt.f32.partialorder %v715, %v3919
        %vm4412 = vcmp.gt.f32.partialorder %v716, %v3920
        %vm4413 = vcmp.gt.f32.partialorder %v717, %v3920
        %vm4414 = vcmp.gt.f32.partialorder %v718, %v3921
        %vm4415 = vcmp.gt.f32.partialorder %v719, %v3921
        %vm4416 = vcmp.gt.f32.partialorder %v720, %v3922
        %vm4417 = vcmp.gt.f32.partialorder %v721, %v3922
        %vm4418 = vcmp.gt.f32.partialorder %v722, %v3923
        %vm4419 = vcmp.gt.f32.partialorder %v723, %v3923
        %v4420 = vsel %vm4388, %v692, inf
        %v4421 = vsel %vm4389, %v693, inf
        %v4422 = vsel %vm4390, %v694, inf
        %v4423 = vsel %vm4391, %v695, inf
        %v4424 = vsel %vm4392, %v696, inf
        %v4425 = vsel %vm4393, %v697, inf
        %v4426 = vsel %vm4394, %v698, inf
        %v4427 = vsel %vm4395, %v699, inf
        %v4428 = vsel %vm4396, %v700, inf
        %v4429 = vsel %vm4397, %v701, inf
        %v4430 = vsel %vm4398, %v702, inf
        %v4431 = vsel %vm4399, %v703, inf
        %v4432 = vsel %vm4400, %v704, inf
        %v4433 = vsel %vm4401, %v705, inf
        %v4434 = vsel %vm4402, %v706, inf
        %v4435 = vsel %vm4403, %v707, inf
        %v4436 = vsel %vm4404, %v708, inf
        %v4437 = vsel %vm4405, %v709, inf
        %v4438 = vsel %vm4406, %v710, inf
        %v4439 = vsel %vm4407, %v711, inf
        %v4440 = vsel %vm4408, %v712, inf
        %v4441 = vsel %vm4409, %v713, inf
        %v4442 = vsel %vm4410, %v714, inf
        %v4443 = vsel %vm4411, %v715, inf
        %v4444 = vsel %vm4412, %v716, inf
        %v4445 = vsel %vm4413, %v717, inf
        %v4446 = vsel %vm4414, %v718, inf
        %v4447 = vsel %vm4415, %v719, inf
        %v4448 = vsel %vm4416, %v720, inf
        %v4449 = vsel %vm4417, %v721, inf
        %v4450 = vsel %vm4418, %v722, inf
        %v4451 = vsel %vm4419, %v723, inf
        %v4452 = vmin.f32 %v4420, %v4421
        %4453 = vmin.xlane.f32.xlu0 %v4452
        %v4454 = vpop.xlane.xlu0 %4453
        %v4455 = vmin.f32 %v4422, %v4423
        %4456 = vmin.xlane.f32.xlu0 %v4455
        %v4457 = vpop.xlane.xlu0 %4456
        %v4458 = vmin.f32 %v4424, %v4425
        %4459 = vmin.xlane.f32.xlu0 %v4458
        %v4460 = vpop.xlane.xlu0 %4459
        %v4461 = vmin.f32 %v4426, %v4427
        %4462 = vmin.xlane.f32.xlu0 %v4461
        %v4463 = vpop.xlane.xlu0 %4462
        %v4464 = vmin.f32 %v4428, %v4429
        %4465 = vmin.xlane.f32.xlu0 %v4464
        %v4466 = vpop.xlane.xlu0 %4465
        %v4467 = vmin.f32 %v4430, %v4431
        %4468 = vmin.xlane.f32.xlu0 %v4467
        %v4469 = vpop.xlane.xlu0 %4468
        %v4470 = vmin.f32 %v4432, %v4433
        %4471 = vmin.xlane.f32.xlu0 %v4470
        %v4472 = vpop.xlane.xlu0 %4471
        %v4473 = vmin.f32 %v4434, %v4435
        %4474 = vmin.xlane.f32.xlu0 %v4473
        %v4475 = vpop.xlane.xlu0 %4474
        %v4476 = vmin.f32 %v4436, %v4437
        %4477 = vmin.xlane.f32.xlu0 %v4476
        %v4478 = vpop.xlane.xlu0 %4477
        %v4479 = vmin.f32 %v4438, %v4439
        %4480 = vmin.xlane.f32.xlu0 %v4479
        %v4481 = vpop.xlane.xlu0 %4480
        %v4482 = vmin.f32 %v4440, %v4441
        %4483 = vmin.xlane.f32.xlu0 %v4482
        %v4484 = vpop.xlane.xlu0 %4483
        %v4485 = vmin.f32 %v4442, %v4443
        %4486 = vmin.xlane.f32.xlu0 %v4485
        %v4487 = vpop.xlane.xlu0 %4486
        %v4488 = vmin.f32 %v4444, %v4445
        %4489 = vmin.xlane.f32.xlu0 %v4488
        %v4490 = vpop.xlane.xlu0 %4489
        %v4491 = vmin.f32 %v4446, %v4447
        %4492 = vmin.xlane.f32.xlu0 %v4491
        %v4493 = vpop.xlane.xlu0 %4492
        %v4494 = vmin.f32 %v4448, %v4449
        %4495 = vmin.xlane.f32.xlu0 %v4494
        %v4496 = vpop.xlane.xlu0 %4495
        %v4497 = vmin.f32 %v4450, %v4451
        %4498 = vmin.xlane.f32.xlu0 %v4497
        %v4499 = vpop.xlane.xlu0 %4498
        %v4500 = vsel %vm4372, %v3908, %v4454
        %v4501 = vsel %vm4373, %v3909, %v4457
        %v4502 = vsel %vm4374, %v3910, %v4460
        %v4503 = vsel %vm4375, %v3911, %v4463
        %v4504 = vsel %vm4376, %v3912, %v4466
        %v4505 = vsel %vm4377, %v3913, %v4469
        %v4506 = vsel %vm4378, %v3914, %v4472
        %v4507 = vsel %vm4379, %v3915, %v4475
        %v4508 = vsel %vm4380, %v3916, %v4478
        %v4509 = vsel %vm4381, %v3917, %v4481
        %v4510 = vsel %vm4382, %v3918, %v4484
        %v4511 = vsel %vm4383, %v3919, %v4487
        %v4512 = vsel %vm4384, %v3920, %v4490
        %v4513 = vsel %vm4385, %v3921, %v4493
        %v4514 = vsel %vm4386, %v3922, %v4496
        %v4515 = vsel %vm4387, %v3923, %v4499
        %v4516 = vrsqrt.pop %v4500
        %v4517 = vmul.f32 %v4516, %v4500
        %v4518 = vmul.f32 %v4517, %v4516
        %v4519 = vmul.f32 0.5, %v4518
        %v4520 = vsub.f32 1.5, %v4519
        %v4521 = vmul.f32 %v4516, %v4520
        %v4522 = vmul.f32 %v4500, %v4521
        %vm4523 = vcmp.eq.f32.partialorder %v4500, inf
        %v4524 = vsel %vm4523, %v4500, %v4522
        %vm4525 = vcmp.eq.f32.partialorder %v4500, 0.0
        %v4526 = vand.u32 %v4500, 2147483648
        %v4527 = vsel %vm4525, %v4526, %v4524
        %v4528 = vrsqrt.pop %v4501
        %v4529 = vmul.f32 %v4528, %v4501
        %v4530 = vmul.f32 %v4529, %v4528
        %v4531 = vmul.f32 0.5, %v4530
        %v4532 = vsub.f32 1.5, %v4531
        %v4533 = vmul.f32 %v4528, %v4532
        %v4534 = vmul.f32 %v4501, %v4533
        %vm4535 = vcmp.eq.f32.partialorder %v4501, inf
        %v4536 = vsel %vm4535, %v4501, %v4534
        %vm4537 = vcmp.eq.f32.partialorder %v4501, 0.0
        %v4538 = vand.u32 %v4501, 2147483648
        %v4539 = vsel %vm4537, %v4538, %v4536
        %v4540 = vrsqrt.pop %v4502
        %v4541 = vmul.f32 %v4540, %v4502
        %v4542 = vmul.f32 %v4541, %v4540
        %v4543 = vmul.f32 0.5, %v4542
        %v4544 = vsub.f32 1.5, %v4543
        %v4545 = vmul.f32 %v4540, %v4544
        %v4546 = vmul.f32 %v4502, %v4545
        %vm4547 = vcmp.eq.f32.partialorder %v4502, inf
        %v4548 = vsel %vm4547, %v4502, %v4546
        %vm4549 = vcmp.eq.f32.partialorder %v4502, 0.0
        %v4550 = vand.u32 %v4502, 2147483648
        %v4551 = vsel %vm4549, %v4550, %v4548
        %v4552 = vrsqrt.pop %v4503
        %v4553 = vmul.f32 %v4552, %v4503
        %v4554 = vmul.f32 %v4553, %v4552
        %v4555 = vmul.f32 0.5, %v4554
        %v4556 = vsub.f32 1.5, %v4555
        %v4557 = vmul.f32 %v4552, %v4556
        %v4558 = vmul.f32 %v4503, %v4557
        %vm4559 = vcmp.eq.f32.partialorder %v4503, inf
        %v4560 = vsel %vm4559, %v4503, %v4558
        %vm4561 = vcmp.eq.f32.partialorder %v4503, 0.0
        %v4562 = vand.u32 %v4503, 2147483648
        %v4563 = vsel %vm4561, %v4562, %v4560
        %v4564 = vrsqrt.pop %v4504
        %v4565 = vmul.f32 %v4564, %v4504
        %v4566 = vmul.f32 %v4565, %v4564
        %v4567 = vmul.f32 0.5, %v4566
        %v4568 = vsub.f32 1.5, %v4567
        %v4569 = vmul.f32 %v4564, %v4568
        %v4570 = vmul.f32 %v4504, %v4569
        %vm4571 = vcmp.eq.f32.partialorder %v4504, inf
        %v4572 = vsel %vm4571, %v4504, %v4570
        %vm4573 = vcmp.eq.f32.partialorder %v4504, 0.0
        %v4574 = vand.u32 %v4504, 2147483648
        %v4575 = vsel %vm4573, %v4574, %v4572
        %v4576 = vrsqrt.pop %v4505
        %v4577 = vmul.f32 %v4576, %v4505
        %v4578 = vmul.f32 %v4577, %v4576
        %v4579 = vmul.f32 0.5, %v4578
        %v4580 = vsub.f32 1.5, %v4579
        %v4581 = vmul.f32 %v4576, %v4580
        %v4582 = vmul.f32 %v4505, %v4581
        %vm4583 = vcmp.eq.f32.partialorder %v4505, inf
        %v4584 = vsel %vm4583, %v4505, %v4582
        %vm4585 = vcmp.eq.f32.partialorder %v4505, 0.0
        %v4586 = vand.u32 %v4505, 2147483648
        %v4587 = vsel %vm4585, %v4586, %v4584
        %v4588 = vrsqrt.pop %v4506
        %v4589 = vmul.f32 %v4588, %v4506
        %v4590 = vmul.f32 %v4589, %v4588
        %v4591 = vmul.f32 0.5, %v4590
        %v4592 = vsub.f32 1.5, %v4591
        %v4593 = vmul.f32 %v4588, %v4592
        %v4594 = vmul.f32 %v4506, %v4593
        %vm4595 = vcmp.eq.f32.partialorder %v4506, inf
        %v4596 = vsel %vm4595, %v4506, %v4594
        %vm4597 = vcmp.eq.f32.partialorder %v4506, 0.0
        %v4598 = vand.u32 %v4506, 2147483648
        %v4599 = vsel %vm4597, %v4598, %v4596
        %v4600 = vrsqrt.pop %v4507
        %v4601 = vmul.f32 %v4600, %v4507
        %v4602 = vmul.f32 %v4601, %v4600
        %v4603 = vmul.f32 0.5, %v4602
        %v4604 = vsub.f32 1.5, %v4603
        %v4605 = vmul.f32 %v4600, %v4604
        %v4606 = vmul.f32 %v4507, %v4605
        %vm4607 = vcmp.eq.f32.partialorder %v4507, inf
        %v4608 = vsel %vm4607, %v4507, %v4606
        %vm4609 = vcmp.eq.f32.partialorder %v4507, 0.0
        %v4610 = vand.u32 %v4507, 2147483648
        %v4611 = vsel %vm4609, %v4610, %v4608
        %v4612 = vrsqrt.pop %v4508
        %v4613 = vmul.f32 %v4612, %v4508
        %v4614 = vmul.f32 %v4613, %v4612
        %v4615 = vmul.f32 0.5, %v4614
        %v4616 = vsub.f32 1.5, %v4615
        %v4617 = vmul.f32 %v4612, %v4616
        %v4618 = vmul.f32 %v4508, %v4617
        %vm4619 = vcmp.eq.f32.partialorder %v4508, inf
        %v4620 = vsel %vm4619, %v4508, %v4618
        %vm4621 = vcmp.eq.f32.partialorder %v4508, 0.0
        %v4622 = vand.u32 %v4508, 2147483648
        %v4623 = vsel %vm4621, %v4622, %v4620
        %v4624 = vrsqrt.pop %v4509
        %v4625 = vmul.f32 %v4624, %v4509
        %v4626 = vmul.f32 %v4625, %v4624
        %v4627 = vmul.f32 0.5, %v4626
        %v4628 = vsub.f32 1.5, %v4627
        %v4629 = vmul.f32 %v4624, %v4628
        %v4630 = vmul.f32 %v4509, %v4629
        %vm4631 = vcmp.eq.f32.partialorder %v4509, inf
        %v4632 = vsel %vm4631, %v4509, %v4630
        %vm4633 = vcmp.eq.f32.partialorder %v4509, 0.0
        %v4634 = vand.u32 %v4509, 2147483648
        %v4635 = vsel %vm4633, %v4634, %v4632
        %v4636 = vrsqrt.pop %v4510
        %v4637 = vmul.f32 %v4636, %v4510
        %v4638 = vmul.f32 %v4637, %v4636
        %v4639 = vmul.f32 0.5, %v4638
        %v4640 = vsub.f32 1.5, %v4639
        %v4641 = vmul.f32 %v4636, %v4640
        %v4642 = vmul.f32 %v4510, %v4641
        %vm4643 = vcmp.eq.f32.partialorder %v4510, inf
        %v4644 = vsel %vm4643, %v4510, %v4642
        %vm4645 = vcmp.eq.f32.partialorder %v4510, 0.0
        %v4646 = vand.u32 %v4510, 2147483648
        %v4647 = vsel %vm4645, %v4646, %v4644
        %v4648 = vrsqrt.pop %v4511
        %v4649 = vmul.f32 %v4648, %v4511
        %v4650 = vmul.f32 %v4649, %v4648
        %v4651 = vmul.f32 0.5, %v4650
        %v4652 = vsub.f32 1.5, %v4651
        %v4653 = vmul.f32 %v4648, %v4652
        %v4654 = vmul.f32 %v4511, %v4653
        %vm4655 = vcmp.eq.f32.partialorder %v4511, inf
        %v4656 = vsel %vm4655, %v4511, %v4654
        %vm4657 = vcmp.eq.f32.partialorder %v4511, 0.0
        %v4658 = vand.u32 %v4511, 2147483648
        %v4659 = vsel %vm4657, %v4658, %v4656
        %v4660 = vrsqrt.pop %v4512
        %v4661 = vmul.f32 %v4660, %v4512
        %v4662 = vmul.f32 %v4661, %v4660
        %v4663 = vmul.f32 0.5, %v4662
        %v4664 = vsub.f32 1.5, %v4663
        %v4665 = vmul.f32 %v4660, %v4664
        %v4666 = vmul.f32 %v4512, %v4665
        %vm4667 = vcmp.eq.f32.partialorder %v4512, inf
        %v4668 = vsel %vm4667, %v4512, %v4666
        %vm4669 = vcmp.eq.f32.partialorder %v4512, 0.0
        %v4670 = vand.u32 %v4512, 2147483648
        %v4671 = vsel %vm4669, %v4670, %v4668
        %v4672 = vrsqrt.pop %v4513
        %v4673 = vmul.f32 %v4672, %v4513
        %v4674 = vmul.f32 %v4673, %v4672
        %v4675 = vmul.f32 0.5, %v4674
        %v4676 = vsub.f32 1.5, %v4675
        %v4677 = vmul.f32 %v4672, %v4676
        %v4678 = vmul.f32 %v4513, %v4677
        %vm4679 = vcmp.eq.f32.partialorder %v4513, inf
        %v4680 = vsel %vm4679, %v4513, %v4678
        %vm4681 = vcmp.eq.f32.partialorder %v4513, 0.0
        %v4682 = vand.u32 %v4513, 2147483648
        %v4683 = vsel %vm4681, %v4682, %v4680
        %v4684 = vrsqrt.pop %v4514
        %v4685 = vmul.f32 %v4684, %v4514
        %v4686 = vmul.f32 %v4685, %v4684
        %v4687 = vmul.f32 0.5, %v4686
        %v4688 = vsub.f32 1.5, %v4687
        %v4689 = vmul.f32 %v4684, %v4688
        %v4690 = vmul.f32 %v4514, %v4689
        %vm4691 = vcmp.eq.f32.partialorder %v4514, inf
        %v4692 = vsel %vm4691, %v4514, %v4690
        %vm4693 = vcmp.eq.f32.partialorder %v4514, 0.0
        %v4694 = vand.u32 %v4514, 2147483648
        %v4695 = vsel %vm4693, %v4694, %v4692
        %v4696 = vrsqrt.pop %v4515
        %v4697 = vmul.f32 %v4696, %v4515
        %v4698 = vmul.f32 %v4697, %v4696
        %v4699 = vmul.f32 0.5, %v4698
        %v4700 = vsub.f32 1.5, %v4699
        %v4701 = vmul.f32 %v4696, %v4700
        %v4702 = vmul.f32 %v4515, %v4701
        %vm4703 = vcmp.eq.f32.partialorder %v4515, inf
        %v4704 = vsel %vm4703, %v4515, %v4702
        %vm4705 = vcmp.eq.f32.partialorder %v4515, 0.0
        %v4706 = vand.u32 %v4515, 2147483648
        %v4707 = vsel %vm4705, %v4706, %v4704
        %v4708 = vsub.f32 0.0, %v4500
        %v4709 = vsub.f32 0.0, %v4501
        %v4710 = vsub.f32 0.0, %v4502
        %v4711 = vsub.f32 0.0, %v4503
        %v4712 = vsub.f32 0.0, %v4504
        %v4713 = vsub.f32 0.0, %v4505
        %v4714 = vsub.f32 0.0, %v4506
        %v4715 = vsub.f32 0.0, %v4507
        %v4716 = vsub.f32 0.0, %v4508
        %v4717 = vsub.f32 0.0, %v4509
        %v4718 = vsub.f32 0.0, %v4510
        %v4719 = vsub.f32 0.0, %v4511
        %v4720 = vsub.f32 0.0, %v4512
        %v4721 = vsub.f32 0.0, %v4513
        %v4722 = vsub.f32 0.0, %v4514
        %v4723 = vsub.f32 0.0, %v4515
        %v4724 = vmul.f32 %v4708, 1111.1111
        %v4725 = vmul.f32 %v4709, 1111.1111
        %v4726 = vmul.f32 %v4710, 1111.1111
        %v4727 = vmul.f32 %v4711, 1111.1111
        %v4728 = vmul.f32 %v4712, 1111.1111
        %v4729 = vmul.f32 %v4713, 1111.1111
        %v4730 = vmul.f32 %v4714, 1111.1111
        %v4731 = vmul.f32 %v4715, 1111.1111
        %v4732 = vmul.f32 %v4716, 1111.1111
        %v4733 = vmul.f32 %v4717, 1111.1111
        %v4734 = vmul.f32 %v4718, 1111.1111
        %v4735 = vmul.f32 %v4719, 1111.1111
        %v4736 = vmul.f32 %v4720, 1111.1111
        %v4737 = vmul.f32 %v4721, 1111.1111
        %v4738 = vmul.f32 %v4722, 1111.1111
        %v4739 = vmul.f32 %v4723, 1111.1111
        %v4740 = vmul.f32 %v4724, 1.442695
        %v4741 = vpow.pop %v4740
        %v4742 = vmul.f32 %v4725, 1.442695
        %v4743 = vpow.pop %v4742
        %v4744 = vmul.f32 %v4726, 1.442695
        %v4745 = vpow.pop %v4744
        %v4746 = vmul.f32 %v4727, 1.442695
        %v4747 = vpow.pop %v4746
        %v4748 = vmul.f32 %v4728, 1.442695
        %v4749 = vpow.pop %v4748
        %v4750 = vmul.f32 %v4729, 1.442695
        %v4751 = vpow.pop %v4750
        %v4752 = vmul.f32 %v4730, 1.442695
        %v4753 = vpow.pop %v4752
        %v4754 = vmul.f32 %v4731, 1.442695
        %v4755 = vpow.pop %v4754
        %v4756 = vmul.f32 %v4732, 1.442695
        %v4757 = vpow.pop %v4756
        %v4758 = vmul.f32 %v4733, 1.442695
        %v4759 = vpow.pop %v4758
        %v4760 = vmul.f32 %v4734, 1.442695
        %v4761 = vpow.pop %v4760
        %v4762 = vmul.f32 %v4735, 1.442695
        %v4763 = vpow.pop %v4762
        %v4764 = vmul.f32 %v4736, 1.442695
        %v4765 = vpow.pop %v4764
        %v4766 = vmul.f32 %v4737, 1.442695
        %v4767 = vpow.pop %v4766
        %v4768 = vmul.f32 %v4738, 1.442695
        %v4769 = vpow.pop %v4768
        %v4770 = vmul.f32 %v4739, 1.442695
        %v4771 = vpow.pop %v4770
        %v4772 = vsub.f32 0.07, %v4527
        %v4773 = vsub.f32 0.07, %v4539
        %v4774 = vsub.f32 0.07, %v4551
        %v4775 = vsub.f32 0.07, %v4563
        %v4776 = vsub.f32 0.07, %v4575
        %v4777 = vsub.f32 0.07, %v4587
        %v4778 = vsub.f32 0.07, %v4599
        %v4779 = vsub.f32 0.07, %v4611
        %v4780 = vsub.f32 0.07, %v4623
        %v4781 = vsub.f32 0.07, %v4635
        %v4782 = vsub.f32 0.07, %v4647
        %v4783 = vsub.f32 0.07, %v4659
        %v4784 = vsub.f32 0.07, %v4671
        %v4785 = vsub.f32 0.07, %v4683
        %v4786 = vsub.f32 0.07, %v4695
        %v4787 = vsub.f32 0.07, %v4707
        %v4788 = vmul.f32 %v4772, %v4741
        %v4789 = vmul.f32 %v4773, %v4743
        %v4790 = vmul.f32 %v4774, %v4745
        %v4791 = vmul.f32 %v4775, %v4747
        %v4792 = vmul.f32 %v4776, %v4749
        %v4793 = vmul.f32 %v4777, %v4751
        %v4794 = vmul.f32 %v4778, %v4753
        %v4795 = vmul.f32 %v4779, %v4755
        %v4796 = vmul.f32 %v4780, %v4757
        %v4797 = vmul.f32 %v4781, %v4759
        %v4798 = vmul.f32 %v4782, %v4761
        %v4799 = vmul.f32 %v4783, %v4763
        %v4800 = vmul.f32 %v4784, %v4765
        %v4801 = vmul.f32 %v4785, %v4767
        %v4802 = vmul.f32 %v4786, %v4769
        %v4803 = vmul.f32 %v4787, %v4771
        %v4804 = vadd.f32 %v4212, %v4788
        %v4805 = vadd.f32 %v4213, %v4789
        %v4806 = vadd.f32 %v4214, %v4790
        %v4807 = vadd.f32 %v4215, %v4791
        %v4808 = vadd.f32 %v4216, %v4792
        %v4809 = vadd.f32 %v4217, %v4793
        %v4810 = vadd.f32 %v4218, %v4794
        %v4811 = vadd.f32 %v4219, %v4795
        %v4812 = vadd.f32 %v4220, %v4796
        %v4813 = vadd.f32 %v4221, %v4797
        %v4814 = vadd.f32 %v4222, %v4798
        %v4815 = vadd.f32 %v4223, %v4799
        %v4816 = vadd.f32 %v4224, %v4800
        %v4817 = vadd.f32 %v4225, %v4801
        %v4818 = vadd.f32 %v4226, %v4802
        %v4819 = vadd.f32 %v4227, %v4803
        %v4820 = vlaneseq
        %v4821 = vshrl.u32 %v4820, 7
        %v4822 = vadd.s32 %v4821, 8
        %v4823 = vadd.s32 %v4821, 16
        %v4824 = vadd.s32 %v4821, 24
        %v4825 = vadd.s32 %v4821, 32
        %v4826 = vadd.s32 %v4821, 40
        %v4827 = vadd.s32 %v4821, 48
        %v4828 = vadd.s32 %v4821, 56
        %v4829 = vadd.s32 %v4821, 64
        %v4830 = vadd.s32 %v4821, 72
        %v4831 = vadd.s32 %v4821, 80
        %v4832 = vadd.s32 %v4821, 88
        %v4833 = vadd.s32 %v4821, 96
        %v4834 = vadd.s32 %v4821, 104
        %v4835 = vadd.s32 %v4821, 112
        %v4836 = vadd.s32 %v4821, 120
        %s4837 = smul.u32 %s21, 128
        %v4838 = vstv %s4837
        %v4839 = vadd.s32 %v4821, %v4838
        %v4840 = vadd.s32 %v4822, %v4838
        %v4841 = vadd.s32 %v4823, %v4838
        %v4842 = vadd.s32 %v4824, %v4838
        %v4843 = vadd.s32 %v4825, %v4838
        %v4844 = vadd.s32 %v4826, %v4838
        %v4845 = vadd.s32 %v4827, %v4838
        %v4846 = vadd.s32 %v4828, %v4838
        %v4847 = vadd.s32 %v4829, %v4838
        %v4848 = vadd.s32 %v4830, %v4838
        %v4849 = vadd.s32 %v4831, %v4838
        %v4850 = vadd.s32 %v4832, %v4838
        %v4851 = vadd.s32 %v4833, %v4838
        %v4852 = vadd.s32 %v4834, %v4838
        %v4853 = vadd.s32 %v4835, %v4838
        %v4854 = vadd.s32 %v4836, %v4838
        %vm4855 = vcmp.lt.s32.totalorder %v4839, 192
        %vm4856 = vcmp.lt.s32.totalorder %v4840, 192
        %vm4857 = vcmp.lt.s32.totalorder %v4841, 192
        %vm4858 = vcmp.lt.s32.totalorder %v4842, 192
        %vm4859 = vcmp.lt.s32.totalorder %v4843, 192
        %vm4860 = vcmp.lt.s32.totalorder %v4844, 192
        %vm4861 = vcmp.lt.s32.totalorder %v4845, 192
        %vm4862 = vcmp.lt.s32.totalorder %v4846, 192
        %vm4863 = vcmp.lt.s32.totalorder %v4847, 192
        %vm4864 = vcmp.lt.s32.totalorder %v4848, 192
        %vm4865 = vcmp.lt.s32.totalorder %v4849, 192
        %vm4866 = vcmp.lt.s32.totalorder %v4850, 192
        %vm4867 = vcmp.lt.s32.totalorder %v4851, 192
        %vm4868 = vcmp.lt.s32.totalorder %v4852, 192
        %vm4869 = vcmp.lt.s32.totalorder %v4853, 192
        %vm4870 = vcmp.lt.s32.totalorder %v4854, 192
        %v4871 = vsel %vm4855, %v4804, 0.0
        %v4872 = vsel %vm4856, %v4805, 0.0
        %v4873 = vsel %vm4857, %v4806, 0.0
        %v4874 = vsel %vm4858, %v4807, 0.0
        %v4875 = vsel %vm4859, %v4808, 0.0
        %v4876 = vsel %vm4860, %v4809, 0.0
        %v4877 = vsel %vm4861, %v4810, 0.0
        %v4878 = vsel %vm4862, %v4811, 0.0
        %v4879 = vsel %vm4863, %v4812, 0.0
        %v4880 = vsel %vm4864, %v4813, 0.0
        %v4881 = vsel %vm4865, %v4814, 0.0
        %v4882 = vsel %vm4866, %v4815, 0.0
        %v4883 = vsel %vm4867, %v4816, 0.0
        %v4884 = vsel %vm4868, %v4817, 0.0
        %v4885 = vsel %vm4869, %v4818, 0.0
        %v4886 = vsel %vm4870, %v4819, 0.0
        %vm4887 = vcmask 7168
        %v4888 = vsel %vm4887, %v4871, 0.0
        %v4889 = vsel %vm4887, %v4872, 0.0
        %v4890 = vadd.f32 %v4888, %v4889
        %v4891 = vsel %vm4887, %v4873, 0.0
        %v4892 = vadd.f32 %v4890, %v4891
        %v4893 = vsel %vm4887, %v4874, 0.0
        %v4894 = vadd.f32 %v4892, %v4893
        %v4895 = vsel %vm4887, %v4875, 0.0
        %v4896 = vadd.f32 %v4894, %v4895
        %v4897 = vsel %vm4887, %v4876, 0.0
        %v4898 = vadd.f32 %v4896, %v4897
        %v4899 = vsel %vm4887, %v4877, 0.0
        %v4900 = vadd.f32 %v4898, %v4899
        %v4901 = vsel %vm4887, %v4878, 0.0
        %v4902 = vadd.f32 %v4900, %v4901
        %v4903 = vsel %vm4887, %v4879, 0.0
        %v4904 = vadd.f32 %v4902, %v4903
        %v4905 = vsel %vm4887, %v4880, 0.0
        %v4906 = vadd.f32 %v4904, %v4905
        %v4907 = vsel %vm4887, %v4881, 0.0
        %v4908 = vadd.f32 %v4906, %v4907
        %v4909 = vsel %vm4887, %v4882, 0.0
        %v4910 = vadd.f32 %v4908, %v4909
        %v4911 = vsel %vm4887, %v4883, 0.0
        %v4912 = vadd.f32 %v4910, %v4911
        %v4913 = vsel %vm4887, %v4884, 0.0
        %v4914 = vadd.f32 %v4912, %v4913
        %v4915 = vsel %vm4887, %v4885, 0.0
        %v4916 = vadd.f32 %v4914, %v4915
        %v4917 = vsel %vm4887, %v4886, 0.0
        %v4918 = vadd.f32 %v4916, %v4917
        %4919 = vadd.xlane.f32.xlu0 %v4918
        %v4920 = vpop.xlane.xlu0 %4919
        %v4921 = vrot.slane %v4920, 4
        %v4922 = vadd.f32 %v4920, %v4921
        %v4923 = vrot.slane %v4922, 2
        %v4924 = vadd.f32 %v4922, %v4923
        %v4925 = vrot.slane %v4924, 1
        %v4926 = vadd.f32 %v4924, %v4925
        %s4927 = vtos %v4926
        %v4928 = vstv %s4927
        %4929 = vst [vmem:[%s176] sm:$0xff] %v4928
        %s4930 = sand.u32 %s92, 1
        %s4931 = scalar_lea.sflag [#allocation3], %s4930
        %s4932 = sand.u32 %s92, 1
        %s4933 = smul.addr %s4932, 8
        %s4934 = scalar_lea.vmem [#allocation2], %s4933
        // Predicated region
        $region29: #{tpu_custom_call.1} parent=27 // pred_check
          %p4935 = pneg %p102
        $region30: #{tpu_custom_call.1} parent=27 // pred_check_branch
          %4937 = sbr.rel (%p4935) target = $region32
        $region31: #{tpu_custom_call.1} parent=27 // pred_region
          %4939 = vsyncadd %s4931, 0
          %s4940 = smul.addr %s20, 2
          %s4941 = sadd.s32 %s21, %s4940
          %s4942 = smul.addr %s4941, 8
          %s4943 = scalar_lea.hbm %s2, %s4942
          %s4945 = sshll.u32 %s4934, 4
          %s4946 = int_to_ptr.vmem [resolvable:$true] %s4945
          %s4947 = sshll.u32 %s4943, 4
          %s4948 = int_to_ptr.hbm [resolvable:$true] %s4947
          %4950 = dma.vmem_to_hbm [thread:$0]  %s4946, 128, %s4948, %s4931
        $region32: #{tpu_custom_call.1} parent=27 // pred_fallthru
          _
      $region28: #{tpu_custom_call.1} parent=5 // pred_fallthru
        _
      %p4951 = scmp.le.s32.totalorder 2, %s11
      // Predicated region
      $region33: #{tpu_custom_call.1} parent=5 // pred_check
        %p4952 = pneg %p4951
      $region34: #{tpu_custom_call.1} parent=5 // pred_check_branch
        %4954 = sbr.rel (%p4952) target = $region36
      $region35: #{tpu_custom_call.1} parent=5 // pred_region
        %s4955 = ssub.s32 %s11, 2
        // Predicated region
        $region37: #{tpu_custom_call.1} parent=35 // pred_check
          %p4956 = pneg %p108
        $region38: #{tpu_custom_call.1} parent=35 // pred_check_branch
          %4958 = sbr.rel (%p4956) target = $region40
        $region39: #{tpu_custom_call.1} parent=35 // pred_region
          %s4959 = sand.u32 %s93, 1
          %s4960 = scalar_lea.sflag [#allocation3], %s4959
          %s4961 = sand.u32 %s93, 1
          %s4962 = smul.addr %s4961, 8
          %s4963 = scalar_lea.vmem [#allocation2], %s4962
          %4965 = dma.done %s4960, 128
        $region40: #{tpu_custom_call.1} parent=35 // pred_fallthru
          _
      $region36: #{tpu_custom_call.1} parent=5 // pred_fallthru
        _
    $region6: #{tpu_custom_call.1} parent=1 // loop_footer
      %s15 = sadd.s32 1, %s11
    $region7: #{tpu_custom_call.1} parent=1 // loop_footer_branch
      %10 = sbr.rel target = $region3
    $region8: #{tpu_custom_call.1} parent=1 // loop_exit
      _
    %4966 = vsyncpa [#allocation3], 1
    %s4967 = scalar_lea.sflag [#allocation3], 1
    %4968 = vsyncpa %s4967, 1

</llo_original>
